<compile_context>
chip_gen: v5e
topology: v5e:2x2
jax: 0.10.0
libtpu: 0.0.40
codegen_flags: <defaults>
</compile_context>

<pallas_src>
import math

import numpy as np
import jax
import jax.numpy as jnp
from jax.experimental import pallas as pl
from jax.experimental.pallas import tpu as pltpu  # noqa: F401

# ------------------------- model config (small, synthetic) -------------------------
DIM = 64                      # base_model.params.dim
N_HEADS = 4
N_KV_HEADS = 2
HEAD_DIM = DIM // N_HEADS     # 16
N_REP = N_HEADS // N_KV_HEADS # 2
N_LAYERS = 2
VOCAB = 128
FFN_DIM = 128
ROPE_THETA = 10000.0
LATENT_DIM = 32
ENC_HIDDEN = 512              # LatentFeatureEncoder hidden_dim default
NORM_EPS = 1e-5

BATCH = 2
SEQ = 8
BS = BATCH * SEQ              # 16 rows in the flattened activation slab
LAT_B = 8                     # latent batch padded to a full sublane tile (>= BATCH)

QW = N_HEADS * HEAD_DIM       # 64  (q width)
KW = N_KV_HEADS * HEAD_DIM    # 32  (k/v width)
QKV_W = QW + 2 * KW           # 128 : [q | k | v]
WQKV_COLS = 2 * QKV_W         # 256 : [q|k|v | q_sw|k_sw|pad]
NEG_INF = float("-inf")

# ------------------------- packed-slab row offsets (python-static, sublane-aligned) -------------------------
# encoder slab (bf16, width ENC_HIDDEN=512); all block starts are multiples of 16 (bf16 sublane tile)
ENC_W1_R = 0                               # enc_w1^T  (32, 512)
ENC_B1_R = 32                              # enc_b1    (1, 512)   (block padded to 16 rows)
ENC_W2_R = 48                              # enc_w2^T  (512, 512)
ENC_B2_R = ENC_W2_R + ENC_HIDDEN           # 560: enc_b2 (1, 512)
ENC_ROWS = ENC_B2_R + 16                   # 576

# width-64 slab (f32); block starts multiples of 8
W3_R = 0                                   # enc_w3^T  (512, 64)
B3_R = W3_R + ENC_HIDDEN                   # 512: enc_b3 (1, 64)
EMB_R = B3_R + 8                           # 520: tok_emb (VOCAB, 64)
FING_R = EMB_R + VOCAB                     # 648: final norm gamma (1, 64)
LAYER64_R = FING_R + 8                     # 656: per-layer block
WO_OFF = 0                                 # wo^T   (64, 64)
W2_OFF = QW                                # w2^T   (128, 64)
ATTNG_OFF = QW + FFN_DIM                   # 192: attn norm gamma (1, 64)
FFNG_OFF = ATTNG_OFF + 8                   # 200: ffn norm gamma  (1, 64)
LAYER64_STRIDE = FFNG_OFF + 8              # 208
W64_ROWS = LAYER64_R + N_LAYERS * LAYER64_STRIDE

# width-256 slab (f32)
ROPE_R = 0                                 # (BS, 256) = [cos_full | sin_full]
LAYER256_R = ROPE_R + BS                   # 16
WQKV_OFF = 0                               # packed wqkv (64, 256)
W13_OFF = DIM                              # packed [w1|w3] (64, 256)
LAYER256_STRIDE = 2 * DIM                  # 128
W256_ROWS = LAYER256_R + N_LAYERS * LAYER256_STRIDE

# width-128 misc slab (f32)
WOUT_R = 0                                 # wout^T (64, 128)
MASK_R = WOUT_R + DIM                      # 64: block-diag causal mask in cols [0, BS)
MISC_ROWS = MASK_R + BS                    # 80


# ------------------------- fused Pallas kernel -------------------------
def _rmsnorm(x, g):
    ms = jnp.mean(x * x, axis=-1, keepdims=True)
    return x * jax.lax.rsqrt(ms + NORM_EPS) * g


def fused_forward_kernel(iv_ref, latent_ref, enc_ref, w64_ref, w256_ref, misc_ref, o_ref):
    f32 = jnp.float32

    iv = iv_ref[...]                                   # (BS, 4) int32
    ids = iv[:, 0:1]                                   # token id per row
    sidx = iv[:, 1:2]                                  # position within sequence
    sp = iv[:, 2:3]                                    # special-token position (per batch, broadcast)
    bidx = iv[:, 3:4]                                  # batch index per row

    # ---- latent feature encoder: Linear -> ReLU -> (Dropout=id) -> Linear -> ReLU -> Linear ----
    ew1 = enc_ref[ENC_W1_R:ENC_W1_R + LATENT_DIM, :].astype(f32)
    eb1 = enc_ref[ENC_B1_R:ENC_B1_R + 16, :].astype(f32)[0:1, :]
    ew2 = enc_ref[ENC_W2_R:ENC_W2_R + ENC_HIDDEN, :].astype(f32)
    eb2 = enc_ref[ENC_B2_R:ENC_B2_R + 16, :].astype(f32)[0:1, :]
    z = jnp.maximum(jnp.dot(latent_ref[...], ew1, preferred_element_type=f32) + eb1, 0.0)
    z = jnp.maximum(jnp.dot(z, ew2, preferred_element_type=f32) + eb2, 0.0)
    latent_emb = (jnp.dot(z, w64_ref[W3_R:W3_R + ENC_HIDDEN, :], preferred_element_type=f32)
                  + w64_ref[B3_R:B3_R + 1, :])                                  # (LAT_B, DIM)

    # ---- token embedding gather (one-hot matmul) + latent splice (one matmul) ----
    onehot = (jax.lax.broadcasted_iota(jnp.int32, (BS, VOCAB), 1) == ids).astype(f32)
    tok = jnp.dot(onehot, w64_ref[EMB_R:EMB_R + VOCAB, :], preferred_element_type=f32)   # (BS, DIM)
    sel = (jax.lax.broadcasted_iota(jnp.int32, (BS, LAT_B), 1) == bidx).astype(f32)      # (BS, LAT_B)
    latent_rows = jnp.dot(sel, latent_emb, preferred_element_type=f32)                   # (BS, DIM)
    is_special = (sidx == sp) & (sp >= 0) & (sp < SEQ)
    h = jnp.where(is_special, latent_rows, tok)

    # ---- constants resident across layers ----
    cs = w256_ref[ROPE_R:ROPE_R + BS, :]               # (BS, 256) = [cos_full | sin_full]
    cos_full = cs[:, :QKV_W]
    sin_full = cs[:, QKV_W:]
    mask = misc_ref[MASK_R:MASK_R + BS, 0:BS]          # (BS, BS) block-diag causal
    scale = 1.0 / math.sqrt(HEAD_DIM)

    for layer in range(N_LAYERS):                      # static unroll
        b64 = LAYER64_R + layer * LAYER64_STRIDE
        b256 = LAYER256_R + layer * LAYER256_STRIDE

        # ---------------- attention block ----------------
        xn = _rmsnorm(h, w64_ref[b64 + ATTNG_OFF:b64 + ATTNG_OFF + 1, :])
        qkv = jnp.dot(xn, w256_ref[b256 + WQKV_OFF:b256 + WQKV_OFF + DIM, :],
                      preferred_element_type=f32)                               # (BS, 256)
        # lane-dense RoPE: two full-128-lane FMAs produce [qr | kr | v]
        rot = qkv[:, :QKV_W] * cos_full + qkv[:, QKV_W:] * sin_full             # (BS, 128)

        head_outs = []
        for hq in range(N_HEADS):                                               # static per-head loop
            kv = hq // N_REP                                                    # GQA head sharing
            q_h = rot[:, hq * HEAD_DIM:(hq + 1) * HEAD_DIM]
            k_h = rot[:, QW + kv * HEAD_DIM:QW + (kv + 1) * HEAD_DIM]
            v_h = rot[:, QW + KW + kv * HEAD_DIM:QW + KW + (kv + 1) * HEAD_DIM]
            s = pl.dot(q_h, k_h, trans_b=True) * scale + mask                   # MXU transposed feed
            m = jnp.max(s, axis=-1, keepdims=True)
            p = jnp.exp(s - m)
            a = p * pl.reciprocal(jnp.sum(p, axis=-1, keepdims=True), approx=True)
            head_outs.append(jnp.dot(a, v_h, preferred_element_type=f32))       # (BS, HEAD_DIM)
        attn_out = jnp.concatenate(head_outs, axis=-1)                          # (BS, QW) lane concat
        h = h + jnp.dot(attn_out, w64_ref[b64 + WO_OFF:b64 + WO_OFF + QW, :],
                        preferred_element_type=f32)                             # single Wo matmul

        # ---------------- feed-forward block (SwiGLU) ----------------
        xn2 = _rmsnorm(h, w64_ref[b64 + FFNG_OFF:b64 + FFNG_OFF + 1, :])
        ab = jnp.dot(xn2, w256_ref[b256 + W13_OFF:b256 + W13_OFF + DIM, :],
                     preferred_element_type=f32)                                # (BS, 256) = [w1|w3]
        a1 = ab[:, :FFN_DIM]
        a3 = ab[:, FFN_DIM:]
        h = h + jnp.dot(a1 * jax.nn.sigmoid(a1) * a3,
                        w64_ref[b64 + W2_OFF:b64 + W2_OFF + FFN_DIM, :],
                        preferred_element_type=f32)

    # ---- final norm + output projection (lane-dense VOCAB = 128) ----
    xn = _rmsnorm(h, w64_ref[FING_R:FING_R + 1, :])
    o_ref[...] = jnp.dot(xn, misc_ref[WOUT_R:WOUT_R + DIM, :], preferred_element_type=f32)


# ------------------------- trace-time constant tables -------------------------
def _rope_perm(n_heads, hd, swap):
    """Per-head column permutation of the interleaved RoPE layout.
    swap=False -> [even | odd]; swap=True -> [odd | even] (the rolled copy)."""
    half = hd // 2
    idx = []
    for h in range(n_heads):
        base = h * hd
        ev = [base + 2 * i for i in range(half)]
        od = [base + 2 * i + 1 for i in range(half)]
        idx += (od + ev) if swap else (ev + od)
    return np.asarray(idx)


def _static_tables(B, S):
    """Merged lane-dense RoPE tables (aligned to the packed qkv lane layout, cos=1/sin=0 over the
    v/pad lanes) and the block-diagonal causal mask over the flattened B*S rows. Pure numpy."""
    inv_freq = 1.0 / (ROPE_THETA ** (np.arange(0, HEAD_DIM, 2, dtype=np.float64) / HEAD_DIM))
    ang = np.outer(np.arange(S, dtype=np.float64), inv_freq)            # (S, HEAD_DIM/2)
    cos2 = np.concatenate([np.cos(ang), np.cos(ang)], axis=1)           # (S, HEAD_DIM) [cos|cos]
    sin2 = np.concatenate([-np.sin(ang), np.sin(ang)], axis=1)          # (S, HEAD_DIM) [-sin|sin]
    cosq = np.tile(np.tile(cos2, (1, N_HEADS)), (B, 1))                 # (BS, QW)
    sinq = np.tile(np.tile(sin2, (1, N_HEADS)), (B, 1))
    cosk = np.tile(np.tile(cos2, (1, N_KV_HEADS)), (B, 1))              # (BS, KW)
    sink = np.tile(np.tile(sin2, (1, N_KV_HEADS)), (B, 1))
    cos_full = np.concatenate([cosq, cosk, np.ones((B * S, KW))], axis=1).astype(np.float32)
    sin_full = np.concatenate([sinq, sink, np.zeros((B * S, KW))], axis=1).astype(np.float32)

    r = np.arange(B * S)
    same_b = (r[:, None] // S) == (r[None, :] // S)
    causal = (r[None, :] % S) <= (r[:, None] % S)
    mask = np.where(same_b & causal, 0.0, NEG_INF).astype(np.float32)   # (BS, BS)
    return cos_full, sin_full, mask


# ------------------------- one-time weight packing into 4 slabs -------------------------
def prepare_params(params):
    def np32(x):
        return np.asarray(x, dtype=np.float32)

    # encoder wide slab (bf16): [w1^T | b1 | w2^T | b2]
    enc = np.zeros((ENC_ROWS, ENC_HIDDEN), np.float32)
    enc[ENC_W1_R:ENC_W1_R + LATENT_DIM] = np32(params["enc_w1"]).T
    enc[ENC_B1_R] = np32(params["enc_b1"])
    enc[ENC_W2_R:ENC_W2_R + ENC_HIDDEN] = np32(params["enc_w2"]).T
    enc[ENC_B2_R] = np32(params["enc_b2"])

    # width-64 slab (f32)
    w64 = np.zeros((W64_ROWS, DIM), np.float32)
    w64[W3_R:W3_R + ENC_HIDDEN] = np32(params["enc_w3"]).T
    w64[B3_R] = np32(params["enc_b3"])
    w64[EMB_R:EMB_R + VOCAB] = np32(params["tok_emb"])
    w64[FING_R] = np32(params["final_norm"])

    # width-256 slab (f32): RoPE block + per-layer [wqkv ; w1|w3]
    w256 = np.zeros((W256_ROWS, WQKV_COLS), np.float32)
    cos_full, sin_full, mask = _static_tables(BATCH, SEQ)
    w256[ROPE_R:ROPE_R + BS, :QKV_W] = cos_full
    w256[ROPE_R:ROPE_R + BS, QKV_W:] = sin_full

    pq, pqs = _rope_perm(N_HEADS, HEAD_DIM, False), _rope_perm(N_HEADS, HEAD_DIM, True)
    pk, pks = _rope_perm(N_KV_HEADS, HEAD_DIM, False), _rope_perm(N_KV_HEADS, HEAD_DIM, True)
    for l, layer in enumerate(params["layers"]):
        wq_t, wk_t, wv_t = np32(layer["wq"]).T, np32(layer["wk"]).T, np32(layer["wv"]).T
        b256 = LAYER256_R + l * LAYER256_STRIDE
        w256[b256:b256 + DIM, 0:QW] = wq_t[:, pq]
        w256[b256:b256 + DIM, QW:QW + KW] = wk_t[:, pk]
        w256[b256:b256 + DIM, QW + KW:QKV_W] = wv_t
        w256[b256:b256 + DIM, QKV_W:QKV_W + QW] = wq_t[:, pqs]
        w256[b256:b256 + DIM, QKV_W + QW:QKV_W + QW + KW] = wk_t[:, pks]
        # remaining 32 cols stay zero (pad lanes; sin=0 there too)
        w256[b256 + W13_OFF:b256 + W13_OFF + DIM, 0:FFN_DIM] = np32(layer["w1"]).T
        w256[b256 + W13_OFF:b256 + W13_OFF + DIM, FFN_DIM:] = np32(layer["w3"]).T

        b64 = LAYER64_R + l * LAYER64_STRIDE
        w64[b64 + WO_OFF:b64 + WO_OFF + QW] = np32(layer["wo"]).T
        w64[b64 + W2_OFF:b64 + W2_OFF + FFN_DIM] = np32(layer["w2"]).T
        w64[b64 + ATTNG_OFF] = np32(layer["attn_norm"])
        w64[b64 + FFNG_OFF] = np32(layer["ffn_norm"])

    # width-128 misc slab (f32): wout^T + causal mask
    misc = np.zeros((MISC_ROWS, VOCAB), np.float32)
    misc[WOUT_R:WOUT_R + DIM] = np32(params["wout"]).T
    misc[MASK_R:MASK_R + BS, :BS] = mask

    return {
        "enc": jnp.asarray(enc, dtype=jnp.bfloat16),   # ~1 MiB -> 0.5 MiB of DMA bytes
        "w64": jnp.asarray(w64),
        "w256": jnp.asarray(w256),
        "misc": jnp.asarray(misc),
    }


# ------------------------- forward wrapper (single pallas_call, 6 input DMAs) -------------------------
def multimodal_llama_forward_pallas(packed, input_ids, latent_features, special_positions):
    B, S = input_ids.shape
    bs = B * S
    ids = input_ids.reshape(bs).astype(jnp.int32)
    sp = jnp.repeat(special_positions.astype(jnp.int32), S)
    sidx = jnp.asarray(np.tile(np.arange(S, dtype=np.int32), B))
    bidx = jnp.asarray(np.repeat(np.arange(B, dtype=np.int32), S))
    intvec = jnp.stack([ids, sidx, sp, bidx], axis=1)                       # (bs, 4) int32

    lat_pad = jnp.zeros((LAT_B, LATENT_DIM), jnp.float32).at[:B].set(
        latent_features.astype(jnp.float32))                               # sublane-padded batch

    logits = pl.pallas_call(
        fused_forward_kernel,
        out_shape=jax.ShapeDtypeStruct((bs, VOCAB), jnp.float32),
    )(intvec, lat_pad, packed["enc"], packed["w64"], packed["w256"], packed["misc"])
    return logits.reshape(B, S, VOCAB)


# ------------------------- pure-JAX reference (PyTorch semantics) -------------------------
def _rmsnorm_ref(x, g):
    return x * jax.lax.rsqrt(jnp.mean(x * x, axis=-1, keepdims=True) + NORM_EPS) * g


def _rope_ref(x, cos, sin):
    B, S, H, hd = x.shape
    xr = x.reshape(B, S, H, hd // 2, 2)
    x0, x1 = xr[..., 0], xr[..., 1]
    c = cos[None, :, None, :]
    s = sin[None, :, None, :]
    return jnp.stack([x0 * c - x1 * s, x0 * s + x1 * c], axis=-1).reshape(B, S, H, hd)


def forward_ref(params, input_ids, latent_features, special_positions):
    B, S = input_ids.shape
    x = latent_features
    e = jnp.maximum(x @ params["enc_w1"].T + params["enc_b1"], 0.0)
    e = jnp.maximum(e @ params["enc_w2"].T + params["enc_b2"], 0.0)
    latent_emb = e @ params["enc_w3"].T + params["enc_b3"]

    tok_emb = jnp.take(params["tok_emb"], input_ids, axis=0)
    valid = (special_positions >= 0) & (special_positions < S)
    onehot = (jnp.arange(S)[None, :] == special_positions[:, None]) & valid[:, None]
    h = jnp.where(onehot[:, :, None], latent_emb[:, None, :], tok_emb)

    inv_freq = 1.0 / (ROPE_THETA ** (jnp.arange(0, HEAD_DIM, 2, dtype=jnp.float32) / HEAD_DIM))
    t = jnp.arange(S, dtype=jnp.float32)
    angles = jnp.outer(t, inv_freq)
    cos, sin = jnp.cos(angles), jnp.sin(angles)
    mask = jnp.where(jnp.arange(S)[None, :] > jnp.arange(S)[:, None], jnp.float32(NEG_INF), 0.0)

    for layer in params["layers"]:
        xn = _rmsnorm_ref(h, layer["attn_norm"])
        q = (xn @ layer["wq"].T).reshape(B, S, N_HEADS, HEAD_DIM)
        k = (xn @ layer["wk"].T).reshape(B, S, N_KV_HEADS, HEAD_DIM)
        v = (xn @ layer["wv"].T).reshape(B, S, N_KV_HEADS, HEAD_DIM)
        q = _rope_ref(q, cos, sin)
        k = _rope_ref(k, cos, sin)
        k = jnp.repeat(k, N_REP, axis=2)   # repeat_kv
        v = jnp.repeat(v, N_REP, axis=2)
        qh, kh, vh = (a.transpose(0, 2, 1, 3) for a in (q, k, v))
        scores = jnp.einsum("bhqd,bhkd->bhqk", qh, kh) / math.sqrt(HEAD_DIM) + mask
        attn = jax.nn.softmax(scores, axis=-1)
        out = jnp.einsum("bhqk,bhkd->bhqd", attn, vh)
        out = out.transpose(0, 2, 1, 3).reshape(B, S, -1)
        h = h + out @ layer["wo"].T
        xn = _rmsnorm_ref(h, layer["ffn_norm"])
        a = xn @ layer["w1"].T
        b = xn @ layer["w3"].T
        h = h + (a * jax.nn.sigmoid(a) * b) @ layer["w2"].T
    h = _rmsnorm_ref(h, params["final_norm"])
    return h @ params["wout"].T


# ------------------------- deterministic parameter init -------------------------
def init_params(key):
    keys = jax.random.split(key, 64)
    ki = iter(keys)

    def nrm(shape, scale=0.02):
        return scale * jax.random.normal(next(ki), shape, dtype=jnp.float32)

    params = {
        "tok_emb": nrm((VOCAB, DIM)),
        # LatentFeatureEncoder (PyTorch Linear weights are (out, in))
        "enc_w1": nrm((ENC_HIDDEN, LATENT_DIM)), "enc_b1": nrm((ENC_HIDDEN,)),
        "enc_w2": nrm((ENC_HIDDEN, ENC_HIDDEN)), "enc_b2": nrm((ENC_HIDDEN,)),
        "enc_w3": nrm((DIM, ENC_HIDDEN)),        "enc_b3": nrm((DIM,)),
        "final_norm": jnp.ones((DIM,), jnp.float32),
        "wout": nrm((VOCAB, DIM)),
        "layers": [],
    }
    for _ in range(N_LAYERS):
        params["layers"].append({
            "attn_norm": jnp.ones((DIM,), jnp.float32),
            "wq": nrm((N_HEADS * HEAD_DIM, DIM)),
            "wk": nrm((N_KV_HEADS * HEAD_DIM, DIM)),
            "wv": nrm((N_KV_HEADS * HEAD_DIM, DIM)),
            "wo": nrm((DIM, N_HEADS * HEAD_DIM)),
            "ffn_norm": jnp.ones((DIM,), jnp.float32),
            "w1": nrm((FFN_DIM, DIM)),
            "w3": nrm((FFN_DIM, DIM)),
            "w2": nrm((DIM, FFN_DIM)),
        })
    return params


# ------------------------- main -------------------------
if __name__ == "__main__":
    key = jax.random.PRNGKey(0)
    pkey, ikey, lkey = jax.random.split(key, 3)

    params = init_params(pkey)
    packed = prepare_params(params)                                           # one-time packing
    input_ids = jax.random.randint(ikey, (BATCH, SEQ), 0, VOCAB)              # (2, 8) int32
    latent = jax.random.normal(lkey, (BATCH, LATENT_DIM), dtype=jnp.float32)  # (2, 32)
    special_pos = jnp.array([2, 5], dtype=jnp.int32)                          # (2,)

    fwd = jax.jit(multimodal_llama_forward_pallas)
    logits = jax.block_until_ready(fwd(packed, input_ids, latent, special_pos))
    assert logits.shape == (BATCH, SEQ, VOCAB) and logits.dtype == jnp.float32

    ref = forward_ref(params, input_ids, latent, special_pos)
    np.testing.assert_allclose(np.asarray(logits), np.asarray(ref), rtol=2e-3, atol=2e-3)

    print("KERNEL_OK")
</pallas_src>

<mosaic_0001>
module attributes {stable_mosaic.version = 11 : i64} {
  func.func @fused_forward_kernel(%arg0: memref<16x4xi32, #tpu.memory_space<vmem>>, %arg1: memref<8x32xf32, #tpu.memory_space<vmem>>, %arg2: memref<576x512xbf16, #tpu.memory_space<vmem>>, %arg3: memref<1072x64xf32, #tpu.memory_space<vmem>>, %arg4: memref<272x256xf32, #tpu.memory_space<vmem>>, %arg5: memref<80x128xf32, #tpu.memory_space<vmem>>, %arg6: memref<16x128xf32, #tpu.memory_space<vmem>>) attributes {dimension_semantics = [], scalar_prefetch = 0 : i64, scratch_operands = 0 : i64, tpu.core_type = #tpu.core_type<tc>} {
    %c0 = arith.constant 0 : index
    %c0_0 = arith.constant 0 : index
    %0 = vector.load %arg0[%c0, %c0_0] : memref<16x4xi32, #tpu.memory_space<vmem>>, vector<16x4xi32>
    %1 = vector.extract_strided_slice %0 {offsets = [0, 0], sizes = [16, 1], strides = [1, 1]} : vector<16x4xi32> to vector<16x1xi32>
    %2 = vector.extract_strided_slice %0 {offsets = [0, 1], sizes = [16, 1], strides = [1, 1]} : vector<16x4xi32> to vector<16x1xi32>
    %3 = vector.extract_strided_slice %0 {offsets = [0, 2], sizes = [16, 1], strides = [1, 1]} : vector<16x4xi32> to vector<16x1xi32>
    %4 = vector.extract_strided_slice %0 {offsets = [0, 3], sizes = [16, 1], strides = [1, 1]} : vector<16x4xi32> to vector<16x1xi32>
    %c0_1 = arith.constant 0 : index
    %c0_2 = arith.constant 0 : index
    %5 = vector.load %arg2[%c0_1, %c0_2] : memref<576x512xbf16, #tpu.memory_space<vmem>>, vector<32x512xbf16>
    %6 = arith.extf %5 : vector<32x512xbf16> to vector<32x512xf32>
    %c32 = arith.constant 32 : index
    %c0_3 = arith.constant 0 : index
    %7 = vector.load %arg2[%c32, %c0_3] : memref<576x512xbf16, #tpu.memory_space<vmem>>, vector<16x512xbf16>
    %8 = arith.extf %7 : vector<16x512xbf16> to vector<16x512xf32>
    %9 = vector.extract_strided_slice %8 {offsets = [0, 0], sizes = [1, 512], strides = [1, 1]} : vector<16x512xf32> to vector<1x512xf32>
    %c48 = arith.constant 48 : index
    %c0_4 = arith.constant 0 : index
    %10 = vector.load %arg2[%c48, %c0_4] : memref<576x512xbf16, #tpu.memory_space<vmem>>, vector<512x512xbf16>
    %11 = arith.extf %10 : vector<512x512xbf16> to vector<512x512xf32>
    %c560 = arith.constant 560 : index
    %c0_5 = arith.constant 0 : index
    %12 = vector.load %arg2[%c560, %c0_5] : memref<576x512xbf16, #tpu.memory_space<vmem>>, vector<16x512xbf16>
    %13 = arith.extf %12 : vector<16x512xbf16> to vector<16x512xf32>
    %14 = vector.extract_strided_slice %13 {offsets = [0, 0], sizes = [1, 512], strides = [1, 1]} : vector<16x512xf32> to vector<1x512xf32>
    %c0_6 = arith.constant 0 : index
    %c0_7 = arith.constant 0 : index
    %15 = vector.load %arg1[%c0_6, %c0_7] : memref<8x32xf32, #tpu.memory_space<vmem>>, vector<8x32xf32>
    %cst = arith.constant dense<0.000000e+00> : vector<8x512xf32>
    %16 = tpu.matmul %15, %6, %cst {dimension_numbers = #tpu.dot_dimension_numbers<[1], [0], [0], [1], [0, 0, 1, 1], [], []>} : vector<8x32xf32>, vector<32x512xf32>, vector<8x512xf32> -> vector<8x512xf32>
    %17 = vector.broadcast %9 : vector<1x512xf32> to vector<8x512xf32>
    %18 = arith.addf %16, %17 : vector<8x512xf32>
    %cst_8 = arith.constant 0.000000e+00 : f32
    %19 = vector.broadcast %cst_8 : f32 to vector<8x512xf32>
    %20 = arith.maximumf %18, %19 : vector<8x512xf32>
    %cst_9 = arith.constant dense<0.000000e+00> : vector<8x512xf32>
    %21 = tpu.matmul %20, %11, %cst_9 {dimension_numbers = #tpu.dot_dimension_numbers<[1], [0], [0], [1], [0, 0, 1, 1], [], []>} : vector<8x512xf32>, vector<512x512xf32>, vector<8x512xf32> -> vector<8x512xf32>
    %22 = vector.broadcast %14 : vector<1x512xf32> to vector<8x512xf32>
    %23 = arith.addf %21, %22 : vector<8x512xf32>
    %cst_10 = arith.constant 0.000000e+00 : f32
    %24 = vector.broadcast %cst_10 : f32 to vector<8x512xf32>
    %25 = arith.maximumf %23, %24 : vector<8x512xf32>
    %c0_11 = arith.constant 0 : index
    %c0_12 = arith.constant 0 : index
    %26 = vector.load %arg3[%c0_11, %c0_12] : memref<1072x64xf32, #tpu.memory_space<vmem>>, vector<512x64xf32>
    %cst_13 = arith.constant dense<0.000000e+00> : vector<8x64xf32>
    %27 = tpu.matmul %25, %26, %cst_13 {dimension_numbers = #tpu.dot_dimension_numbers<[1], [0], [0], [1], [0, 0, 1, 1], [], []>} : vector<8x512xf32>, vector<512x64xf32>, vector<8x64xf32> -> vector<8x64xf32>
    %c512 = arith.constant 512 : index
    %c0_14 = arith.constant 0 : index
    %28 = vector.load %arg3[%c512, %c0_14] : memref<1072x64xf32, #tpu.memory_space<vmem>>, vector<1x64xf32>
    %29 = vector.broadcast %28 : vector<1x64xf32> to vector<8x64xf32>
    %30 = arith.addf %27, %29 : vector<8x64xf32>
    %31 = tpu.iota {dimensions = array<i32: 1>} : vector<16x128xi32>
    %32 = vector.broadcast %1 : vector<16x1xi32> to vector<16x128xi32>
    %33 = arith.cmpi eq, %31, %32 : vector<16x128xi32>
    %34 = arith.extui %33 : vector<16x128xi1> to vector<16x128xi32>
    %35 = arith.sitofp %34 : vector<16x128xi32> to vector<16x128xf32>
    %c520 = arith.constant 520 : index
    %c0_15 = arith.constant 0 : index
    %36 = vector.load %arg3[%c520, %c0_15] : memref<1072x64xf32, #tpu.memory_space<vmem>>, vector<128x64xf32>
    %cst_16 = arith.constant dense<0.000000e+00> : vector<16x64xf32>
    %37 = tpu.matmul %35, %36, %cst_16 {dimension_numbers = #tpu.dot_dimension_numbers<[1], [0], [0], [1], [0, 0, 1, 1], [], []>} : vector<16x128xf32>, vector<128x64xf32>, vector<16x64xf32> -> vector<16x64xf32>
    %38 = tpu.iota {dimensions = array<i32: 1>} : vector<16x8xi32>
    %39 = vector.broadcast %4 : vector<16x1xi32> to vector<16x8xi32>
    %40 = arith.cmpi eq, %38, %39 : vector<16x8xi32>
    %41 = arith.extui %40 : vector<16x8xi1> to vector<16x8xi32>
    %42 = arith.sitofp %41 : vector<16x8xi32> to vector<16x8xf32>
    %cst_17 = arith.constant dense<0.000000e+00> : vector<16x64xf32>
    %43 = tpu.matmul %42, %30, %cst_17 {dimension_numbers = #tpu.dot_dimension_numbers<[1], [0], [0], [1], [0, 0, 1, 1], [], []>} : vector<16x8xf32>, vector<8x64xf32>, vector<16x64xf32> -> vector<16x64xf32>
    %44 = arith.cmpi eq, %2, %3 : vector<16x1xi32>
    %c0_i32 = arith.constant 0 : i32
    %45 = vector.broadcast %c0_i32 : i32 to vector<16x1xi32>
    %46 = arith.cmpi sge, %3, %45 : vector<16x1xi32>
    %47 = arith.andi %44, %46 : vector<16x1xi1>
    %c8_i32 = arith.constant 8 : i32
    %48 = vector.broadcast %c8_i32 : i32 to vector<16x1xi32>
    %49 = arith.cmpi slt, %3, %48 : vector<16x1xi32>
    %50 = arith.andi %47, %49 : vector<16x1xi1>
    %51 = vector.shape_cast %50 : vector<16x1xi1> to vector<16x1xi1>
    %52 = vector.broadcast %51 : vector<16x1xi1> to vector<16x64xi1>
    %53 = arith.select %52, %43, %37 : vector<16x64xi1>, vector<16x64xf32>
    %c0_18 = arith.constant 0 : index
    %c0_19 = arith.constant 0 : index
    %54 = vector.load %arg4[%c0_18, %c0_19] : memref<272x256xf32, #tpu.memory_space<vmem>>, vector<16x256xf32>
    %55 = vector.extract_strided_slice %54 {offsets = [0, 0], sizes = [16, 128], strides = [1, 1]} : vector<16x256xf32> to vector<16x128xf32>
    %56 = vector.extract_strided_slice %54 {offsets = [0, 128], sizes = [16, 128], strides = [1, 1]} : vector<16x256xf32> to vector<16x128xf32>
    %c64 = arith.constant 64 : index
    %c0_20 = arith.constant 0 : index
    %57 = vector.load %arg5[%c64, %c0_20] : memref<80x128xf32, #tpu.memory_space<vmem>>, vector<16x16xf32>
    %c848 = arith.constant 848 : index
    %c0_21 = arith.constant 0 : index
    %58 = vector.load %arg3[%c848, %c0_21] : memref<1072x64xf32, #tpu.memory_space<vmem>>, vector<1x64xf32>
    %59 = arith.mulf %53, %53 : vector<16x64xf32>
    %cst_22 = arith.constant dense<0.000000e+00> : vector<16xf32>
    %60 = vector.multi_reduction <add>, %59, %cst_22 [1] : vector<16x64xf32> to vector<16xf32>
    %61 = vector.shape_cast %60 : vector<16xf32> to vector<16x1xf32>
    %cst_23 = arith.constant 6.400000e+01 : f32
    %62 = vector.broadcast %cst_23 : f32 to vector<16x1xf32>
    %63 = arith.divf %61, %62 : vector<16x1xf32>
    %cst_24 = arith.constant 9.99999974E-6 : f32
    %64 = vector.broadcast %cst_24 : f32 to vector<16x1xf32>
    %65 = arith.addf %63, %64 : vector<16x1xf32>
    %66 = math.rsqrt %65 : vector<16x1xf32>
    %67 = vector.broadcast %66 : vector<16x1xf32> to vector<16x64xf32>
    %68 = arith.mulf %53, %67 : vector<16x64xf32>
    %69 = vector.broadcast %58 : vector<1x64xf32> to vector<16x64xf32>
    %70 = arith.mulf %68, %69 : vector<16x64xf32>
    %c16 = arith.constant 16 : index
    %c0_25 = arith.constant 0 : index
    %71 = vector.load %arg4[%c16, %c0_25] : memref<272x256xf32, #tpu.memory_space<vmem>>, vector<64x256xf32>
    %cst_26 = arith.constant dense<0.000000e+00> : vector<16x256xf32>
    %72 = tpu.matmul %70, %71, %cst_26 {dimension_numbers = #tpu.dot_dimension_numbers<[1], [0], [0], [1], [0, 0, 1, 1], [], []>} : vector<16x64xf32>, vector<64x256xf32>, vector<16x256xf32> -> vector<16x256xf32>
    %73 = vector.extract_strided_slice %72 {offsets = [0, 0], sizes = [16, 128], strides = [1, 1]} : vector<16x256xf32> to vector<16x128xf32>
    %74 = arith.mulf %73, %55 : vector<16x128xf32>
    %75 = vector.extract_strided_slice %72 {offsets = [0, 128], sizes = [16, 128], strides = [1, 1]} : vector<16x256xf32> to vector<16x128xf32>
    %76 = arith.mulf %75, %56 : vector<16x128xf32>
    %77 = arith.addf %74, %76 : vector<16x128xf32>
    %78 = vector.extract_strided_slice %77 {offsets = [0, 0], sizes = [16, 16], strides = [1, 1]} : vector<16x128xf32> to vector<16x16xf32>
    %79 = vector.extract_strided_slice %77 {offsets = [0, 64], sizes = [16, 16], strides = [1, 1]} : vector<16x128xf32> to vector<16x16xf32>
    %80 = vector.extract_strided_slice %77 {offsets = [0, 96], sizes = [16, 16], strides = [1, 1]} : vector<16x128xf32> to vector<16x16xf32>
    %cst_27 = arith.constant dense<0.000000e+00> : vector<16x16xf32>
    %81 = tpu.matmul %78, %79, %cst_27 {dimension_numbers = #tpu.dot_dimension_numbers<[1], [1], [0], [0], [0, 0, 1, 0], [], []>} : vector<16x16xf32>, vector<16x16xf32>, vector<16x16xf32> -> vector<16x16xf32>
    %cst_28 = arith.constant 2.500000e-01 : f32
    %82 = vector.broadcast %cst_28 : f32 to vector<16x16xf32>
    %83 = arith.mulf %81, %82 : vector<16x16xf32>
    %84 = arith.addf %83, %57 : vector<16x16xf32>
    %cst_29 = arith.constant dense<0xFF800000> : vector<16xf32>
    %85 = vector.multi_reduction <maximumf>, %84, %cst_29 [1] : vector<16x16xf32> to vector<16xf32>
    %86 = vector.shape_cast %85 : vector<16xf32> to vector<16x1xf32>
    %87 = vector.broadcast %86 : vector<16x1xf32> to vector<16x16xf32>
    %88 = arith.subf %84, %87 : vector<16x16xf32>
    %89 = math.exp %88 : vector<16x16xf32>
    %cst_30 = arith.constant dense<0.000000e+00> : vector<16xf32>
    %90 = vector.multi_reduction <add>, %89, %cst_30 [1] : vector<16x16xf32> to vector<16xf32>
    %91 = vector.shape_cast %90 : vector<16xf32> to vector<16x1xf32>
    %92 = tpu.reciprocal %91 {approx = true} : vector<16x1xf32> -> vector<16x1xf32>
    %93 = vector.broadcast %92 : vector<16x1xf32> to vector<16x16xf32>
    %94 = arith.mulf %89, %93 : vector<16x16xf32>
    %cst_31 = arith.constant dense<0.000000e+00> : vector<16x16xf32>
    %95 = tpu.matmul %94, %80, %cst_31 {dimension_numbers = #tpu.dot_dimension_numbers<[1], [0], [0], [1], [0, 0, 1, 1], [], []>} : vector<16x16xf32>, vector<16x16xf32>, vector<16x16xf32> -> vector<16x16xf32>
    %96 = vector.extract_strided_slice %77 {offsets = [0, 16], sizes = [16, 16], strides = [1, 1]} : vector<16x128xf32> to vector<16x16xf32>
    %97 = vector.extract_strided_slice %77 {offsets = [0, 64], sizes = [16, 16], strides = [1, 1]} : vector<16x128xf32> to vector<16x16xf32>
    %98 = vector.extract_strided_slice %77 {offsets = [0, 96], sizes = [16, 16], strides = [1, 1]} : vector<16x128xf32> to vector<16x16xf32>
    %cst_32 = arith.constant dense<0.000000e+00> : vector<16x16xf32>
    %99 = tpu.matmul %96, %97, %cst_32 {dimension_numbers = #tpu.dot_dimension_numbers<[1], [1], [0], [0], [0, 0, 1, 0], [], []>} : vector<16x16xf32>, vector<16x16xf32>, vector<16x16xf32> -> vector<16x16xf32>
    %cst_33 = arith.constant 2.500000e-01 : f32
    %100 = vector.broadcast %cst_33 : f32 to vector<16x16xf32>
    %101 = arith.mulf %99, %100 : vector<16x16xf32>
    %102 = arith.addf %101, %57 : vector<16x16xf32>
    %cst_34 = arith.constant dense<0xFF800000> : vector<16xf32>
    %103 = vector.multi_reduction <maximumf>, %102, %cst_34 [1] : vector<16x16xf32> to vector<16xf32>
    %104 = vector.shape_cast %103 : vector<16xf32> to vector<16x1xf32>
    %105 = vector.broadcast %104 : vector<16x1xf32> to vector<16x16xf32>
    %106 = arith.subf %102, %105 : vector<16x16xf32>
    %107 = math.exp %106 : vector<16x16xf32>
    %cst_35 = arith.constant dense<0.000000e+00> : vector<16xf32>
    %108 = vector.multi_reduction <add>, %107, %cst_35 [1] : vector<16x16xf32> to vector<16xf32>
    %109 = vector.shape_cast %108 : vector<16xf32> to vector<16x1xf32>
    %110 = tpu.reciprocal %109 {approx = true} : vector<16x1xf32> -> vector<16x1xf32>
    %111 = vector.broadcast %110 : vector<16x1xf32> to vector<16x16xf32>
    %112 = arith.mulf %107, %111 : vector<16x16xf32>
    %cst_36 = arith.constant dense<0.000000e+00> : vector<16x16xf32>
    %113 = tpu.matmul %112, %98, %cst_36 {dimension_numbers = #tpu.dot_dimension_numbers<[1], [0], [0], [1], [0, 0, 1, 1], [], []>} : vector<16x16xf32>, vector<16x16xf32>, vector<16x16xf32> -> vector<16x16xf32>
    %114 = vector.extract_strided_slice %77 {offsets = [0, 32], sizes = [16, 16], strides = [1, 1]} : vector<16x128xf32> to vector<16x16xf32>
    %115 = vector.extract_strided_slice %77 {offsets = [0, 80], sizes = [16, 16], strides = [1, 1]} : vector<16x128xf32> to vector<16x16xf32>
    %116 = vector.extract_strided_slice %77 {offsets = [0, 112], sizes = [16, 16], strides = [1, 1]} : vector<16x128xf32> to vector<16x16xf32>
    %cst_37 = arith.constant dense<0.000000e+00> : vector<16x16xf32>
    %117 = tpu.matmul %114, %115, %cst_37 {dimension_numbers = #tpu.dot_dimension_numbers<[1], [1], [0], [0], [0, 0, 1, 0], [], []>} : vector<16x16xf32>, vector<16x16xf32>, vector<16x16xf32> -> vector<16x16xf32>
    %cst_38 = arith.constant 2.500000e-01 : f32
    %118 = vector.broadcast %cst_38 : f32 to vector<16x16xf32>
    %119 = arith.mulf %117, %118 : vector<16x16xf32>
    %120 = arith.addf %119, %57 : vector<16x16xf32>
    %cst_39 = arith.constant dense<0xFF800000> : vector<16xf32>
    %121 = vector.multi_reduction <maximumf>, %120, %cst_39 [1] : vector<16x16xf32> to vector<16xf32>
    %122 = vector.shape_cast %121 : vector<16xf32> to vector<16x1xf32>
    %123 = vector.broadcast %122 : vector<16x1xf32> to vector<16x16xf32>
    %124 = arith.subf %120, %123 : vector<16x16xf32>
    %125 = math.exp %124 : vector<16x16xf32>
    %cst_40 = arith.constant dense<0.000000e+00> : vector<16xf32>
    %126 = vector.multi_reduction <add>, %125, %cst_40 [1] : vector<16x16xf32> to vector<16xf32>
    %127 = vector.shape_cast %126 : vector<16xf32> to vector<16x1xf32>
    %128 = tpu.reciprocal %127 {approx = true} : vector<16x1xf32> -> vector<16x1xf32>
    %129 = vector.broadcast %128 : vector<16x1xf32> to vector<16x16xf32>
    %130 = arith.mulf %125, %129 : vector<16x16xf32>
    %cst_41 = arith.constant dense<0.000000e+00> : vector<16x16xf32>
    %131 = tpu.matmul %130, %116, %cst_41 {dimension_numbers = #tpu.dot_dimension_numbers<[1], [0], [0], [1], [0, 0, 1, 1], [], []>} : vector<16x16xf32>, vector<16x16xf32>, vector<16x16xf32> -> vector<16x16xf32>
    %132 = vector.extract_strided_slice %77 {offsets = [0, 48], sizes = [16, 16], strides = [1, 1]} : vector<16x128xf32> to vector<16x16xf32>
    %133 = vector.extract_strided_slice %77 {offsets = [0, 80], sizes = [16, 16], strides = [1, 1]} : vector<16x128xf32> to vector<16x16xf32>
    %134 = vector.extract_strided_slice %77 {offsets = [0, 112], sizes = [16, 16], strides = [1, 1]} : vector<16x128xf32> to vector<16x16xf32>
    %cst_42 = arith.constant dense<0.000000e+00> : vector<16x16xf32>
    %135 = tpu.matmul %132, %133, %cst_42 {dimension_numbers = #tpu.dot_dimension_numbers<[1], [1], [0], [0], [0, 0, 1, 0], [], []>} : vector<16x16xf32>, vector<16x16xf32>, vector<16x16xf32> -> vector<16x16xf32>
    %cst_43 = arith.constant 2.500000e-01 : f32
    %136 = vector.broadcast %cst_43 : f32 to vector<16x16xf32>
    %137 = arith.mulf %135, %136 : vector<16x16xf32>
    %138 = arith.addf %137, %57 : vector<16x16xf32>
    %cst_44 = arith.constant dense<0xFF800000> : vector<16xf32>
    %139 = vector.multi_reduction <maximumf>, %138, %cst_44 [1] : vector<16x16xf32> to vector<16xf32>
    %140 = vector.shape_cast %139 : vector<16xf32> to vector<16x1xf32>
    %141 = vector.broadcast %140 : vector<16x1xf32> to vector<16x16xf32>
    %142 = arith.subf %138, %141 : vector<16x16xf32>
    %143 = math.exp %142 : vector<16x16xf32>
    %cst_45 = arith.constant dense<0.000000e+00> : vector<16xf32>
    %144 = vector.multi_reduction <add>, %143, %cst_45 [1] : vector<16x16xf32> to vector<16xf32>
    %145 = vector.shape_cast %144 : vector<16xf32> to vector<16x1xf32>
    %146 = tpu.reciprocal %145 {approx = true} : vector<16x1xf32> -> vector<16x1xf32>
    %147 = vector.broadcast %146 : vector<16x1xf32> to vector<16x16xf32>
    %148 = arith.mulf %143, %147 : vector<16x16xf32>
    %cst_46 = arith.constant dense<0.000000e+00> : vector<16x16xf32>
    %149 = tpu.matmul %148, %134, %cst_46 {dimension_numbers = #tpu.dot_dimension_numbers<[1], [0], [0], [1], [0, 0, 1, 1], [], []>} : vector<16x16xf32>, vector<16x16xf32>, vector<16x16xf32> -> vector<16x16xf32>
    %150 = tpu.concatenate %95, %113, %131, %149 in 1 : vector<16x16xf32>, vector<16x16xf32>, vector<16x16xf32>, vector<16x16xf32> -> vector<16x64xf32>
    %c656 = arith.constant 656 : index
    %c0_47 = arith.constant 0 : index
    %151 = vector.load %arg3[%c656, %c0_47] : memref<1072x64xf32, #tpu.memory_space<vmem>>, vector<64x64xf32>
    %cst_48 = arith.constant dense<0.000000e+00> : vector<16x64xf32>
    %152 = tpu.matmul %150, %151, %cst_48 {dimension_numbers = #tpu.dot_dimension_numbers<[1], [0], [0], [1], [0, 0, 1, 1], [], []>} : vector<16x64xf32>, vector<64x64xf32>, vector<16x64xf32> -> vector<16x64xf32>
    %153 = arith.addf %53, %152 : vector<16x64xf32>
    %c856 = arith.constant 856 : index
    %c0_49 = arith.constant 0 : index
    %154 = vector.load %arg3[%c856, %c0_49] : memref<1072x64xf32, #tpu.memory_space<vmem>>, vector<1x64xf32>
    %155 = arith.mulf %153, %153 : vector<16x64xf32>
    %cst_50 = arith.constant dense<0.000000e+00> : vector<16xf32>
    %156 = vector.multi_reduction <add>, %155, %cst_50 [1] : vector<16x64xf32> to vector<16xf32>
    %157 = vector.shape_cast %156 : vector<16xf32> to vector<16x1xf32>
    %cst_51 = arith.constant 6.400000e+01 : f32
    %158 = vector.broadcast %cst_51 : f32 to vector<16x1xf32>
    %159 = arith.divf %157, %158 : vector<16x1xf32>
    %cst_52 = arith.constant 9.99999974E-6 : f32
    %160 = vector.broadcast %cst_52 : f32 to vector<16x1xf32>
    %161 = arith.addf %159, %160 : vector<16x1xf32>
    %162 = math.rsqrt %161 : vector<16x1xf32>
    %163 = vector.broadcast %162 : vector<16x1xf32> to vector<16x64xf32>
    %164 = arith.mulf %153, %163 : vector<16x64xf32>
    %165 = vector.broadcast %154 : vector<1x64xf32> to vector<16x64xf32>
    %166 = arith.mulf %164, %165 : vector<16x64xf32>
    %c80 = arith.constant 80 : index
    %c0_53 = arith.constant 0 : index
    %167 = vector.load %arg4[%c80, %c0_53] : memref<272x256xf32, #tpu.memory_space<vmem>>, vector<64x256xf32>
    %cst_54 = arith.constant dense<0.000000e+00> : vector<16x256xf32>
    %168 = tpu.matmul %166, %167, %cst_54 {dimension_numbers = #tpu.dot_dimension_numbers<[1], [0], [0], [1], [0, 0, 1, 1], [], []>} : vector<16x64xf32>, vector<64x256xf32>, vector<16x256xf32> -> vector<16x256xf32>
    %169 = vector.extract_strided_slice %168 {offsets = [0, 0], sizes = [16, 128], strides = [1, 1]} : vector<16x256xf32> to vector<16x128xf32>
    %170 = vector.extract_strided_slice %168 {offsets = [0, 128], sizes = [16, 128], strides = [1, 1]} : vector<16x256xf32> to vector<16x128xf32>
    %171 = arith.negf %169 : vector<16x128xf32>
    %172 = math.exp %171 : vector<16x128xf32>
    %cst_55 = arith.constant 1.000000e+00 : f32
    %173 = vector.broadcast %cst_55 : f32 to vector<16x128xf32>
    %174 = arith.addf %173, %172 : vector<16x128xf32>
    %175 = arith.divf %173, %174 : vector<16x128xf32>
    %176 = arith.mulf %169, %175 : vector<16x128xf32>
    %177 = arith.mulf %176, %170 : vector<16x128xf32>
    %c720 = arith.constant 720 : index
    %c0_56 = arith.constant 0 : index
    %178 = vector.load %arg3[%c720, %c0_56] : memref<1072x64xf32, #tpu.memory_space<vmem>>, vector<128x64xf32>
    %cst_57 = arith.constant dense<0.000000e+00> : vector<16x64xf32>
    %179 = tpu.matmul %177, %178, %cst_57 {dimension_numbers = #tpu.dot_dimension_numbers<[1], [0], [0], [1], [0, 0, 1, 1], [], []>} : vector<16x128xf32>, vector<128x64xf32>, vector<16x64xf32> -> vector<16x64xf32>
    %180 = arith.addf %153, %179 : vector<16x64xf32>
    %c1056 = arith.constant 1056 : index
    %c0_58 = arith.constant 0 : index
    %181 = vector.load %arg3[%c1056, %c0_58] : memref<1072x64xf32, #tpu.memory_space<vmem>>, vector<1x64xf32>
    %182 = arith.mulf %180, %180 : vector<16x64xf32>
    %cst_59 = arith.constant dense<0.000000e+00> : vector<16xf32>
    %183 = vector.multi_reduction <add>, %182, %cst_59 [1] : vector<16x64xf32> to vector<16xf32>
    %184 = vector.shape_cast %183 : vector<16xf32> to vector<16x1xf32>
    %cst_60 = arith.constant 6.400000e+01 : f32
    %185 = vector.broadcast %cst_60 : f32 to vector<16x1xf32>
    %186 = arith.divf %184, %185 : vector<16x1xf32>
    %cst_61 = arith.constant 9.99999974E-6 : f32
    %187 = vector.broadcast %cst_61 : f32 to vector<16x1xf32>
    %188 = arith.addf %186, %187 : vector<16x1xf32>
    %189 = math.rsqrt %188 : vector<16x1xf32>
    %190 = vector.broadcast %189 : vector<16x1xf32> to vector<16x64xf32>
    %191 = arith.mulf %180, %190 : vector<16x64xf32>
    %192 = vector.broadcast %181 : vector<1x64xf32> to vector<16x64xf32>
    %193 = arith.mulf %191, %192 : vector<16x64xf32>
    %c144 = arith.constant 144 : index
    %c0_62 = arith.constant 0 : index
    %194 = vector.load %arg4[%c144, %c0_62] : memref<272x256xf32, #tpu.memory_space<vmem>>, vector<64x256xf32>
    %cst_63 = arith.constant dense<0.000000e+00> : vector<16x256xf32>
    %195 = tpu.matmul %193, %194, %cst_63 {dimension_numbers = #tpu.dot_dimension_numbers<[1], [0], [0], [1], [0, 0, 1, 1], [], []>} : vector<16x64xf32>, vector<64x256xf32>, vector<16x256xf32> -> vector<16x256xf32>
    %196 = vector.extract_strided_slice %195 {offsets = [0, 0], sizes = [16, 128], strides = [1, 1]} : vector<16x256xf32> to vector<16x128xf32>
    %197 = arith.mulf %196, %55 : vector<16x128xf32>
    %198 = vector.extract_strided_slice %195 {offsets = [0, 128], sizes = [16, 128], strides = [1, 1]} : vector<16x256xf32> to vector<16x128xf32>
    %199 = arith.mulf %198, %56 : vector<16x128xf32>
    %200 = arith.addf %197, %199 : vector<16x128xf32>
    %201 = vector.extract_strided_slice %200 {offsets = [0, 0], sizes = [16, 16], strides = [1, 1]} : vector<16x128xf32> to vector<16x16xf32>
    %202 = vector.extract_strided_slice %200 {offsets = [0, 64], sizes = [16, 16], strides = [1, 1]} : vector<16x128xf32> to vector<16x16xf32>
    %203 = vector.extract_strided_slice %200 {offsets = [0, 96], sizes = [16, 16], strides = [1, 1]} : vector<16x128xf32> to vector<16x16xf32>
    %cst_64 = arith.constant dense<0.000000e+00> : vector<16x16xf32>
    %204 = tpu.matmul %201, %202, %cst_64 {dimension_numbers = #tpu.dot_dimension_numbers<[1], [1], [0], [0], [0, 0, 1, 0], [], []>} : vector<16x16xf32>, vector<16x16xf32>, vector<16x16xf32> -> vector<16x16xf32>
    %cst_65 = arith.constant 2.500000e-01 : f32
    %205 = vector.broadcast %cst_65 : f32 to vector<16x16xf32>
    %206 = arith.mulf %204, %205 : vector<16x16xf32>
    %207 = arith.addf %206, %57 : vector<16x16xf32>
    %cst_66 = arith.constant dense<0xFF800000> : vector<16xf32>
    %208 = vector.multi_reduction <maximumf>, %207, %cst_66 [1] : vector<16x16xf32> to vector<16xf32>
    %209 = vector.shape_cast %208 : vector<16xf32> to vector<16x1xf32>
    %210 = vector.broadcast %209 : vector<16x1xf32> to vector<16x16xf32>
    %211 = arith.subf %207, %210 : vector<16x16xf32>
    %212 = math.exp %211 : vector<16x16xf32>
    %cst_67 = arith.constant dense<0.000000e+00> : vector<16xf32>
    %213 = vector.multi_reduction <add>, %212, %cst_67 [1] : vector<16x16xf32> to vector<16xf32>
    %214 = vector.shape_cast %213 : vector<16xf32> to vector<16x1xf32>
    %215 = tpu.reciprocal %214 {approx = true} : vector<16x1xf32> -> vector<16x1xf32>
    %216 = vector.broadcast %215 : vector<16x1xf32> to vector<16x16xf32>
    %217 = arith.mulf %212, %216 : vector<16x16xf32>
    %cst_68 = arith.constant dense<0.000000e+00> : vector<16x16xf32>
    %218 = tpu.matmul %217, %203, %cst_68 {dimension_numbers = #tpu.dot_dimension_numbers<[1], [0], [0], [1], [0, 0, 1, 1], [], []>} : vector<16x16xf32>, vector<16x16xf32>, vector<16x16xf32> -> vector<16x16xf32>
    %219 = vector.extract_strided_slice %200 {offsets = [0, 16], sizes = [16, 16], strides = [1, 1]} : vector<16x128xf32> to vector<16x16xf32>
    %220 = vector.extract_strided_slice %200 {offsets = [0, 64], sizes = [16, 16], strides = [1, 1]} : vector<16x128xf32> to vector<16x16xf32>
    %221 = vector.extract_strided_slice %200 {offsets = [0, 96], sizes = [16, 16], strides = [1, 1]} : vector<16x128xf32> to vector<16x16xf32>
    %cst_69 = arith.constant dense<0.000000e+00> : vector<16x16xf32>
    %222 = tpu.matmul %219, %220, %cst_69 {dimension_numbers = #tpu.dot_dimension_numbers<[1], [1], [0], [0], [0, 0, 1, 0], [], []>} : vector<16x16xf32>, vector<16x16xf32>, vector<16x16xf32> -> vector<16x16xf32>
    %cst_70 = arith.constant 2.500000e-01 : f32
    %223 = vector.broadcast %cst_70 : f32 to vector<16x16xf32>
    %224 = arith.mulf %222, %223 : vector<16x16xf32>
    %225 = arith.addf %224, %57 : vector<16x16xf32>
    %cst_71 = arith.constant dense<0xFF800000> : vector<16xf32>
    %226 = vector.multi_reduction <maximumf>, %225, %cst_71 [1] : vector<16x16xf32> to vector<16xf32>
    %227 = vector.shape_cast %226 : vector<16xf32> to vector<16x1xf32>
    %228 = vector.broadcast %227 : vector<16x1xf32> to vector<16x16xf32>
    %229 = arith.subf %225, %228 : vector<16x16xf32>
    %230 = math.exp %229 : vector<16x16xf32>
    %cst_72 = arith.constant dense<0.000000e+00> : vector<16xf32>
    %231 = vector.multi_reduction <add>, %230, %cst_72 [1] : vector<16x16xf32> to vector<16xf32>
    %232 = vector.shape_cast %231 : vector<16xf32> to vector<16x1xf32>
    %233 = tpu.reciprocal %232 {approx = true} : vector<16x1xf32> -> vector<16x1xf32>
    %234 = vector.broadcast %233 : vector<16x1xf32> to vector<16x16xf32>
    %235 = arith.mulf %230, %234 : vector<16x16xf32>
    %cst_73 = arith.constant dense<0.000000e+00> : vector<16x16xf32>
    %236 = tpu.matmul %235, %221, %cst_73 {dimension_numbers = #tpu.dot_dimension_numbers<[1], [0], [0], [1], [0, 0, 1, 1], [], []>} : vector<16x16xf32>, vector<16x16xf32>, vector<16x16xf32> -> vector<16x16xf32>
    %237 = vector.extract_strided_slice %200 {offsets = [0, 32], sizes = [16, 16], strides = [1, 1]} : vector<16x128xf32> to vector<16x16xf32>
    %238 = vector.extract_strided_slice %200 {offsets = [0, 80], sizes = [16, 16], strides = [1, 1]} : vector<16x128xf32> to vector<16x16xf32>
    %239 = vector.extract_strided_slice %200 {offsets = [0, 112], sizes = [16, 16], strides = [1, 1]} : vector<16x128xf32> to vector<16x16xf32>
    %cst_74 = arith.constant dense<0.000000e+00> : vector<16x16xf32>
    %240 = tpu.matmul %237, %238, %cst_74 {dimension_numbers = #tpu.dot_dimension_numbers<[1], [1], [0], [0], [0, 0, 1, 0], [], []>} : vector<16x16xf32>, vector<16x16xf32>, vector<16x16xf32> -> vector<16x16xf32>
    %cst_75 = arith.constant 2.500000e-01 : f32
    %241 = vector.broadcast %cst_75 : f32 to vector<16x16xf32>
    %242 = arith.mulf %240, %241 : vector<16x16xf32>
    %243 = arith.addf %242, %57 : vector<16x16xf32>
    %cst_76 = arith.constant dense<0xFF800000> : vector<16xf32>
    %244 = vector.multi_reduction <maximumf>, %243, %cst_76 [1] : vector<16x16xf32> to vector<16xf32>
    %245 = vector.shape_cast %244 : vector<16xf32> to vector<16x1xf32>
    %246 = vector.broadcast %245 : vector<16x1xf32> to vector<16x16xf32>
    %247 = arith.subf %243, %246 : vector<16x16xf32>
    %248 = math.exp %247 : vector<16x16xf32>
    %cst_77 = arith.constant dense<0.000000e+00> : vector<16xf32>
    %249 = vector.multi_reduction <add>, %248, %cst_77 [1] : vector<16x16xf32> to vector<16xf32>
    %250 = vector.shape_cast %249 : vector<16xf32> to vector<16x1xf32>
    %251 = tpu.reciprocal %250 {approx = true} : vector<16x1xf32> -> vector<16x1xf32>
    %252 = vector.broadcast %251 : vector<16x1xf32> to vector<16x16xf32>
    %253 = arith.mulf %248, %252 : vector<16x16xf32>
    %cst_78 = arith.constant dense<0.000000e+00> : vector<16x16xf32>
    %254 = tpu.matmul %253, %239, %cst_78 {dimension_numbers = #tpu.dot_dimension_numbers<[1], [0], [0], [1], [0, 0, 1, 1], [], []>} : vector<16x16xf32>, vector<16x16xf32>, vector<16x16xf32> -> vector<16x16xf32>
    %255 = vector.extract_strided_slice %200 {offsets = [0, 48], sizes = [16, 16], strides = [1, 1]} : vector<16x128xf32> to vector<16x16xf32>
    %256 = vector.extract_strided_slice %200 {offsets = [0, 80], sizes = [16, 16], strides = [1, 1]} : vector<16x128xf32> to vector<16x16xf32>
    %257 = vector.extract_strided_slice %200 {offsets = [0, 112], sizes = [16, 16], strides = [1, 1]} : vector<16x128xf32> to vector<16x16xf32>
    %cst_79 = arith.constant dense<0.000000e+00> : vector<16x16xf32>
    %258 = tpu.matmul %255, %256, %cst_79 {dimension_numbers = #tpu.dot_dimension_numbers<[1], [1], [0], [0], [0, 0, 1, 0], [], []>} : vector<16x16xf32>, vector<16x16xf32>, vector<16x16xf32> -> vector<16x16xf32>
    %cst_80 = arith.constant 2.500000e-01 : f32
    %259 = vector.broadcast %cst_80 : f32 to vector<16x16xf32>
    %260 = arith.mulf %258, %259 : vector<16x16xf32>
    %261 = arith.addf %260, %57 : vector<16x16xf32>
    %cst_81 = arith.constant dense<0xFF800000> : vector<16xf32>
    %262 = vector.multi_reduction <maximumf>, %261, %cst_81 [1] : vector<16x16xf32> to vector<16xf32>
    %263 = vector.shape_cast %262 : vector<16xf32> to vector<16x1xf32>
    %264 = vector.broadcast %263 : vector<16x1xf32> to vector<16x16xf32>
    %265 = arith.subf %261, %264 : vector<16x16xf32>
    %266 = math.exp %265 : vector<16x16xf32>
    %cst_82 = arith.constant dense<0.000000e+00> : vector<16xf32>
    %267 = vector.multi_reduction <add>, %266, %cst_82 [1] : vector<16x16xf32> to vector<16xf32>
    %268 = vector.shape_cast %267 : vector<16xf32> to vector<16x1xf32>
    %269 = tpu.reciprocal %268 {approx = true} : vector<16x1xf32> -> vector<16x1xf32>
    %270 = vector.broadcast %269 : vector<16x1xf32> to vector<16x16xf32>
    %271 = arith.mulf %266, %270 : vector<16x16xf32>
    %cst_83 = arith.constant dense<0.000000e+00> : vector<16x16xf32>
    %272 = tpu.matmul %271, %257, %cst_83 {dimension_numbers = #tpu.dot_dimension_numbers<[1], [0], [0], [1], [0, 0, 1, 1], [], []>} : vector<16x16xf32>, vector<16x16xf32>, vector<16x16xf32> -> vector<16x16xf32>
    %273 = tpu.concatenate %218, %236, %254, %272 in 1 : vector<16x16xf32>, vector<16x16xf32>, vector<16x16xf32>, vector<16x16xf32> -> vector<16x64xf32>
    %c864 = arith.constant 864 : index
    %c0_84 = arith.constant 0 : index
    %274 = vector.load %arg3[%c864, %c0_84] : memref<1072x64xf32, #tpu.memory_space<vmem>>, vector<64x64xf32>
    %cst_85 = arith.constant dense<0.000000e+00> : vector<16x64xf32>
    %275 = tpu.matmul %273, %274, %cst_85 {dimension_numbers = #tpu.dot_dimension_numbers<[1], [0], [0], [1], [0, 0, 1, 1], [], []>} : vector<16x64xf32>, vector<64x64xf32>, vector<16x64xf32> -> vector<16x64xf32>
    %276 = arith.addf %180, %275 : vector<16x64xf32>
    %c1064 = arith.constant 1064 : index
    %c0_86 = arith.constant 0 : index
    %277 = vector.load %arg3[%c1064, %c0_86] : memref<1072x64xf32, #tpu.memory_space<vmem>>, vector<1x64xf32>
    %278 = arith.mulf %276, %276 : vector<16x64xf32>
    %cst_87 = arith.constant dense<0.000000e+00> : vector<16xf32>
    %279 = vector.multi_reduction <add>, %278, %cst_87 [1] : vector<16x64xf32> to vector<16xf32>
    %280 = vector.shape_cast %279 : vector<16xf32> to vector<16x1xf32>
    %cst_88 = arith.constant 6.400000e+01 : f32
    %281 = vector.broadcast %cst_88 : f32 to vector<16x1xf32>
    %282 = arith.divf %280, %281 : vector<16x1xf32>
    %cst_89 = arith.constant 9.99999974E-6 : f32
    %283 = vector.broadcast %cst_89 : f32 to vector<16x1xf32>
    %284 = arith.addf %282, %283 : vector<16x1xf32>
    %285 = math.rsqrt %284 : vector<16x1xf32>
    %286 = vector.broadcast %285 : vector<16x1xf32> to vector<16x64xf32>
    %287 = arith.mulf %276, %286 : vector<16x64xf32>
    %288 = vector.broadcast %277 : vector<1x64xf32> to vector<16x64xf32>
    %289 = arith.mulf %287, %288 : vector<16x64xf32>
    %c208 = arith.constant 208 : index
    %c0_90 = arith.constant 0 : index
    %290 = vector.load %arg4[%c208, %c0_90] : memref<272x256xf32, #tpu.memory_space<vmem>>, vector<64x256xf32>
    %cst_91 = arith.constant dense<0.000000e+00> : vector<16x256xf32>
    %291 = tpu.matmul %289, %290, %cst_91 {dimension_numbers = #tpu.dot_dimension_numbers<[1], [0], [0], [1], [0, 0, 1, 1], [], []>} : vector<16x64xf32>, vector<64x256xf32>, vector<16x256xf32> -> vector<16x256xf32>
    %292 = vector.extract_strided_slice %291 {offsets = [0, 0], sizes = [16, 128], strides = [1, 1]} : vector<16x256xf32> to vector<16x128xf32>
    %293 = vector.extract_strided_slice %291 {offsets = [0, 128], sizes = [16, 128], strides = [1, 1]} : vector<16x256xf32> to vector<16x128xf32>
    %294 = arith.negf %292 : vector<16x128xf32>
    %295 = math.exp %294 : vector<16x128xf32>
    %cst_92 = arith.constant 1.000000e+00 : f32
    %296 = vector.broadcast %cst_92 : f32 to vector<16x128xf32>
    %297 = arith.addf %296, %295 : vector<16x128xf32>
    %298 = arith.divf %296, %297 : vector<16x128xf32>
    %299 = arith.mulf %292, %298 : vector<16x128xf32>
    %300 = arith.mulf %299, %293 : vector<16x128xf32>
    %c928 = arith.constant 928 : index
    %c0_93 = arith.constant 0 : index
    %301 = vector.load %arg3[%c928, %c0_93] : memref<1072x64xf32, #tpu.memory_space<vmem>>, vector<128x64xf32>
    %cst_94 = arith.constant dense<0.000000e+00> : vector<16x64xf32>
    %302 = tpu.matmul %300, %301, %cst_94 {dimension_numbers = #tpu.dot_dimension_numbers<[1], [0], [0], [1], [0, 0, 1, 1], [], []>} : vector<16x128xf32>, vector<128x64xf32>, vector<16x64xf32> -> vector<16x64xf32>
    %303 = arith.addf %276, %302 : vector<16x64xf32>
    %c648 = arith.constant 648 : index
    %c0_95 = arith.constant 0 : index
    %304 = vector.load %arg3[%c648, %c0_95] : memref<1072x64xf32, #tpu.memory_space<vmem>>, vector<1x64xf32>
    %305 = arith.mulf %303, %303 : vector<16x64xf32>
    %cst_96 = arith.constant dense<0.000000e+00> : vector<16xf32>
    %306 = vector.multi_reduction <add>, %305, %cst_96 [1] : vector<16x64xf32> to vector<16xf32>
    %307 = vector.shape_cast %306 : vector<16xf32> to vector<16x1xf32>
    %cst_97 = arith.constant 6.400000e+01 : f32
    %308 = vector.broadcast %cst_97 : f32 to vector<16x1xf32>
    %309 = arith.divf %307, %308 : vector<16x1xf32>
    %cst_98 = arith.constant 9.99999974E-6 : f32
    %310 = vector.broadcast %cst_98 : f32 to vector<16x1xf32>
    %311 = arith.addf %309, %310 : vector<16x1xf32>
    %312 = math.rsqrt %311 : vector<16x1xf32>
    %313 = vector.broadcast %312 : vector<16x1xf32> to vector<16x64xf32>
    %314 = arith.mulf %303, %313 : vector<16x64xf32>
    %315 = vector.broadcast %304 : vector<1x64xf32> to vector<16x64xf32>
    %316 = arith.mulf %314, %315 : vector<16x64xf32>
    %c0_99 = arith.constant 0 : index
    %c0_100 = arith.constant 0 : index
    %317 = vector.load %arg5[%c0_99, %c0_100] : memref<80x128xf32, #tpu.memory_space<vmem>>, vector<64x128xf32>
    %cst_101 = arith.constant dense<0.000000e+00> : vector<16x128xf32>
    %318 = tpu.matmul %316, %317, %cst_101 {dimension_numbers = #tpu.dot_dimension_numbers<[1], [0], [0], [1], [0, 0, 1, 1], [], []>} : vector<16x64xf32>, vector<64x128xf32>, vector<16x128xf32> -> vector<16x128xf32>
    %c0_102 = arith.constant 0 : index
    %c0_103 = arith.constant 0 : index
    %319 = vector.load %arg6[%c0_102, %c0_103] : memref<16x128xf32, #tpu.memory_space<vmem>>, vector<16x128xf32>
    tpu.vector_store %arg6[%c0_102, %c0_103], %318 {strides = array<i32>} : memref<16x128xf32, #tpu.memory_space<vmem>>, vector<16x128xf32>,
    return
  }
}

</mosaic_0001>

<llo_original>
// kernel: multimodal_llama_forward_pallas.1
$region0: #{multimodal_llama_forward_pallas.1}
  #allocation0 [shape = 'u32[]', space=smem, size = 0x4, offset = 0x4, fixed_abs, tag = 'smem constant byte address 0x4 - core index']
  #allocation1 [shape = 'u32[72,128]{1,0:T(1,128)}', space=vmem, size = 0x9000, scoped, tag = 'internal scratch']
  %s0 = inlined_call_operand.vmem [shape: s32[16,4], index: 0, kind: input, shape index: {}]
  %s1 = inlined_call_operand.vmem [shape: f32[8,32], index: 1, kind: input, shape index: {}]
  %s2 = inlined_call_operand.vmem [shape: bf16[576,512], index: 2, kind: input, shape index: {}]
  %s3 = inlined_call_operand.vmem [shape: f32[1072,64], index: 3, kind: input, shape index: {}]
  %s4 = inlined_call_operand.hbm [shape: f32[272,256], index: 4, kind: input, shape index: {}]
  %s5 = inlined_call_operand.vmem [shape: f32[80,128], index: 5, kind: input, shape index: {}]
  %s6 = inlined_call_operand.hbm [shape: f32[16,128], index: 6, kind: output, shape index: {}]
  %s7 = sld [smem:[#allocation0]]
  $region38: #{multimodal_llama_forward_pallas.1} parent=0
    _
  %s9 = ssub.s32 1, %s7
  %s10 = scalar_select 0, %s9, %s7
  $region1: #{multimodal_llama_forward_pallas.1} parent=0
    #allocation2 [shape = 'u8[278528]{0}', space=vmem, size = 0x44000, scoped, tag = 'input window, operand 4, single buffered']
    #allocation3 [shape = 's32[1]{0}', space=sflag, size = 0x4, scoped, tag = 'scoped memory for multimodal_llama_forward_pallas.1']
    #allocation4 [shape = 's32[1]{0}', space=sflag, size = 0x4, scoped, tag = 'scoped memory for multimodal_llama_forward_pallas.1']
    #allocation5 [shape = 'u8[8192]{0}', space=vmem, size = 0x2000, scoped, tag = 'output window, operand 0, single buffered']
    %11 = vsyncpa [#allocation3], 0
    %12 = vsyncpa [#allocation4], 0
    // Predicated region
    $region2: #{multimodal_llama_forward_pallas.1} parent=1 // pred_check
      _
    $region3: #{multimodal_llama_forward_pallas.1} parent=1 // pred_check_branch
      %14 = sbr.rel (0) target = $region5
    $region4: #{multimodal_llama_forward_pallas.1} parent=1 // pred_region
      _
    $region5: #{multimodal_llama_forward_pallas.1} parent=1 // pred_fallthru
      _
    // Predicated region
    $region6: #{multimodal_llama_forward_pallas.1} parent=1 // pred_check
      _
    $region7: #{multimodal_llama_forward_pallas.1} parent=1 // pred_check_branch
      %16 = sbr.rel (0) target = $region9
    $region8: #{multimodal_llama_forward_pallas.1} parent=1 // pred_region
      _
    $region9: #{multimodal_llama_forward_pallas.1} parent=1 // pred_fallthru
      _
    // Predicated region
    $region10: #{multimodal_llama_forward_pallas.1} parent=1 // pred_check
      _
    $region11: #{multimodal_llama_forward_pallas.1} parent=1 // pred_check_branch
      %18 = sbr.rel (0) target = $region13
    $region12: #{multimodal_llama_forward_pallas.1} parent=1 // pred_region
      _
    $region13: #{multimodal_llama_forward_pallas.1} parent=1 // pred_fallthru
      _
    // Predicated region
    $region14: #{multimodal_llama_forward_pallas.1} parent=1 // pred_check
      _
    $region15: #{multimodal_llama_forward_pallas.1} parent=1 // pred_check_branch
      %20 = sbr.rel (0) target = $region17
    $region16: #{multimodal_llama_forward_pallas.1} parent=1 // pred_region
      _
    $region17: #{multimodal_llama_forward_pallas.1} parent=1 // pred_fallthru
      _
    // Predicated region
    $region18: #{multimodal_llama_forward_pallas.1} parent=1 // pred_check
      _
    $region19: #{multimodal_llama_forward_pallas.1} parent=1 // pred_check_branch
      %22 = sbr.rel (0) target = $region21
    $region20: #{multimodal_llama_forward_pallas.1} parent=1 // pred_region
      %24 = vsyncadd [#allocation3], 0
      %s25 = sshll.u32 %s4, 4
      %s26 = int_to_ptr.hbm [resolvable:$true] %s25
      %s27 = sshll.u32 [#allocation2], 4
      %s28 = int_to_ptr.vmem [resolvable:$true] %s27
      %33 = dma.hbm_to_vmem [thread:$0]  %s26, 8704, %s28, [#allocation3], 256, 256, 16
    $region21: #{multimodal_llama_forward_pallas.1} parent=1 // pred_fallthru
      _
    // Predicated region
    $region22: #{multimodal_llama_forward_pallas.1} parent=1 // pred_check
      _
    $region23: #{multimodal_llama_forward_pallas.1} parent=1 // pred_check_branch
      %35 = sbr.rel (0) target = $region25
    $region24: #{multimodal_llama_forward_pallas.1} parent=1 // pred_region
      _
    $region25: #{multimodal_llama_forward_pallas.1} parent=1 // pred_fallthru
      _
    // Predicated region
    $region26: #{multimodal_llama_forward_pallas.1} parent=1 // pred_check
      _
    $region27: #{multimodal_llama_forward_pallas.1} parent=1 // pred_check_branch
      %37 = sbr.rel (0) target = $region29
    $region28: #{multimodal_llama_forward_pallas.1} parent=1 // pred_region
      %39 = dma.done [#allocation3], 8704
    $region29: #{multimodal_llama_forward_pallas.1} parent=1 // pred_fallthru
      _
    %v40 = vld [vmem:[%s0] sm:$0xff]
    %v41 = vld [vmem:[%s0 + $0x8] sm:$0xff]
    %v42 = vld [vmem:[%s2] sm:$0xff]
    %v43 = vld [vmem:[%s2 + $0x8] sm:$0xff]
    %v44 = vld [vmem:[%s2 + $0x10] sm:$0xff]
    %v45 = vld [vmem:[%s2 + $0x18] sm:$0xff]
    %v46 = vld [vmem:[%s2 + $0x20] sm:$0xff]
    %v47 = vld [vmem:[%s2 + $0x28] sm:$0xff]
    %v48 = vld [vmem:[%s2 + $0x30] sm:$0xff]
    %v49 = vld [vmem:[%s2 + $0x38] sm:$0xff]
    %v50 = vunpack.c.l.bf16 %v42
    %v51 = vunpack.c.h.bf16 %v42
    %v52 = vunpack.c.l.bf16 %v43
    %v53 = vunpack.c.h.bf16 %v43
    %v54 = vunpack.c.l.bf16 %v44
    %v55 = vunpack.c.h.bf16 %v44
    %v56 = vunpack.c.l.bf16 %v45
    %v57 = vunpack.c.h.bf16 %v45
    %v58 = vunpack.c.l.bf16 %v46
    %v59 = vunpack.c.h.bf16 %v46
    %v60 = vunpack.c.l.bf16 %v47
    %v61 = vunpack.c.h.bf16 %v47
    %v62 = vunpack.c.l.bf16 %v48
    %v63 = vunpack.c.h.bf16 %v48
    %v64 = vunpack.c.l.bf16 %v49
    %v65 = vunpack.c.h.bf16 %v49
    %v66 = vld [vmem:[%s2 + $0x40] sm:$0xff]
    %v67 = vld [vmem:[%s2 + $0x48] sm:$0xff]
    %v68 = vunpack.c.l.bf16 %v66
    %v69 = vunpack.c.h.bf16 %v66
    %v70 = vunpack.c.l.bf16 %v67
    %v71 = vunpack.c.h.bf16 %v67
    %v72 = vld [vmem:[%s2 + $0x60] sm:$0xff]
    %v73 = vld [vmem:[%s2 + $0x68] sm:$0xff]
    %v74 = vld [vmem:[%s2 + $0x70] sm:$0xff]
    %v75 = vld [vmem:[%s2 + $0x78] sm:$0xff]
    %v76 = vld [vmem:[%s2 + $0x80] sm:$0xff]
    %v77 = vld [vmem:[%s2 + $0x88] sm:$0xff]
    %v78 = vld [vmem:[%s2 + $0x90] sm:$0xff]
    %v79 = vld [vmem:[%s2 + $0x98] sm:$0xff]
    %v80 = vld [vmem:[%s2 + $0xa0] sm:$0xff]
    %v81 = vld [vmem:[%s2 + $0xa8] sm:$0xff]
    %v82 = vld [vmem:[%s2 + $0xb0] sm:$0xff]
    %v83 = vld [vmem:[%s2 + $0xb8] sm:$0xff]
    %v84 = vld [vmem:[%s2 + $0xc0] sm:$0xff]
    %v85 = vld [vmem:[%s2 + $0xc8] sm:$0xff]
    %v86 = vld [vmem:[%s2 + $0xd0] sm:$0xff]
    %v87 = vld [vmem:[%s2 + $0xd8] sm:$0xff]
    %v88 = vld [vmem:[%s2 + $0xe0] sm:$0xff]
    %v89 = vld [vmem:[%s2 + $0xe8] sm:$0xff]
    %v90 = vld [vmem:[%s2 + $0xf0] sm:$0xff]
    %v91 = vld [vmem:[%s2 + $0xf8] sm:$0xff]
    %v92 = vld [vmem:[%s2 + $0x100] sm:$0xff]
    %v93 = vld [vmem:[%s2 + $0x108] sm:$0xff]
    %v94 = vld [vmem:[%s2 + $0x110] sm:$0xff]
    %v95 = vld [vmem:[%s2 + $0x118] sm:$0xff]
    %v96 = vld [vmem:[%s2 + $0x120] sm:$0xff]
    %v97 = vld [vmem:[%s2 + $0x128] sm:$0xff]
    %v98 = vld [vmem:[%s2 + $0x130] sm:$0xff]
    %v99 = vld [vmem:[%s2 + $0x138] sm:$0xff]
    %v100 = vld [vmem:[%s2 + $0x140] sm:$0xff]
    %v101 = vld [vmem:[%s2 + $0x148] sm:$0xff]
    %v102 = vld [vmem:[%s2 + $0x150] sm:$0xff]
    %v103 = vld [vmem:[%s2 + $0x158] sm:$0xff]
    %v104 = vld [vmem:[%s2 + $0x160] sm:$0xff]
    %v105 = vld [vmem:[%s2 + $0x168] sm:$0xff]
    %v106 = vld [vmem:[%s2 + $0x170] sm:$0xff]
    %v107 = vld [vmem:[%s2 + $0x178] sm:$0xff]
    %v108 = vld [vmem:[%s2 + $0x180] sm:$0xff]
    %v109 = vld [vmem:[%s2 + $0x188] sm:$0xff]
    %v110 = vld [vmem:[%s2 + $0x190] sm:$0xff]
    %v111 = vld [vmem:[%s2 + $0x198] sm:$0xff]
    %v112 = vld [vmem:[%s2 + $0x1a0] sm:$0xff]
    %v113 = vld [vmem:[%s2 + $0x1a8] sm:$0xff]
    %v114 = vld [vmem:[%s2 + $0x1b0] sm:$0xff]
    %v115 = vld [vmem:[%s2 + $0x1b8] sm:$0xff]
    %v116 = vld [vmem:[%s2 + $0x1c0] sm:$0xff]
    %v117 = vld [vmem:[%s2 + $0x1c8] sm:$0xff]
    %v118 = vld [vmem:[%s2 + $0x1d0] sm:$0xff]
    %v119 = vld [vmem:[%s2 + $0x1d8] sm:$0xff]
    %v120 = vld [vmem:[%s2 + $0x1e0] sm:$0xff]
    %v121 = vld [vmem:[%s2 + $0x1e8] sm:$0xff]
    %v122 = vld [vmem:[%s2 + $0x1f0] sm:$0xff]
    %v123 = vld [vmem:[%s2 + $0x1f8] sm:$0xff]
    %v124 = vld [vmem:[%s2 + $0x200] sm:$0xff]
    %v125 = vld [vmem:[%s2 + $0x208] sm:$0xff]
    %v126 = vld [vmem:[%s2 + $0x210] sm:$0xff]
    %v127 = vld [vmem:[%s2 + $0x218] sm:$0xff]
    %v128 = vld [vmem:[%s2 + $0x220] sm:$0xff]
    %v129 = vld [vmem:[%s2 + $0x228] sm:$0xff]
    %v130 = vld [vmem:[%s2 + $0x230] sm:$0xff]
    %v131 = vld [vmem:[%s2 + $0x238] sm:$0xff]
    %v132 = vld [vmem:[%s2 + $0x240] sm:$0xff]
    %v133 = vld [vmem:[%s2 + $0x248] sm:$0xff]
    %v134 = vld [vmem:[%s2 + $0x250] sm:$0xff]
    %v135 = vld [vmem:[%s2 + $0x258] sm:$0xff]
    %v136 = vld [vmem:[%s2 + $0x260] sm:$0xff]
    %v137 = vld [vmem:[%s2 + $0x268] sm:$0xff]
    %v138 = vld [vmem:[%s2 + $0x270] sm:$0xff]
    %v139 = vld [vmem:[%s2 + $0x278] sm:$0xff]
    %v140 = vld [vmem:[%s2 + $0x280] sm:$0xff]
    %v141 = vld [vmem:[%s2 + $0x288] sm:$0xff]
    %v142 = vld [vmem:[%s2 + $0x290] sm:$0xff]
    %v143 = vld [vmem:[%s2 + $0x298] sm:$0xff]
    %v144 = vld [vmem:[%s2 + $0x2a0] sm:$0xff]
    %v145 = vld [vmem:[%s2 + $0x2a8] sm:$0xff]
    %v146 = vld [vmem:[%s2 + $0x2b0] sm:$0xff]
    %v147 = vld [vmem:[%s2 + $0x2b8] sm:$0xff]
    %v148 = vld [vmem:[%s2 + $0x2c0] sm:$0xff]
    %v149 = vld [vmem:[%s2 + $0x2c8] sm:$0xff]
    %v150 = vld [vmem:[%s2 + $0x2d0] sm:$0xff]
    %v151 = vld [vmem:[%s2 + $0x2d8] sm:$0xff]
    %v152 = vld [vmem:[%s2 + $0x2e0] sm:$0xff]
    %v153 = vld [vmem:[%s2 + $0x2e8] sm:$0xff]
    %v154 = vld [vmem:[%s2 + $0x2f0] sm:$0xff]
    %v155 = vld [vmem:[%s2 + $0x2f8] sm:$0xff]
    %v156 = vld [vmem:[%s2 + $0x300] sm:$0xff]
    %v157 = vld [vmem:[%s2 + $0x308] sm:$0xff]
    %v158 = vld [vmem:[%s2 + $0x310] sm:$0xff]
    %v159 = vld [vmem:[%s2 + $0x318] sm:$0xff]
    %v160 = vld [vmem:[%s2 + $0x320] sm:$0xff]
    %v161 = vld [vmem:[%s2 + $0x328] sm:$0xff]
    %v162 = vld [vmem:[%s2 + $0x330] sm:$0xff]
    %v163 = vld [vmem:[%s2 + $0x338] sm:$0xff]
    %v164 = vld [vmem:[%s2 + $0x340] sm:$0xff]
    %v165 = vld [vmem:[%s2 + $0x348] sm:$0xff]
    %v166 = vld [vmem:[%s2 + $0x350] sm:$0xff]
    %v167 = vld [vmem:[%s2 + $0x358] sm:$0xff]
    %v168 = vld [vmem:[%s2 + $0x360] sm:$0xff]
    %v169 = vld [vmem:[%s2 + $0x368] sm:$0xff]
    %v170 = vld [vmem:[%s2 + $0x370] sm:$0xff]
    %v171 = vld [vmem:[%s2 + $0x378] sm:$0xff]
    %v172 = vld [vmem:[%s2 + $0x380] sm:$0xff]
    %v173 = vld [vmem:[%s2 + $0x388] sm:$0xff]
    %v174 = vld [vmem:[%s2 + $0x390] sm:$0xff]
    %v175 = vld [vmem:[%s2 + $0x398] sm:$0xff]
    %v176 = vld [vmem:[%s2 + $0x3a0] sm:$0xff]
    %v177 = vld [vmem:[%s2 + $0x3a8] sm:$0xff]
    %v178 = vld [vmem:[%s2 + $0x3b0] sm:$0xff]
    %v179 = vld [vmem:[%s2 + $0x3b8] sm:$0xff]
    %v180 = vld [vmem:[%s2 + $0x3c0] sm:$0xff]
    %v181 = vld [vmem:[%s2 + $0x3c8] sm:$0xff]
    %v182 = vld [vmem:[%s2 + $0x3d0] sm:$0xff]
    %v183 = vld [vmem:[%s2 + $0x3d8] sm:$0xff]
    %v184 = vld [vmem:[%s2 + $0x3e0] sm:$0xff]
    %v185 = vld [vmem:[%s2 + $0x3e8] sm:$0xff]
    %v186 = vld [vmem:[%s2 + $0x3f0] sm:$0xff]
    %v187 = vld [vmem:[%s2 + $0x3f8] sm:$0xff]
    %v188 = vld [vmem:[%s2 + $0x400] sm:$0xff]
    %v189 = vld [vmem:[%s2 + $0x408] sm:$0xff]
    %v190 = vld [vmem:[%s2 + $0x410] sm:$0xff]
    %v191 = vld [vmem:[%s2 + $0x418] sm:$0xff]
    %v192 = vld [vmem:[%s2 + $0x420] sm:$0xff]
    %v193 = vld [vmem:[%s2 + $0x428] sm:$0xff]
    %v194 = vld [vmem:[%s2 + $0x430] sm:$0xff]
    %v195 = vld [vmem:[%s2 + $0x438] sm:$0xff]
    %v196 = vld [vmem:[%s2 + $0x440] sm:$0xff]
    %v197 = vld [vmem:[%s2 + $0x448] sm:$0xff]
    %v198 = vld [vmem:[%s2 + $0x450] sm:$0xff]
    %v199 = vld [vmem:[%s2 + $0x458] sm:$0xff]
    %v200 = vunpack.c.l.bf16 %v72
    %v201 = vunpack.c.h.bf16 %v72
    %v202 = vunpack.c.l.bf16 %v73
    %v203 = vunpack.c.h.bf16 %v73
    %v204 = vunpack.c.l.bf16 %v74
    %v205 = vunpack.c.h.bf16 %v74
    %v206 = vunpack.c.l.bf16 %v75
    %v207 = vunpack.c.h.bf16 %v75
    %v208 = vunpack.c.l.bf16 %v76
    %v209 = vunpack.c.h.bf16 %v76
    %v210 = vunpack.c.l.bf16 %v77
    %v211 = vunpack.c.h.bf16 %v77
    %v212 = vunpack.c.l.bf16 %v78
    %v213 = vunpack.c.h.bf16 %v78
    %v214 = vunpack.c.l.bf16 %v79
    %v215 = vunpack.c.h.bf16 %v79
    %v216 = vunpack.c.l.bf16 %v80
    %v217 = vunpack.c.h.bf16 %v80
    %v218 = vunpack.c.l.bf16 %v81
    %v219 = vunpack.c.h.bf16 %v81
    %v220 = vunpack.c.l.bf16 %v82
    %v221 = vunpack.c.h.bf16 %v82
    %v222 = vunpack.c.l.bf16 %v83
    %v223 = vunpack.c.h.bf16 %v83
    %v224 = vunpack.c.l.bf16 %v84
    %v225 = vunpack.c.h.bf16 %v84
    %v226 = vunpack.c.l.bf16 %v85
    %v227 = vunpack.c.h.bf16 %v85
    %v228 = vunpack.c.l.bf16 %v86
    %v229 = vunpack.c.h.bf16 %v86
    %v230 = vunpack.c.l.bf16 %v87
    %v231 = vunpack.c.h.bf16 %v87
    %v232 = vunpack.c.l.bf16 %v88
    %v233 = vunpack.c.h.bf16 %v88
    %v234 = vunpack.c.l.bf16 %v89
    %v235 = vunpack.c.h.bf16 %v89
    %v236 = vunpack.c.l.bf16 %v90
    %v237 = vunpack.c.h.bf16 %v90
    %v238 = vunpack.c.l.bf16 %v91
    %v239 = vunpack.c.h.bf16 %v91
    %v240 = vunpack.c.l.bf16 %v92
    %v241 = vunpack.c.h.bf16 %v92
    %v242 = vunpack.c.l.bf16 %v93
    %v243 = vunpack.c.h.bf16 %v93
    %v244 = vunpack.c.l.bf16 %v94
    %v245 = vunpack.c.h.bf16 %v94
    %v246 = vunpack.c.l.bf16 %v95
    %v247 = vunpack.c.h.bf16 %v95
    %v248 = vunpack.c.l.bf16 %v96
    %v249 = vunpack.c.h.bf16 %v96
    %v250 = vunpack.c.l.bf16 %v97
    %v251 = vunpack.c.h.bf16 %v97
    %v252 = vunpack.c.l.bf16 %v98
    %v253 = vunpack.c.h.bf16 %v98
    %v254 = vunpack.c.l.bf16 %v99
    %v255 = vunpack.c.h.bf16 %v99
    %v256 = vunpack.c.l.bf16 %v100
    %v257 = vunpack.c.h.bf16 %v100
    %v258 = vunpack.c.l.bf16 %v101
    %v259 = vunpack.c.h.bf16 %v101
    %v260 = vunpack.c.l.bf16 %v102
    %v261 = vunpack.c.h.bf16 %v102
    %v262 = vunpack.c.l.bf16 %v103
    %v263 = vunpack.c.h.bf16 %v103
    %v264 = vunpack.c.l.bf16 %v104
    %v265 = vunpack.c.h.bf16 %v104
    %v266 = vunpack.c.l.bf16 %v105
    %v267 = vunpack.c.h.bf16 %v105
    %v268 = vunpack.c.l.bf16 %v106
    %v269 = vunpack.c.h.bf16 %v106
    %v270 = vunpack.c.l.bf16 %v107
    %v271 = vunpack.c.h.bf16 %v107
    %v272 = vunpack.c.l.bf16 %v108
    %v273 = vunpack.c.h.bf16 %v108
    %v274 = vunpack.c.l.bf16 %v109
    %v275 = vunpack.c.h.bf16 %v109
    %v276 = vunpack.c.l.bf16 %v110
    %v277 = vunpack.c.h.bf16 %v110
    %v278 = vunpack.c.l.bf16 %v111
    %v279 = vunpack.c.h.bf16 %v111
    %v280 = vunpack.c.l.bf16 %v112
    %v281 = vunpack.c.h.bf16 %v112
    %v282 = vunpack.c.l.bf16 %v113
    %v283 = vunpack.c.h.bf16 %v113
    %v284 = vunpack.c.l.bf16 %v114
    %v285 = vunpack.c.h.bf16 %v114
    %v286 = vunpack.c.l.bf16 %v115
    %v287 = vunpack.c.h.bf16 %v115
    %v288 = vunpack.c.l.bf16 %v116
    %v289 = vunpack.c.h.bf16 %v116
    %v290 = vunpack.c.l.bf16 %v117
    %v291 = vunpack.c.h.bf16 %v117
    %v292 = vunpack.c.l.bf16 %v118
    %v293 = vunpack.c.h.bf16 %v118
    %v294 = vunpack.c.l.bf16 %v119
    %v295 = vunpack.c.h.bf16 %v119
    %v296 = vunpack.c.l.bf16 %v120
    %v297 = vunpack.c.h.bf16 %v120
    %v298 = vunpack.c.l.bf16 %v121
    %v299 = vunpack.c.h.bf16 %v121
    %v300 = vunpack.c.l.bf16 %v122
    %v301 = vunpack.c.h.bf16 %v122
    %v302 = vunpack.c.l.bf16 %v123
    %v303 = vunpack.c.h.bf16 %v123
    %v304 = vunpack.c.l.bf16 %v124
    %v305 = vunpack.c.h.bf16 %v124
    %v306 = vunpack.c.l.bf16 %v125
    %v307 = vunpack.c.h.bf16 %v125
    %v308 = vunpack.c.l.bf16 %v126
    %v309 = vunpack.c.h.bf16 %v126
    %v310 = vunpack.c.l.bf16 %v127
    %v311 = vunpack.c.h.bf16 %v127
    %v312 = vunpack.c.l.bf16 %v128
    %v313 = vunpack.c.h.bf16 %v128
    %v314 = vunpack.c.l.bf16 %v129
    %v315 = vunpack.c.h.bf16 %v129
    %v316 = vunpack.c.l.bf16 %v130
    %v317 = vunpack.c.h.bf16 %v130
    %v318 = vunpack.c.l.bf16 %v131
    %v319 = vunpack.c.h.bf16 %v131
    %v320 = vunpack.c.l.bf16 %v132
    %v321 = vunpack.c.h.bf16 %v132
    %v322 = vunpack.c.l.bf16 %v133
    %v323 = vunpack.c.h.bf16 %v133
    %v324 = vunpack.c.l.bf16 %v134
    %v325 = vunpack.c.h.bf16 %v134
    %v326 = vunpack.c.l.bf16 %v135
    %v327 = vunpack.c.h.bf16 %v135
    %v328 = vunpack.c.l.bf16 %v136
    %v329 = vunpack.c.h.bf16 %v136
    %v330 = vunpack.c.l.bf16 %v137
    %v331 = vunpack.c.h.bf16 %v137
    %v332 = vunpack.c.l.bf16 %v138
    %v333 = vunpack.c.h.bf16 %v138
    %v334 = vunpack.c.l.bf16 %v139
    %v335 = vunpack.c.h.bf16 %v139
    %v336 = vunpack.c.l.bf16 %v140
    %v337 = vunpack.c.h.bf16 %v140
    %v338 = vunpack.c.l.bf16 %v141
    %v339 = vunpack.c.h.bf16 %v141
    %v340 = vunpack.c.l.bf16 %v142
    %v341 = vunpack.c.h.bf16 %v142
    %v342 = vunpack.c.l.bf16 %v143
    %v343 = vunpack.c.h.bf16 %v143
    %v344 = vunpack.c.l.bf16 %v144
    %v345 = vunpack.c.h.bf16 %v144
    %v346 = vunpack.c.l.bf16 %v145
    %v347 = vunpack.c.h.bf16 %v145
    %v348 = vunpack.c.l.bf16 %v146
    %v349 = vunpack.c.h.bf16 %v146
    %v350 = vunpack.c.l.bf16 %v147
    %v351 = vunpack.c.h.bf16 %v147
    %v352 = vunpack.c.l.bf16 %v148
    %v353 = vunpack.c.h.bf16 %v148
    %v354 = vunpack.c.l.bf16 %v149
    %v355 = vunpack.c.h.bf16 %v149
    %v356 = vunpack.c.l.bf16 %v150
    %v357 = vunpack.c.h.bf16 %v150
    %v358 = vunpack.c.l.bf16 %v151
    %v359 = vunpack.c.h.bf16 %v151
    %v360 = vunpack.c.l.bf16 %v152
    %v361 = vunpack.c.h.bf16 %v152
    %v362 = vunpack.c.l.bf16 %v153
    %v363 = vunpack.c.h.bf16 %v153
    %v364 = vunpack.c.l.bf16 %v154
    %v365 = vunpack.c.h.bf16 %v154
    %v366 = vunpack.c.l.bf16 %v155
    %v367 = vunpack.c.h.bf16 %v155
    %v368 = vunpack.c.l.bf16 %v156
    %v369 = vunpack.c.h.bf16 %v156
    %v370 = vunpack.c.l.bf16 %v157
    %v371 = vunpack.c.h.bf16 %v157
    %v372 = vunpack.c.l.bf16 %v158
    %v373 = vunpack.c.h.bf16 %v158
    %v374 = vunpack.c.l.bf16 %v159
    %v375 = vunpack.c.h.bf16 %v159
    %v376 = vunpack.c.l.bf16 %v160
    %v377 = vunpack.c.h.bf16 %v160
    %v378 = vunpack.c.l.bf16 %v161
    %v379 = vunpack.c.h.bf16 %v161
    %v380 = vunpack.c.l.bf16 %v162
    %v381 = vunpack.c.h.bf16 %v162
    %v382 = vunpack.c.l.bf16 %v163
    %v383 = vunpack.c.h.bf16 %v163
    %v384 = vunpack.c.l.bf16 %v164
    %v385 = vunpack.c.h.bf16 %v164
    %v386 = vunpack.c.l.bf16 %v165
    %v387 = vunpack.c.h.bf16 %v165
    %v388 = vunpack.c.l.bf16 %v166
    %v389 = vunpack.c.h.bf16 %v166
    %v390 = vunpack.c.l.bf16 %v167
    %v391 = vunpack.c.h.bf16 %v167
    %v392 = vunpack.c.l.bf16 %v168
    %v393 = vunpack.c.h.bf16 %v168
    %v394 = vunpack.c.l.bf16 %v169
    %v395 = vunpack.c.h.bf16 %v169
    %v396 = vunpack.c.l.bf16 %v170
    %v397 = vunpack.c.h.bf16 %v170
    %v398 = vunpack.c.l.bf16 %v171
    %v399 = vunpack.c.h.bf16 %v171
    %v400 = vunpack.c.l.bf16 %v172
    %v401 = vunpack.c.h.bf16 %v172
    %v402 = vunpack.c.l.bf16 %v173
    %v403 = vunpack.c.h.bf16 %v173
    %v404 = vunpack.c.l.bf16 %v174
    %v405 = vunpack.c.h.bf16 %v174
    %v406 = vunpack.c.l.bf16 %v175
    %v407 = vunpack.c.h.bf16 %v175
    %v408 = vunpack.c.l.bf16 %v176
    %v409 = vunpack.c.h.bf16 %v176
    %v410 = vunpack.c.l.bf16 %v177
    %v411 = vunpack.c.h.bf16 %v177
    %v412 = vunpack.c.l.bf16 %v178
    %v413 = vunpack.c.h.bf16 %v178
    %v414 = vunpack.c.l.bf16 %v179
    %v415 = vunpack.c.h.bf16 %v179
    %v416 = vunpack.c.l.bf16 %v180
    %v417 = vunpack.c.h.bf16 %v180
    %v418 = vunpack.c.l.bf16 %v181
    %v419 = vunpack.c.h.bf16 %v181
    %v420 = vunpack.c.l.bf16 %v182
    %v421 = vunpack.c.h.bf16 %v182
    %v422 = vunpack.c.l.bf16 %v183
    %v423 = vunpack.c.h.bf16 %v183
    %v424 = vunpack.c.l.bf16 %v184
    %v425 = vunpack.c.h.bf16 %v184
    %v426 = vunpack.c.l.bf16 %v185
    %v427 = vunpack.c.h.bf16 %v185
    %v428 = vunpack.c.l.bf16 %v186
    %v429 = vunpack.c.h.bf16 %v186
    %v430 = vunpack.c.l.bf16 %v187
    %v431 = vunpack.c.h.bf16 %v187
    %v432 = vunpack.c.l.bf16 %v188
    %v433 = vunpack.c.h.bf16 %v188
    %v434 = vunpack.c.l.bf16 %v189
    %v435 = vunpack.c.h.bf16 %v189
    %v436 = vunpack.c.l.bf16 %v190
    %v437 = vunpack.c.h.bf16 %v190
    %v438 = vunpack.c.l.bf16 %v191
    %v439 = vunpack.c.h.bf16 %v191
    %v440 = vunpack.c.l.bf16 %v192
    %v441 = vunpack.c.h.bf16 %v192
    %v442 = vunpack.c.l.bf16 %v193
    %v443 = vunpack.c.h.bf16 %v193
    %v444 = vunpack.c.l.bf16 %v194
    %v445 = vunpack.c.h.bf16 %v194
    %v446 = vunpack.c.l.bf16 %v195
    %v447 = vunpack.c.h.bf16 %v195
    %v448 = vunpack.c.l.bf16 %v196
    %v449 = vunpack.c.h.bf16 %v196
    %v450 = vunpack.c.l.bf16 %v197
    %v451 = vunpack.c.h.bf16 %v197
    %v452 = vunpack.c.l.bf16 %v198
    %v453 = vunpack.c.h.bf16 %v198
    %v454 = vunpack.c.l.bf16 %v199
    %v455 = vunpack.c.h.bf16 %v199
    %v456 = vld [vmem:[%s2 + $0x460] sm:$0xff]
    %v457 = vld [vmem:[%s2 + $0x468] sm:$0xff]
    %v458 = vunpack.c.l.bf16 %v456
    %v459 = vunpack.c.h.bf16 %v456
    %v460 = vunpack.c.l.bf16 %v457
    %v461 = vunpack.c.h.bf16 %v457
    %v462 = vld [vmem:[%s1] sm:$0xff]
    %v463 = vperm.slane %v68, 0
    %v464 = vperm.slane %v69, 0
    %v465 = vperm.slane %v70, 0
    %v466 = vperm.slane %v71, 0
    %vm467 = vcmask 261120
    %v469 = vsel %vm467, %v462, 0
    %471 = vmatpush.msra.mxu0 0.0
    %472 = vmatpush.msra.mxu0 0.0
    %473 = vmatpush.msra.mxu0 0.0
    %474 = vmatpush.msra.mxu0 0.0
    %475 = vmatpush.msra.mxu0 0.0
    %476 = vmatpush.msra.mxu0 0.0
    %477 = vmatpush.msra.mxu0 0.0
    %478 = vmatpush.msra.mxu0 0.0
    %479 = vmatpush.msra.mxu0 0.0
    %480 = vmatpush.msra.mxu0 0.0
    %481 = vmatpush.msra.mxu0 0.0
    %482 = vmatpush.msra.mxu0 0.0
    %483 = vmatpush.msra.mxu0 %v62
    %484 = vmatpush.msra.mxu0 %v58
    %485 = vmatpush.msra.mxu0 %v54
    %486 = vmatpush.msra.mxu0 %v50
    %487 = vmatmul.f32.gmra.mxu0 %v469
    %v488 = vpop.f32.mrf.mxu0
    %v489 = vadd.f32 %v463, %v488
    %490 = vdwg.mxu0
    %491 = vmatpush.msra.mxu0 0.0
    %492 = vmatpush.msra.mxu0 0.0
    %493 = vmatpush.msra.mxu0 0.0
    %494 = vmatpush.msra.mxu0 0.0
    %495 = vmatpush.msra.mxu0 0.0
    %496 = vmatpush.msra.mxu0 0.0
    %497 = vmatpush.msra.mxu0 0.0
    %498 = vmatpush.msra.mxu0 0.0
    %499 = vmatpush.msra.mxu0 0.0
    %500 = vmatpush.msra.mxu0 0.0
    %501 = vmatpush.msra.mxu0 0.0
    %502 = vmatpush.msra.mxu0 0.0
    %503 = vmatpush.msra.mxu0 %v63
    %504 = vmatpush.msra.mxu0 %v59
    %505 = vmatpush.msra.mxu0 %v55
    %506 = vmatpush.msra.mxu0 %v51
    %507 = vmatmul.f32.gmra.mxu0 %v469
    %v508 = vpop.f32.mrf.mxu0
    %v509 = vadd.f32 %v464, %v508
    %510 = vdwg.mxu0
    %511 = vmatpush.msra.mxu0 0.0
    %512 = vmatpush.msra.mxu0 0.0
    %513 = vmatpush.msra.mxu0 0.0
    %514 = vmatpush.msra.mxu0 0.0
    %515 = vmatpush.msra.mxu0 0.0
    %516 = vmatpush.msra.mxu0 0.0
    %517 = vmatpush.msra.mxu0 0.0
    %518 = vmatpush.msra.mxu0 0.0
    %519 = vmatpush.msra.mxu0 0.0
    %520 = vmatpush.msra.mxu0 0.0
    %521 = vmatpush.msra.mxu0 0.0
    %522 = vmatpush.msra.mxu0 0.0
    %523 = vmatpush.msra.mxu0 %v64
    %524 = vmatpush.msra.mxu0 %v60
    %525 = vmatpush.msra.mxu0 %v56
    %526 = vmatpush.msra.mxu0 %v52
    %527 = vmatmul.f32.gmra.mxu0 %v469
    %v528 = vpop.f32.mrf.mxu0
    %v529 = vadd.f32 %v465, %v528
    %530 = vdwg.mxu0
    %531 = vmatpush.msra.mxu0 0.0
    %532 = vmatpush.msra.mxu0 0.0
    %533 = vmatpush.msra.mxu0 0.0
    %534 = vmatpush.msra.mxu0 0.0
    %535 = vmatpush.msra.mxu0 0.0
    %536 = vmatpush.msra.mxu0 0.0
    %537 = vmatpush.msra.mxu0 0.0
    %538 = vmatpush.msra.mxu0 0.0
    %539 = vmatpush.msra.mxu0 0.0
    %540 = vmatpush.msra.mxu0 0.0
    %541 = vmatpush.msra.mxu0 0.0
    %542 = vmatpush.msra.mxu0 0.0
    %543 = vmatpush.msra.mxu0 %v65
    %544 = vmatpush.msra.mxu0 %v61
    %545 = vmatpush.msra.mxu0 %v57
    %546 = vmatpush.msra.mxu0 %v53
    %547 = vmatmul.f32.gmra.mxu0 %v469
    %v548 = vpop.f32.mrf.mxu0
    %v549 = vadd.f32 %v466, %v548
    %550 = vdwg.mxu0
    %v551 = vmax.f32 %v489, 0.0
    %v552 = vmax.f32 %v509, 0.0
    %v553 = vmax.f32 %v529, 0.0
    %v554 = vmax.f32 %v549, 0.0
    %v555 = vperm.slane %v458, 0
    %v556 = vperm.slane %v459, 0
    %v557 = vperm.slane %v460, 0
    %v558 = vperm.slane %v461, 0
    %559 = vmatpush.msra.mxu0 %v260
    %560 = vmatpush.msra.mxu0 %v256
    %561 = vmatpush.msra.mxu0 %v252
    %562 = vmatpush.msra.mxu0 %v248
    %563 = vmatpush.msra.mxu0 %v244
    %564 = vmatpush.msra.mxu0 %v240
    %565 = vmatpush.msra.mxu0 %v236
    %566 = vmatpush.msra.mxu0 %v232
    %567 = vmatpush.msra.mxu0 %v228
    %568 = vmatpush.msra.mxu0 %v224
    %569 = vmatpush.msra.mxu0 %v220
    %570 = vmatpush.msra.mxu0 %v216
    %571 = vmatpush.msra.mxu0 %v212
    %572 = vmatpush.msra.mxu0 %v208
    %573 = vmatpush.msra.mxu0 %v204
    %574 = vmatpush.msra.mxu0 %v200
    %575 = vmatmul.f32.gmra.mxu0 %v551
    %v576 = vpop.f32.mrf.mxu0
    %v577 = vadd.f32 %v555, %v576
    %578 = vdwg.mxu0
    %579 = vmatpush.msra.mxu0 %v324
    %580 = vmatpush.msra.mxu0 %v320
    %581 = vmatpush.msra.mxu0 %v316
    %582 = vmatpush.msra.mxu0 %v312
    %583 = vmatpush.msra.mxu0 %v308
    %584 = vmatpush.msra.mxu0 %v304
    %585 = vmatpush.msra.mxu0 %v300
    %586 = vmatpush.msra.mxu0 %v296
    %587 = vmatpush.msra.mxu0 %v292
    %588 = vmatpush.msra.mxu0 %v288
    %589 = vmatpush.msra.mxu0 %v284
    %590 = vmatpush.msra.mxu0 %v280
    %591 = vmatpush.msra.mxu0 %v276
    %592 = vmatpush.msra.mxu0 %v272
    %593 = vmatpush.msra.mxu0 %v268
    %594 = vmatpush.msra.mxu0 %v264
    %595 = vmatmul.f32.gmra.mxu0 %v552
    %v596 = vpop.f32.mrf.mxu0
    %v597 = vadd.f32 %v577, %v596
    %598 = vdwg.mxu0
    %599 = vmatpush.msra.mxu0 %v388
    %600 = vmatpush.msra.mxu0 %v384
    %601 = vmatpush.msra.mxu0 %v380
    %602 = vmatpush.msra.mxu0 %v376
    %603 = vmatpush.msra.mxu0 %v372
    %604 = vmatpush.msra.mxu0 %v368
    %605 = vmatpush.msra.mxu0 %v364
    %606 = vmatpush.msra.mxu0 %v360
    %607 = vmatpush.msra.mxu0 %v356
    %608 = vmatpush.msra.mxu0 %v352
    %609 = vmatpush.msra.mxu0 %v348
    %610 = vmatpush.msra.mxu0 %v344
    %611 = vmatpush.msra.mxu0 %v340
    %612 = vmatpush.msra.mxu0 %v336
    %613 = vmatpush.msra.mxu0 %v332
    %614 = vmatpush.msra.mxu0 %v328
    %615 = vmatmul.f32.gmra.mxu0 %v553
    %v616 = vpop.f32.mrf.mxu0
    %v617 = vadd.f32 %v597, %v616
    %618 = vdwg.mxu0
    %619 = vmatpush.msra.mxu0 %v452
    %620 = vmatpush.msra.mxu0 %v448
    %621 = vmatpush.msra.mxu0 %v444
    %622 = vmatpush.msra.mxu0 %v440
    %623 = vmatpush.msra.mxu0 %v436
    %624 = vmatpush.msra.mxu0 %v432
    %625 = vmatpush.msra.mxu0 %v428
    %626 = vmatpush.msra.mxu0 %v424
    %627 = vmatpush.msra.mxu0 %v420
    %628 = vmatpush.msra.mxu0 %v416
    %629 = vmatpush.msra.mxu0 %v412
    %630 = vmatpush.msra.mxu0 %v408
    %631 = vmatpush.msra.mxu0 %v404
    %632 = vmatpush.msra.mxu0 %v400
    %633 = vmatpush.msra.mxu0 %v396
    %634 = vmatpush.msra.mxu0 %v392
    %635 = vmatmul.f32.gmra.mxu0 %v554
    %v636 = vpop.f32.mrf.mxu0
    %v637 = vadd.f32 %v617, %v636
    %638 = vdwg.mxu0
    %639 = vmatpush.msra.mxu0 %v261
    %640 = vmatpush.msra.mxu0 %v257
    %641 = vmatpush.msra.mxu0 %v253
    %642 = vmatpush.msra.mxu0 %v249
    %643 = vmatpush.msra.mxu0 %v245
    %644 = vmatpush.msra.mxu0 %v241
    %645 = vmatpush.msra.mxu0 %v237
    %646 = vmatpush.msra.mxu0 %v233
    %647 = vmatpush.msra.mxu0 %v229
    %648 = vmatpush.msra.mxu0 %v225
    %649 = vmatpush.msra.mxu0 %v221
    %650 = vmatpush.msra.mxu0 %v217
    %651 = vmatpush.msra.mxu0 %v213
    %652 = vmatpush.msra.mxu0 %v209
    %653 = vmatpush.msra.mxu0 %v205
    %654 = vmatpush.msra.mxu0 %v201
    %655 = vmatmul.f32.gmra.mxu0 %v551
    %v656 = vpop.f32.mrf.mxu0
    %v657 = vadd.f32 %v556, %v656
    %658 = vdwg.mxu0
    %659 = vmatpush.msra.mxu0 %v325
    %660 = vmatpush.msra.mxu0 %v321
    %661 = vmatpush.msra.mxu0 %v317
    %662 = vmatpush.msra.mxu0 %v313
    %663 = vmatpush.msra.mxu0 %v309
    %664 = vmatpush.msra.mxu0 %v305
    %665 = vmatpush.msra.mxu0 %v301
    %666 = vmatpush.msra.mxu0 %v297
    %667 = vmatpush.msra.mxu0 %v293
    %668 = vmatpush.msra.mxu0 %v289
    %669 = vmatpush.msra.mxu0 %v285
    %670 = vmatpush.msra.mxu0 %v281
    %671 = vmatpush.msra.mxu0 %v277
    %672 = vmatpush.msra.mxu0 %v273
    %673 = vmatpush.msra.mxu0 %v269
    %674 = vmatpush.msra.mxu0 %v265
    %675 = vmatmul.f32.gmra.mxu0 %v552
    %v676 = vpop.f32.mrf.mxu0
    %v677 = vadd.f32 %v657, %v676
    %678 = vdwg.mxu0
    %679 = vmatpush.msra.mxu0 %v389
    %680 = vmatpush.msra.mxu0 %v385
    %681 = vmatpush.msra.mxu0 %v381
    %682 = vmatpush.msra.mxu0 %v377
    %683 = vmatpush.msra.mxu0 %v373
    %684 = vmatpush.msra.mxu0 %v369
    %685 = vmatpush.msra.mxu0 %v365
    %686 = vmatpush.msra.mxu0 %v361
    %687 = vmatpush.msra.mxu0 %v357
    %688 = vmatpush.msra.mxu0 %v353
    %689 = vmatpush.msra.mxu0 %v349
    %690 = vmatpush.msra.mxu0 %v345
    %691 = vmatpush.msra.mxu0 %v341
    %692 = vmatpush.msra.mxu0 %v337
    %693 = vmatpush.msra.mxu0 %v333
    %694 = vmatpush.msra.mxu0 %v329
    %695 = vmatmul.f32.gmra.mxu0 %v553
    %v696 = vpop.f32.mrf.mxu0
    %v697 = vadd.f32 %v677, %v696
    %698 = vdwg.mxu0
    %699 = vmatpush.msra.mxu0 %v453
    %700 = vmatpush.msra.mxu0 %v449
    %701 = vmatpush.msra.mxu0 %v445
    %702 = vmatpush.msra.mxu0 %v441
    %703 = vmatpush.msra.mxu0 %v437
    %704 = vmatpush.msra.mxu0 %v433
    %705 = vmatpush.msra.mxu0 %v429
    %706 = vmatpush.msra.mxu0 %v425
    %707 = vmatpush.msra.mxu0 %v421
    %708 = vmatpush.msra.mxu0 %v417
    %709 = vmatpush.msra.mxu0 %v413
    %710 = vmatpush.msra.mxu0 %v409
    %711 = vmatpush.msra.mxu0 %v405
    %712 = vmatpush.msra.mxu0 %v401
    %713 = vmatpush.msra.mxu0 %v397
    %714 = vmatpush.msra.mxu0 %v393
    %715 = vmatmul.f32.gmra.mxu0 %v554
    %v716 = vpop.f32.mrf.mxu0
    %v717 = vadd.f32 %v697, %v716
    %718 = vdwg.mxu0
    %719 = vmatpush.msra.mxu0 %v262
    %720 = vmatpush.msra.mxu0 %v258
    %721 = vmatpush.msra.mxu0 %v254
    %722 = vmatpush.msra.mxu0 %v250
    %723 = vmatpush.msra.mxu0 %v246
    %724 = vmatpush.msra.mxu0 %v242
    %725 = vmatpush.msra.mxu0 %v238
    %726 = vmatpush.msra.mxu0 %v234
    %727 = vmatpush.msra.mxu0 %v230
    %728 = vmatpush.msra.mxu0 %v226
    %729 = vmatpush.msra.mxu0 %v222
    %730 = vmatpush.msra.mxu0 %v218
    %731 = vmatpush.msra.mxu0 %v214
    %732 = vmatpush.msra.mxu0 %v210
    %733 = vmatpush.msra.mxu0 %v206
    %734 = vmatpush.msra.mxu0 %v202
    %735 = vmatmul.f32.gmra.mxu0 %v551
    %v736 = vpop.f32.mrf.mxu0
    %v737 = vadd.f32 %v557, %v736
    %738 = vdwg.mxu0
    %739 = vmatpush.msra.mxu0 %v326
    %740 = vmatpush.msra.mxu0 %v322
    %741 = vmatpush.msra.mxu0 %v318
    %742 = vmatpush.msra.mxu0 %v314
    %743 = vmatpush.msra.mxu0 %v310
    %744 = vmatpush.msra.mxu0 %v306
    %745 = vmatpush.msra.mxu0 %v302
    %746 = vmatpush.msra.mxu0 %v298
    %747 = vmatpush.msra.mxu0 %v294
    %748 = vmatpush.msra.mxu0 %v290
    %749 = vmatpush.msra.mxu0 %v286
    %750 = vmatpush.msra.mxu0 %v282
    %751 = vmatpush.msra.mxu0 %v278
    %752 = vmatpush.msra.mxu0 %v274
    %753 = vmatpush.msra.mxu0 %v270
    %754 = vmatpush.msra.mxu0 %v266
    %755 = vmatmul.f32.gmra.mxu0 %v552
    %v756 = vpop.f32.mrf.mxu0
    %v757 = vadd.f32 %v737, %v756
    %758 = vdwg.mxu0
    %759 = vmatpush.msra.mxu0 %v390
    %760 = vmatpush.msra.mxu0 %v386
    %761 = vmatpush.msra.mxu0 %v382
    %762 = vmatpush.msra.mxu0 %v378
    %763 = vmatpush.msra.mxu0 %v374
    %764 = vmatpush.msra.mxu0 %v370
    %765 = vmatpush.msra.mxu0 %v366
    %766 = vmatpush.msra.mxu0 %v362
    %767 = vmatpush.msra.mxu0 %v358
    %768 = vmatpush.msra.mxu0 %v354
    %769 = vmatpush.msra.mxu0 %v350
    %770 = vmatpush.msra.mxu0 %v346
    %771 = vmatpush.msra.mxu0 %v342
    %772 = vmatpush.msra.mxu0 %v338
    %773 = vmatpush.msra.mxu0 %v334
    %774 = vmatpush.msra.mxu0 %v330
    %775 = vmatmul.f32.gmra.mxu0 %v553
    %v776 = vpop.f32.mrf.mxu0
    %v777 = vadd.f32 %v757, %v776
    %778 = vdwg.mxu0
    %779 = vmatpush.msra.mxu0 %v454
    %780 = vmatpush.msra.mxu0 %v450
    %781 = vmatpush.msra.mxu0 %v446
    %782 = vmatpush.msra.mxu0 %v442
    %783 = vmatpush.msra.mxu0 %v438
    %784 = vmatpush.msra.mxu0 %v434
    %785 = vmatpush.msra.mxu0 %v430
    %786 = vmatpush.msra.mxu0 %v426
    %787 = vmatpush.msra.mxu0 %v422
    %788 = vmatpush.msra.mxu0 %v418
    %789 = vmatpush.msra.mxu0 %v414
    %790 = vmatpush.msra.mxu0 %v410
    %791 = vmatpush.msra.mxu0 %v406
    %792 = vmatpush.msra.mxu0 %v402
    %793 = vmatpush.msra.mxu0 %v398
    %794 = vmatpush.msra.mxu0 %v394
    %795 = vmatmul.f32.gmra.mxu0 %v554
    %v796 = vpop.f32.mrf.mxu0
    %v797 = vadd.f32 %v777, %v796
    %798 = vdwg.mxu0
    %799 = vmatpush.msra.mxu0 %v263
    %800 = vmatpush.msra.mxu0 %v259
    %801 = vmatpush.msra.mxu0 %v255
    %802 = vmatpush.msra.mxu0 %v251
    %803 = vmatpush.msra.mxu0 %v247
    %804 = vmatpush.msra.mxu0 %v243
    %805 = vmatpush.msra.mxu0 %v239
    %806 = vmatpush.msra.mxu0 %v235
    %807 = vmatpush.msra.mxu0 %v231
    %808 = vmatpush.msra.mxu0 %v227
    %809 = vmatpush.msra.mxu0 %v223
    %810 = vmatpush.msra.mxu0 %v219
    %811 = vmatpush.msra.mxu0 %v215
    %812 = vmatpush.msra.mxu0 %v211
    %813 = vmatpush.msra.mxu0 %v207
    %814 = vmatpush.msra.mxu0 %v203
    %815 = vmatmul.f32.gmra.mxu0 %v551
    %v816 = vpop.f32.mrf.mxu0
    %v817 = vadd.f32 %v558, %v816
    %818 = vdwg.mxu0
    %819 = vmatpush.msra.mxu0 %v327
    %820 = vmatpush.msra.mxu0 %v323
    %821 = vmatpush.msra.mxu0 %v319
    %822 = vmatpush.msra.mxu0 %v315
    %823 = vmatpush.msra.mxu0 %v311
    %824 = vmatpush.msra.mxu0 %v307
    %825 = vmatpush.msra.mxu0 %v303
    %826 = vmatpush.msra.mxu0 %v299
    %827 = vmatpush.msra.mxu0 %v295
    %828 = vmatpush.msra.mxu0 %v291
    %829 = vmatpush.msra.mxu0 %v287
    %830 = vmatpush.msra.mxu0 %v283
    %831 = vmatpush.msra.mxu0 %v279
    %832 = vmatpush.msra.mxu0 %v275
    %833 = vmatpush.msra.mxu0 %v271
    %834 = vmatpush.msra.mxu0 %v267
    %835 = vmatmul.f32.gmra.mxu0 %v552
    %v836 = vpop.f32.mrf.mxu0
    %v837 = vadd.f32 %v817, %v836
    %838 = vdwg.mxu0
    %839 = vmatpush.msra.mxu0 %v391
    %840 = vmatpush.msra.mxu0 %v387
    %841 = vmatpush.msra.mxu0 %v383
    %842 = vmatpush.msra.mxu0 %v379
    %843 = vmatpush.msra.mxu0 %v375
    %844 = vmatpush.msra.mxu0 %v371
    %845 = vmatpush.msra.mxu0 %v367
    %846 = vmatpush.msra.mxu0 %v363
    %847 = vmatpush.msra.mxu0 %v359
    %848 = vmatpush.msra.mxu0 %v355
    %849 = vmatpush.msra.mxu0 %v351
    %850 = vmatpush.msra.mxu0 %v347
    %851 = vmatpush.msra.mxu0 %v343
    %852 = vmatpush.msra.mxu0 %v339
    %853 = vmatpush.msra.mxu0 %v335
    %854 = vmatpush.msra.mxu0 %v331
    %855 = vmatmul.f32.gmra.mxu0 %v553
    %v856 = vpop.f32.mrf.mxu0
    %v857 = vadd.f32 %v837, %v856
    %858 = vdwg.mxu0
    %859 = vmatpush.msra.mxu0 %v455
    %860 = vmatpush.msra.mxu0 %v451
    %861 = vmatpush.msra.mxu0 %v447
    %862 = vmatpush.msra.mxu0 %v443
    %863 = vmatpush.msra.mxu0 %v439
    %864 = vmatpush.msra.mxu0 %v435
    %865 = vmatpush.msra.mxu0 %v431
    %866 = vmatpush.msra.mxu0 %v427
    %867 = vmatpush.msra.mxu0 %v423
    %868 = vmatpush.msra.mxu0 %v419
    %869 = vmatpush.msra.mxu0 %v415
    %870 = vmatpush.msra.mxu0 %v411
    %871 = vmatpush.msra.mxu0 %v407
    %872 = vmatpush.msra.mxu0 %v403
    %873 = vmatpush.msra.mxu0 %v399
    %874 = vmatpush.msra.mxu0 %v395
    %875 = vmatmul.f32.gmra.mxu0 %v554
    %v876 = vpop.f32.mrf.mxu0
    %v877 = vadd.f32 %v857, %v876
    %878 = vdwg.mxu0
    %v879 = vmax.f32 %v637, 0.0
    %v880 = vmax.f32 %v717, 0.0
    %v881 = vmax.f32 %v797, 0.0
    %v882 = vmax.f32 %v877, 0.0
    %v883 = vld [vmem:[%s3] sm:$0xff]
    %v884 = vld [vmem:[%s3 + $0x8] sm:$0xff]
    %v885 = vld [vmem:[%s3 + $0x10] sm:$0xff]
    %v886 = vld [vmem:[%s3 + $0x18] sm:$0xff]
    %v887 = vld [vmem:[%s3 + $0x20] sm:$0xff]
    %v888 = vld [vmem:[%s3 + $0x28] sm:$0xff]
    %v889 = vld [vmem:[%s3 + $0x30] sm:$0xff]
    %v890 = vld [vmem:[%s3 + $0x38] sm:$0xff]
    %v891 = vld [vmem:[%s3 + $0x40] sm:$0xff]
    %v892 = vld [vmem:[%s3 + $0x48] sm:$0xff]
    %v893 = vld [vmem:[%s3 + $0x50] sm:$0xff]
    %v894 = vld [vmem:[%s3 + $0x58] sm:$0xff]
    %v895 = vld [vmem:[%s3 + $0x60] sm:$0xff]
    %v896 = vld [vmem:[%s3 + $0x68] sm:$0xff]
    %v897 = vld [vmem:[%s3 + $0x70] sm:$0xff]
    %v898 = vld [vmem:[%s3 + $0x78] sm:$0xff]
    %v899 = vld [vmem:[%s3 + $0x80] sm:$0xff]
    %v900 = vld [vmem:[%s3 + $0x88] sm:$0xff]
    %v901 = vld [vmem:[%s3 + $0x90] sm:$0xff]
    %v902 = vld [vmem:[%s3 + $0x98] sm:$0xff]
    %v903 = vld [vmem:[%s3 + $0xa0] sm:$0xff]
    %v904 = vld [vmem:[%s3 + $0xa8] sm:$0xff]
    %v905 = vld [vmem:[%s3 + $0xb0] sm:$0xff]
    %v906 = vld [vmem:[%s3 + $0xb8] sm:$0xff]
    %v907 = vld [vmem:[%s3 + $0xc0] sm:$0xff]
    %v908 = vld [vmem:[%s3 + $0xc8] sm:$0xff]
    %v909 = vld [vmem:[%s3 + $0xd0] sm:$0xff]
    %v910 = vld [vmem:[%s3 + $0xd8] sm:$0xff]
    %v911 = vld [vmem:[%s3 + $0xe0] sm:$0xff]
    %v912 = vld [vmem:[%s3 + $0xe8] sm:$0xff]
    %v913 = vld [vmem:[%s3 + $0xf0] sm:$0xff]
    %v914 = vld [vmem:[%s3 + $0xf8] sm:$0xff]
    %v915 = vld [vmem:[%s3 + $0x100] sm:$0xff]
    %v916 = vld [vmem:[%s3 + $0x108] sm:$0xff]
    %v917 = vld [vmem:[%s3 + $0x110] sm:$0xff]
    %v918 = vld [vmem:[%s3 + $0x118] sm:$0xff]
    %v919 = vld [vmem:[%s3 + $0x120] sm:$0xff]
    %v920 = vld [vmem:[%s3 + $0x128] sm:$0xff]
    %v921 = vld [vmem:[%s3 + $0x130] sm:$0xff]
    %v922 = vld [vmem:[%s3 + $0x138] sm:$0xff]
    %v923 = vld [vmem:[%s3 + $0x140] sm:$0xff]
    %v924 = vld [vmem:[%s3 + $0x148] sm:$0xff]
    %v925 = vld [vmem:[%s3 + $0x150] sm:$0xff]
    %v926 = vld [vmem:[%s3 + $0x158] sm:$0xff]
    %v927 = vld [vmem:[%s3 + $0x160] sm:$0xff]
    %v928 = vld [vmem:[%s3 + $0x168] sm:$0xff]
    %v929 = vld [vmem:[%s3 + $0x170] sm:$0xff]
    %v930 = vld [vmem:[%s3 + $0x178] sm:$0xff]
    %v931 = vld [vmem:[%s3 + $0x180] sm:$0xff]
    %v932 = vld [vmem:[%s3 + $0x188] sm:$0xff]
    %v933 = vld [vmem:[%s3 + $0x190] sm:$0xff]
    %v934 = vld [vmem:[%s3 + $0x198] sm:$0xff]
    %v935 = vld [vmem:[%s3 + $0x1a0] sm:$0xff]
    %v936 = vld [vmem:[%s3 + $0x1a8] sm:$0xff]
    %v937 = vld [vmem:[%s3 + $0x1b0] sm:$0xff]
    %v938 = vld [vmem:[%s3 + $0x1b8] sm:$0xff]
    %v939 = vld [vmem:[%s3 + $0x1c0] sm:$0xff]
    %v940 = vld [vmem:[%s3 + $0x1c8] sm:$0xff]
    %v941 = vld [vmem:[%s3 + $0x1d0] sm:$0xff]
    %v942 = vld [vmem:[%s3 + $0x1d8] sm:$0xff]
    %v943 = vld [vmem:[%s3 + $0x1e0] sm:$0xff]
    %v944 = vld [vmem:[%s3 + $0x1e8] sm:$0xff]
    %v945 = vld [vmem:[%s3 + $0x1f0] sm:$0xff]
    %v946 = vld [vmem:[%s3 + $0x1f8] sm:$0xff]
    %v947 = vld [vmem:[%s3 + $0x200] sm:$0x1]
    %v948 = vperm.slane %v947, 0
    %949 = vmatpush.msra.mxu0 %v898
    %950 = vmatpush.msra.mxu0 %v897
    %951 = vmatpush.msra.mxu0 %v896
    %952 = vmatpush.msra.mxu0 %v895
    %953 = vmatpush.msra.mxu0 %v894
    %954 = vmatpush.msra.mxu0 %v893
    %955 = vmatpush.msra.mxu0 %v892
    %956 = vmatpush.msra.mxu0 %v891
    %957 = vmatpush.msra.mxu0 %v890
    %958 = vmatpush.msra.mxu0 %v889
    %959 = vmatpush.msra.mxu0 %v888
    %960 = vmatpush.msra.mxu0 %v887
    %961 = vmatpush.msra.mxu0 %v886
    %962 = vmatpush.msra.mxu0 %v885
    %963 = vmatpush.msra.mxu0 %v884
    %964 = vmatpush.msra.mxu0 %v883
    %965 = vmatmul.f32.gmra.mxu0 %v879
    %v966 = vpop.f32.mrf.mxu0
    %v967 = vadd.f32 %v948, %v966
    %968 = vdwg.mxu0
    %969 = vmatpush.msra.mxu0 %v914
    %970 = vmatpush.msra.mxu0 %v913
    %971 = vmatpush.msra.mxu0 %v912
    %972 = vmatpush.msra.mxu0 %v911
    %973 = vmatpush.msra.mxu0 %v910
    %974 = vmatpush.msra.mxu0 %v909
    %975 = vmatpush.msra.mxu0 %v908
    %976 = vmatpush.msra.mxu0 %v907
    %977 = vmatpush.msra.mxu0 %v906
    %978 = vmatpush.msra.mxu0 %v905
    %979 = vmatpush.msra.mxu0 %v904
    %980 = vmatpush.msra.mxu0 %v903
    %981 = vmatpush.msra.mxu0 %v902
    %982 = vmatpush.msra.mxu0 %v901
    %983 = vmatpush.msra.mxu0 %v900
    %984 = vmatpush.msra.mxu0 %v899
    %985 = vmatmul.f32.gmra.mxu0 %v880
    %v986 = vpop.f32.mrf.mxu0
    %v987 = vadd.f32 %v967, %v986
    %988 = vdwg.mxu0
    %989 = vmatpush.msra.mxu0 %v930
    %990 = vmatpush.msra.mxu0 %v929
    %991 = vmatpush.msra.mxu0 %v928
    %992 = vmatpush.msra.mxu0 %v927
    %993 = vmatpush.msra.mxu0 %v926
    %994 = vmatpush.msra.mxu0 %v925
    %995 = vmatpush.msra.mxu0 %v924
    %996 = vmatpush.msra.mxu0 %v923
    %997 = vmatpush.msra.mxu0 %v922
    %998 = vmatpush.msra.mxu0 %v921
    %999 = vmatpush.msra.mxu0 %v920
    %1000 = vmatpush.msra.mxu0 %v919
    %1001 = vmatpush.msra.mxu0 %v918
    %1002 = vmatpush.msra.mxu0 %v917
    %1003 = vmatpush.msra.mxu0 %v916
    %1004 = vmatpush.msra.mxu0 %v915
    %1005 = vmatmul.f32.gmra.mxu0 %v881
    %v1006 = vpop.f32.mrf.mxu0
    %v1007 = vadd.f32 %v987, %v1006
    %1008 = vdwg.mxu0
    %1009 = vmatpush.msra.mxu0 %v946
    %1010 = vmatpush.msra.mxu0 %v945
    %1011 = vmatpush.msra.mxu0 %v944
    %1012 = vmatpush.msra.mxu0 %v943
    %1013 = vmatpush.msra.mxu0 %v942
    %1014 = vmatpush.msra.mxu0 %v941
    %1015 = vmatpush.msra.mxu0 %v940
    %1016 = vmatpush.msra.mxu0 %v939
    %1017 = vmatpush.msra.mxu0 %v938
    %1018 = vmatpush.msra.mxu0 %v937
    %1019 = vmatpush.msra.mxu0 %v936
    %1020 = vmatpush.msra.mxu0 %v935
    %1021 = vmatpush.msra.mxu0 %v934
    %1022 = vmatpush.msra.mxu0 %v933
    %1023 = vmatpush.msra.mxu0 %v932
    %1024 = vmatpush.msra.mxu0 %v931
    %1025 = vmatmul.f32.gmra.mxu0 %v882
    %v1026 = vpop.f32.mrf.mxu0
    %v1027 = vadd.f32 %v1007, %v1026
    %1028 = vdwg.mxu0
    %v1029 = vlaneseq
    %v1030 = vand.u32 %v1029, 127
    %1031 = vset.pattern.permute.xlu0 0
    %1032 = vperm.xlu0 %1031, %v40
    %v1033 = vpop.permute.xlu0 %1032
    %1034 = vset.pattern.permute.xlu0 0
    %1035 = vperm.xlu0 %1034, %v41
    %v1036 = vpop.permute.xlu0 %1035
    %vm1037 = vcmp.eq.s32.totalorder %v1030, %v1033
    %vm1038 = vcmp.eq.s32.totalorder %v1030, %v1036
    %v1039 = vsel %vm1037, 1, 0
    %v1040 = vsel %vm1038, 1, 0
    %v1041 = vcvt.s32.f32 %v1039
    %v1042 = vcvt.s32.f32 %v1040
    %v1043 = vld [vmem:[%s3 + $0x208] sm:$0xff]
    %v1044 = vld [vmem:[%s3 + $0x210] sm:$0xff]
    %v1045 = vld [vmem:[%s3 + $0x218] sm:$0xff]
    %v1046 = vld [vmem:[%s3 + $0x220] sm:$0xff]
    %v1047 = vld [vmem:[%s3 + $0x228] sm:$0xff]
    %v1048 = vld [vmem:[%s3 + $0x230] sm:$0xff]
    %v1049 = vld [vmem:[%s3 + $0x238] sm:$0xff]
    %v1050 = vld [vmem:[%s3 + $0x240] sm:$0xff]
    %v1051 = vld [vmem:[%s3 + $0x248] sm:$0xff]
    %v1052 = vld [vmem:[%s3 + $0x250] sm:$0xff]
    %v1053 = vld [vmem:[%s3 + $0x258] sm:$0xff]
    %v1054 = vld [vmem:[%s3 + $0x260] sm:$0xff]
    %v1055 = vld [vmem:[%s3 + $0x268] sm:$0xff]
    %v1056 = vld [vmem:[%s3 + $0x270] sm:$0xff]
    %v1057 = vld [vmem:[%s3 + $0x278] sm:$0xff]
    %v1058 = vld [vmem:[%s3 + $0x280] sm:$0xff]
    %1059 = vmatpush.msra.mxu0 %v1058
    %1060 = vmatpush.msra.mxu0 %v1057
    %1061 = vmatpush.msra.mxu0 %v1056
    %1062 = vmatpush.msra.mxu0 %v1055
    %1063 = vmatpush.msra.mxu0 %v1054
    %1064 = vmatpush.msra.mxu0 %v1053
    %1065 = vmatpush.msra.mxu0 %v1052
    %1066 = vmatpush.msra.mxu0 %v1051
    %1067 = vmatpush.msra.mxu0 %v1050
    %1068 = vmatpush.msra.mxu0 %v1049
    %1069 = vmatpush.msra.mxu0 %v1048
    %1070 = vmatpush.msra.mxu0 %v1047
    %1071 = vmatpush.msra.mxu0 %v1046
    %1072 = vmatpush.msra.mxu0 %v1045
    %1073 = vmatpush.msra.mxu0 %v1044
    %1074 = vmatpush.msra.mxu0 %v1043
    %1075 = vmatmul.f32.gmra.mxu0 %v1041
    %v1076 = vpop.f32.mrf.mxu0
    %v1077 = vadd.f32 0.0, %v1076
    %1078 = vmatmul.f32.gmra.mxu0 %v1042
    %v1079 = vpop.f32.mrf.mxu0
    %v1080 = vadd.f32 0.0, %v1079
    %1081 = vdwg.mxu0
    %1082 = vset.pattern.permute.xlu0 3
    %1083 = vperm.xlu0 %1082, %v40
    %v1084 = vpop.permute.xlu0 %1083
    %1085 = vset.pattern.permute.xlu0 3
    %1086 = vperm.xlu0 %1085, %v41
    %v1087 = vpop.permute.xlu0 %1086
    %vm1088 = vcmp.eq.s32.totalorder %v1030, %v1084
    %vm1089 = vcmp.eq.s32.totalorder %v1030, %v1087
    %v1090 = vsel %vm1088, 1, 0
    %v1091 = vsel %vm1089, 1, 0
    %v1092 = vcvt.s32.f32 %v1090
    %v1093 = vcvt.s32.f32 %v1091
    %vm1094 = vcmask 64512
    %v1096 = vsel %vm1094, %v1092, 0
    %v1099 = vsel %vm1094, %v1093, 0
    %1101 = vmatpush.msra.mxu0 0.0
    %1102 = vmatpush.msra.mxu0 0.0
    %1103 = vmatpush.msra.mxu0 0.0
    %1104 = vmatpush.msra.mxu0 0.0
    %1105 = vmatpush.msra.mxu0 0.0
    %1106 = vmatpush.msra.mxu0 0.0
    %1107 = vmatpush.msra.mxu0 0.0
    %1108 = vmatpush.msra.mxu0 0.0
    %1109 = vmatpush.msra.mxu0 0.0
    %1110 = vmatpush.msra.mxu0 0.0
    %1111 = vmatpush.msra.mxu0 0.0
    %1112 = vmatpush.msra.mxu0 0.0
    %1113 = vmatpush.msra.mxu0 0.0
    %1114 = vmatpush.msra.mxu0 0.0
    %1115 = vmatpush.msra.mxu0 0.0
    %1116 = vmatpush.msra.mxu0 %v1027
    %1117 = vmatmul.f32.gmra.mxu0 %v1096
    %v1118 = vpop.f32.mrf.mxu0
    %v1119 = vadd.f32 0.0, %v1118
    %1120 = vmatmul.f32.gmra.mxu0 %v1099
    %v1121 = vpop.f32.mrf.mxu0
    %v1122 = vadd.f32 0.0, %v1121
    %1123 = vdwg.mxu0
    %1124 = vrot.lane.b32.xlu0 %v40, 127
    %v1125 = vpop.permute.xlu0 %1124
    %1126 = vrot.lane.b32.xlu0 %v41, 127
    %v1127 = vpop.permute.xlu0 %1126
    %vm1128 = vcmp.eq.s32.totalorder %v40, %v1125
    %vm1129 = vcmp.eq.s32.totalorder %v41, %v1127
    %vm1130 = vcmp.ge.s32.totalorder %v40, 0
    %vm1131 = vcmp.ge.s32.totalorder %v41, 0
    %v1132 = vsel %vm1130, 1, 0
    %v1133 = vsel %vm1131, 1, 0
    %1134 = vrot.lane.b32.xlu0 %v1132, 127
    %v1135 = vpop.permute.xlu0 %1134
    %1136 = vrot.lane.b32.xlu0 %v1133, 127
    %v1137 = vpop.permute.xlu0 %1136
    %vm1138 = vcmp.ne.s32.totalorder %v1135, 0
    %vm1139 = vcmp.ne.s32.totalorder %v1137, 0
    %vm1140 = vmand %vm1128, %vm1138
    %vm1141 = vmand %vm1129, %vm1139
    %vm1142 = vcmp.lt.s32.totalorder %v40, 8
    %vm1143 = vcmp.lt.s32.totalorder %v41, 8
    %v1144 = vsel %vm1142, 1, 0
    %v1145 = vsel %vm1143, 1, 0
    %1146 = vrot.lane.b32.xlu0 %v1144, 127
    %v1147 = vpop.permute.xlu0 %1146
    %1148 = vrot.lane.b32.xlu0 %v1145, 127
    %v1149 = vpop.permute.xlu0 %1148
    %vm1150 = vcmp.ne.s32.totalorder %v1147, 0
    %vm1151 = vcmp.ne.s32.totalorder %v1149, 0
    %vm1152 = vmand %vm1140, %vm1150
    %vm1153 = vmand %vm1141, %vm1151
    %v1154 = vsel %vm1152, 1, 0
    %v1155 = vsel %vm1153, 1, 0
    %1156 = vset.pattern.permute.xlu0 1
    %1157 = vperm.xlu0 %1156, %v1154
    %v1158 = vpop.permute.xlu0 %1157
    %1159 = vset.pattern.permute.xlu0 1
    %1160 = vperm.xlu0 %1159, %v1155
    %v1161 = vpop.permute.xlu0 %1160
    %vm1162 = vcmp.eq.s32.totalorder %v1158, 1
    %vm1163 = vcmp.eq.s32.totalorder %v1161, 1
    %v1164 = vsel %vm1162, %v1119, %v1077
    %v1165 = vsel %vm1163, %v1122, %v1080
    %v1166 = vld [vmem:[#allocation2] sm:$0xff]
    %v1167 = vld [vmem:[#allocation2 + $0x8] sm:$0xff]
    %v1168 = vld [vmem:[#allocation2 + $0x10] sm:$0xff]
    %v1169 = vld [vmem:[#allocation2 + $0x18] sm:$0xff]
    %v1170 = vld [vmem:[%s5 + $0x40] sm:$0xff]
    %v1171 = vld [vmem:[%s5 + $0x48] sm:$0xff]
    %v1172 = vld [vmem:[%s3 + $0x350] sm:$0x1]
    %v1173 = vmul.f32 %v1164, %v1164
    %v1174 = vmul.f32 %v1165, %v1165
    %vm1175 = vcmask 523264
    %v1176 = vsel %vm1175, %v1173, 0.0
    %1177 = vadd.xlane.f32.xlu0 %v1176
    %v1178 = vpop.xlane.xlu0 %1177
    %v1179 = vsel %vm1175, %v1174, 0.0
    %1180 = vadd.xlane.f32.xlu0 %v1179
    %v1181 = vpop.xlane.xlu0 %1180
    %v1182 = vrcp.pop 64.0
    %v1183 = vmul.f32 64.0, %v1182
    %v1184 = vsub.f32 1.0, %v1183
    %v1185 = vmul.f32 %v1182, %v1184
    %v1186 = vadd.f32 %v1182, %v1185
    %vm1187 = vweird.f32 %v1182
    %v1188 = vsel %vm1187, %v1182, %v1186
    %v1189 = vmul.f32 %v1178, %v1188
    %v1190 = vmul.f32 %v1181, %v1188
    %v1191 = vadd.f32 %v1189, 1e-05
    %v1192 = vadd.f32 %v1190, 1e-05
    %v1193 = vrsqrt.pop %v1191
    %v1194 = vmul.f32 %v1193, %v1191
    %v1195 = vmul.f32 %v1194, %v1193
    %v1196 = vmul.f32 0.5, %v1195
    %v1197 = vsub.f32 1.5, %v1196
    %v1198 = vmul.f32 %v1193, %v1197
    %vm1199 = vweird.f32 %v1191
    %vm1200 = vweird.f32 %v1193
    %vm1201 = vmor %vm1199, %vm1200
    %v1202 = vsel %vm1201, %v1193, %v1198
    %v1203 = vrsqrt.pop %v1192
    %v1204 = vmul.f32 %v1203, %v1192
    %v1205 = vmul.f32 %v1204, %v1203
    %v1206 = vmul.f32 0.5, %v1205
    %v1207 = vsub.f32 1.5, %v1206
    %v1208 = vmul.f32 %v1203, %v1207
    %vm1209 = vweird.f32 %v1192
    %vm1210 = vweird.f32 %v1203
    %vm1211 = vmor %vm1209, %vm1210
    %v1212 = vsel %vm1211, %v1203, %v1208
    %v1213 = vmul.f32 %v1164, %v1202
    %v1214 = vmul.f32 %v1165, %v1212
    %v1215 = vperm.slane %v1172, 0
    %v1216 = vmul.f32 %v1213, %v1215
    %v1217 = vmul.f32 %v1214, %v1215
    %v1218 = vld [vmem:[#allocation2 + $0x20] sm:$0xff]
    %v1219 = vld [vmem:[#allocation2 + $0x28] sm:$0xff]
    %v1220 = vld [vmem:[#allocation2 + $0x30] sm:$0xff]
    %v1221 = vld [vmem:[#allocation2 + $0x38] sm:$0xff]
    %v1222 = vld [vmem:[#allocation2 + $0x40] sm:$0xff]
    %v1223 = vld [vmem:[#allocation2 + $0x48] sm:$0xff]
    %v1224 = vld [vmem:[#allocation2 + $0x50] sm:$0xff]
    %v1225 = vld [vmem:[#allocation2 + $0x58] sm:$0xff]
    %v1226 = vld [vmem:[#allocation2 + $0x60] sm:$0xff]
    %v1227 = vld [vmem:[#allocation2 + $0x68] sm:$0xff]
    %v1228 = vld [vmem:[#allocation2 + $0x70] sm:$0xff]
    %v1229 = vld [vmem:[#allocation2 + $0x78] sm:$0xff]
    %v1230 = vld [vmem:[#allocation2 + $0x80] sm:$0xff]
    %v1231 = vld [vmem:[#allocation2 + $0x88] sm:$0xff]
    %v1232 = vld [vmem:[#allocation2 + $0x90] sm:$0xff]
    %v1233 = vld [vmem:[#allocation2 + $0x98] sm:$0xff]
    %v1235 = vsel %vm1175, %v1216, 0
    %v1238 = vsel %vm1175, %v1217, 0
    %1240 = vmatpush.msra.mxu0 0.0
    %1241 = vmatpush.msra.mxu0 0.0
    %1242 = vmatpush.msra.mxu0 0.0
    %1243 = vmatpush.msra.mxu0 0.0
    %1244 = vmatpush.msra.mxu0 0.0
    %1245 = vmatpush.msra.mxu0 0.0
    %1246 = vmatpush.msra.mxu0 0.0
    %1247 = vmatpush.msra.mxu0 0.0
    %1248 = vmatpush.msra.mxu0 %v1232
    %1249 = vmatpush.msra.mxu0 %v1230
    %1250 = vmatpush.msra.mxu0 %v1228
    %1251 = vmatpush.msra.mxu0 %v1226
    %1252 = vmatpush.msra.mxu0 %v1224
    %1253 = vmatpush.msra.mxu0 %v1222
    %1254 = vmatpush.msra.mxu0 %v1220
    %1255 = vmatpush.msra.mxu0 %v1218
    %1256 = vmatmul.f32.gmra.mxu0 %v1235
    %v1257 = vpop.f32.mrf.mxu0
    %v1258 = vadd.f32 0.0, %v1257
    %1259 = vmatmul.f32.gmra.mxu0 %v1238
    %v1260 = vpop.f32.mrf.mxu0
    %v1261 = vadd.f32 0.0, %v1260
    %1262 = vdwg.mxu0
    %1263 = vmatpush.msra.mxu0 0.0
    %1264 = vmatpush.msra.mxu0 0.0
    %1265 = vmatpush.msra.mxu0 0.0
    %1266 = vmatpush.msra.mxu0 0.0
    %1267 = vmatpush.msra.mxu0 0.0
    %1268 = vmatpush.msra.mxu0 0.0
    %1269 = vmatpush.msra.mxu0 0.0
    %1270 = vmatpush.msra.mxu0 0.0
    %1271 = vmatpush.msra.mxu0 %v1233
    %1272 = vmatpush.msra.mxu0 %v1231
    %1273 = vmatpush.msra.mxu0 %v1229
    %1274 = vmatpush.msra.mxu0 %v1227
    %1275 = vmatpush.msra.mxu0 %v1225
    %1276 = vmatpush.msra.mxu0 %v1223
    %1277 = vmatpush.msra.mxu0 %v1221
    %1278 = vmatpush.msra.mxu0 %v1219
    %1279 = vmatmul.f32.gmra.mxu0 %v1235
    %v1280 = vpop.f32.mrf.mxu0
    %v1281 = vadd.f32 0.0, %v1280
    %1282 = vmatmul.f32.gmra.mxu0 %v1238
    %v1283 = vpop.f32.mrf.mxu0
    %v1284 = vadd.f32 0.0, %v1283
    %1285 = vdwg.mxu0
    %v1286 = vmul.f32 %v1258, %v1166
    %v1287 = vmul.f32 %v1261, %v1168
    %v1288 = vmul.f32 %v1281, %v1167
    %v1289 = vmul.f32 %v1284, %v1169
    %v1290 = vadd.f32 %v1286, %v1288
    %v1291 = vadd.f32 %v1287, %v1289
    %1294 = vrot.lane.b32.xlu0 %v1290, 64
    %v1295 = vpop.permute.xlu0 %1294
    %1296 = vrot.lane.b32.xlu0 %v1291, 64
    %v1297 = vpop.permute.xlu0 %1296
    %vm1298 = vcmask 130048
    %v1299 = vsel %vm1298, %v1290, 0
    %v1301 = vsel %vm1298, %v1291, 0
    %v1303 = vsel %vm1298, %v1295, 0
    %v1305 = vsel %vm1298, %v1297, 0
    %1307 = vmatpush.xpose.msra.mxu0 0.0
    %1308 = vmatpush.xpose.msra.mxu0 0.0
    %1309 = vmatpush.xpose.msra.mxu0 0.0
    %1310 = vmatpush.xpose.msra.mxu0 0.0
    %1311 = vmatpush.xpose.msra.mxu0 0.0
    %1312 = vmatpush.xpose.msra.mxu0 0.0
    %1313 = vmatpush.xpose.msra.mxu0 0.0
    %1314 = vmatpush.xpose.msra.mxu0 0.0
    %1315 = vmatpush.xpose.msra.mxu0 0.0
    %1316 = vmatpush.xpose.msra.mxu0 0.0
    %1317 = vmatpush.xpose.msra.mxu0 0.0
    %1318 = vmatpush.xpose.msra.mxu0 0.0
    %1319 = vmatpush.xpose.msra.mxu0 0.0
    %1320 = vmatpush.xpose.msra.mxu0 0.0
    %1321 = vmatpush.xpose.msra.mxu0 %v1305
    %1322 = vmatpush.xpose.msra.mxu0 %v1303
    %1323 = vmatmul.f32.gmra.mxu0 %v1299
    %v1324 = vpop.f32.mrf.mxu0
    %v1325 = vadd.f32 0.0, %v1324
    %1326 = vmatmul.f32.gmra.mxu0 %v1301
    %v1327 = vpop.f32.mrf.mxu0
    %v1328 = vadd.f32 0.0, %v1327
    %1329 = vdwg.mxu0
    %v1330 = vmul.f32 %v1325, 0.25
    %v1331 = vmul.f32 %v1328, 0.25
    %v1332 = vadd.f32 %v1330, %v1170
    %v1333 = vadd.f32 %v1331, %v1171
    %v1334 = vsel %vm1298, %v1332, -inf
    %1335 = vmax.xlane.f32.xlu0 %v1334
    %v1336 = vpop.xlane.xlu0 %1335
    %v1337 = vsel %vm1298, %v1333, -inf
    %1338 = vmax.xlane.f32.xlu0 %v1337
    %v1339 = vpop.xlane.xlu0 %1338
    %v1340 = vsub.f32 %v1332, %v1336
    %v1341 = vsub.f32 %v1333, %v1339
    %v1342 = vmul.f32 %v1340, 1.442695
    %v1343 = vpow.pop %v1342
    %v1344 = vmul.f32 %v1341, 1.442695
    %v1345 = vpow.pop %v1344
    %v1346 = vsel %vm1298, %v1343, 0.0
    %1347 = vadd.xlane.f32.xlu0 %v1346
    %v1348 = vpop.xlane.xlu0 %1347
    %v1349 = vsel %vm1298, %v1345, 0.0
    %1350 = vadd.xlane.f32.xlu0 %v1349
    %v1351 = vpop.xlane.xlu0 %1350
    %v1352 = vrcp.pop %v1348
    %v1353 = vrcp.pop %v1351
    %v1354 = vmul.f32 %v1343, %v1352
    %v1355 = vmul.f32 %v1345, %v1353
    %1356 = vrot.lane.b32.xlu0 %v1290, 32
    %v1357 = vpop.permute.xlu0 %1356
    %1358 = vrot.lane.b32.xlu0 %v1291, 32
    %v1359 = vpop.permute.xlu0 %1358
    %v1363 = vsel %vm1298, %v1354, 0
    %v1366 = vsel %vm1298, %v1355, 0
    %1368 = vmatpush.msra.mxu0 0.0
    %1369 = vmatpush.msra.mxu0 0.0
    %1370 = vmatpush.msra.mxu0 0.0
    %1371 = vmatpush.msra.mxu0 0.0
    %1372 = vmatpush.msra.mxu0 0.0
    %1373 = vmatpush.msra.mxu0 0.0
    %1374 = vmatpush.msra.mxu0 0.0
    %1375 = vmatpush.msra.mxu0 0.0
    %1376 = vmatpush.msra.mxu0 0.0
    %1377 = vmatpush.msra.mxu0 0.0
    %1378 = vmatpush.msra.mxu0 0.0
    %1379 = vmatpush.msra.mxu0 0.0
    %1380 = vmatpush.msra.mxu0 0.0
    %1381 = vmatpush.msra.mxu0 0.0
    %1382 = vmatpush.msra.mxu0 %v1359
    %1383 = vmatpush.msra.mxu0 %v1357
    %1384 = vmatmul.f32.gmra.mxu0 %v1363
    %v1385 = vpop.f32.mrf.mxu0
    %v1386 = vadd.f32 0.0, %v1385
    %1387 = vmatmul.f32.gmra.mxu0 %v1366
    %v1388 = vpop.f32.mrf.mxu0
    %v1389 = vadd.f32 0.0, %v1388
    %1390 = vdwg.mxu0
    %1391 = vrot.lane.b32.xlu0 %v1290, 112
    %v1392 = vpop.permute.xlu0 %1391
    %1393 = vrot.lane.b32.xlu0 %v1291, 112
    %v1394 = vpop.permute.xlu0 %1393
    %v1395 = vsel %vm1298, %v1392, 0
    %v1397 = vsel %vm1298, %v1394, 0
    %1399 = vmatpush.xpose.msra.mxu0 0.0
    %1400 = vmatpush.xpose.msra.mxu0 0.0
    %1401 = vmatpush.xpose.msra.mxu0 0.0
    %1402 = vmatpush.xpose.msra.mxu0 0.0
    %1403 = vmatpush.xpose.msra.mxu0 0.0
    %1404 = vmatpush.xpose.msra.mxu0 0.0
    %1405 = vmatpush.xpose.msra.mxu0 0.0
    %1406 = vmatpush.xpose.msra.mxu0 0.0
    %1407 = vmatpush.xpose.msra.mxu0 0.0
    %1408 = vmatpush.xpose.msra.mxu0 0.0
    %1409 = vmatpush.xpose.msra.mxu0 0.0
    %1410 = vmatpush.xpose.msra.mxu0 0.0
    %1411 = vmatpush.xpose.msra.mxu0 0.0
    %1412 = vmatpush.xpose.msra.mxu0 0.0
    %1413 = vmatpush.xpose.msra.mxu0 %v1305
    %1414 = vmatpush.xpose.msra.mxu0 %v1303
    %1415 = vmatmul.f32.gmra.mxu0 %v1395
    %v1416 = vpop.f32.mrf.mxu0
    %v1417 = vadd.f32 0.0, %v1416
    %1418 = vmatmul.f32.gmra.mxu0 %v1397
    %v1419 = vpop.f32.mrf.mxu0
    %v1420 = vadd.f32 0.0, %v1419
    %1421 = vdwg.mxu0
    %v1422 = vmul.f32 %v1417, 0.25
    %v1423 = vmul.f32 %v1420, 0.25
    %v1424 = vadd.f32 %v1422, %v1170
    %v1425 = vadd.f32 %v1423, %v1171
    %v1426 = vsel %vm1298, %v1424, -inf
    %1427 = vmax.xlane.f32.xlu0 %v1426
    %v1428 = vpop.xlane.xlu0 %1427
    %v1429 = vsel %vm1298, %v1425, -inf
    %1430 = vmax.xlane.f32.xlu0 %v1429
    %v1431 = vpop.xlane.xlu0 %1430
    %v1432 = vsub.f32 %v1424, %v1428
    %v1433 = vsub.f32 %v1425, %v1431
    %v1434 = vmul.f32 %v1432, 1.442695
    %v1435 = vpow.pop %v1434
    %v1436 = vmul.f32 %v1433, 1.442695
    %v1437 = vpow.pop %v1436
    %v1438 = vsel %vm1298, %v1435, 0.0
    %1439 = vadd.xlane.f32.xlu0 %v1438
    %v1440 = vpop.xlane.xlu0 %1439
    %v1441 = vsel %vm1298, %v1437, 0.0
    %1442 = vadd.xlane.f32.xlu0 %v1441
    %v1443 = vpop.xlane.xlu0 %1442
    %v1444 = vrcp.pop %v1440
    %v1445 = vrcp.pop %v1443
    %v1446 = vmul.f32 %v1435, %v1444
    %v1447 = vmul.f32 %v1437, %v1445
    %v1449 = vsel %vm1298, %v1446, 0
    %v1452 = vsel %vm1298, %v1447, 0
    %1454 = vmatpush.msra.mxu0 0.0
    %1455 = vmatpush.msra.mxu0 0.0
    %1456 = vmatpush.msra.mxu0 0.0
    %1457 = vmatpush.msra.mxu0 0.0
    %1458 = vmatpush.msra.mxu0 0.0
    %1459 = vmatpush.msra.mxu0 0.0
    %1460 = vmatpush.msra.mxu0 0.0
    %1461 = vmatpush.msra.mxu0 0.0
    %1462 = vmatpush.msra.mxu0 0.0
    %1463 = vmatpush.msra.mxu0 0.0
    %1464 = vmatpush.msra.mxu0 0.0
    %1465 = vmatpush.msra.mxu0 0.0
    %1466 = vmatpush.msra.mxu0 0.0
    %1467 = vmatpush.msra.mxu0 0.0
    %1468 = vmatpush.msra.mxu0 %v1359
    %1469 = vmatpush.msra.mxu0 %v1357
    %1470 = vmatmul.f32.gmra.mxu0 %v1449
    %v1471 = vpop.f32.mrf.mxu0
    %v1472 = vadd.f32 0.0, %v1471
    %1473 = vmatmul.f32.gmra.mxu0 %v1452
    %v1474 = vpop.f32.mrf.mxu0
    %v1475 = vadd.f32 0.0, %v1474
    %1476 = vdwg.mxu0
    %1477 = vrot.lane.b32.xlu0 %v1290, 96
    %v1478 = vpop.permute.xlu0 %1477
    %1479 = vrot.lane.b32.xlu0 %v1291, 96
    %v1480 = vpop.permute.xlu0 %1479
    %1481 = vrot.lane.b32.xlu0 %v1290, 48
    %v1482 = vpop.permute.xlu0 %1481
    %1483 = vrot.lane.b32.xlu0 %v1291, 48
    %v1484 = vpop.permute.xlu0 %1483
    %v1485 = vsel %vm1298, %v1478, 0
    %v1487 = vsel %vm1298, %v1480, 0
    %v1489 = vsel %vm1298, %v1482, 0
    %v1491 = vsel %vm1298, %v1484, 0
    %1493 = vmatpush.xpose.msra.mxu0 0.0
    %1494 = vmatpush.xpose.msra.mxu0 0.0
    %1495 = vmatpush.xpose.msra.mxu0 0.0
    %1496 = vmatpush.xpose.msra.mxu0 0.0
    %1497 = vmatpush.xpose.msra.mxu0 0.0
    %1498 = vmatpush.xpose.msra.mxu0 0.0
    %1499 = vmatpush.xpose.msra.mxu0 0.0
    %1500 = vmatpush.xpose.msra.mxu0 0.0
    %1501 = vmatpush.xpose.msra.mxu0 0.0
    %1502 = vmatpush.xpose.msra.mxu0 0.0
    %1503 = vmatpush.xpose.msra.mxu0 0.0
    %1504 = vmatpush.xpose.msra.mxu0 0.0
    %1505 = vmatpush.xpose.msra.mxu0 0.0
    %1506 = vmatpush.xpose.msra.mxu0 0.0
    %1507 = vmatpush.xpose.msra.mxu0 %v1491
    %1508 = vmatpush.xpose.msra.mxu0 %v1489
    %1509 = vmatmul.f32.gmra.mxu0 %v1485
    %v1510 = vpop.f32.mrf.mxu0
    %v1511 = vadd.f32 0.0, %v1510
    %1512 = vmatmul.f32.gmra.mxu0 %v1487
    %v1513 = vpop.f32.mrf.mxu0
    %v1514 = vadd.f32 0.0, %v1513
    %1515 = vdwg.mxu0
    %v1516 = vmul.f32 %v1511, 0.25
    %v1517 = vmul.f32 %v1514, 0.25
    %v1518 = vadd.f32 %v1516, %v1170
    %v1519 = vadd.f32 %v1517, %v1171
    %v1520 = vsel %vm1298, %v1518, -inf
    %1521 = vmax.xlane.f32.xlu0 %v1520
    %v1522 = vpop.xlane.xlu0 %1521
    %v1523 = vsel %vm1298, %v1519, -inf
    %1524 = vmax.xlane.f32.xlu0 %v1523
    %v1525 = vpop.xlane.xlu0 %1524
    %v1526 = vsub.f32 %v1518, %v1522
    %v1527 = vsub.f32 %v1519, %v1525
    %v1528 = vmul.f32 %v1526, 1.442695
    %v1529 = vpow.pop %v1528
    %v1530 = vmul.f32 %v1527, 1.442695
    %v1531 = vpow.pop %v1530
    %v1532 = vsel %vm1298, %v1529, 0.0
    %1533 = vadd.xlane.f32.xlu0 %v1532
    %v1534 = vpop.xlane.xlu0 %1533
    %v1535 = vsel %vm1298, %v1531, 0.0
    %1536 = vadd.xlane.f32.xlu0 %v1535
    %v1537 = vpop.xlane.xlu0 %1536
    %v1538 = vrcp.pop %v1534
    %v1539 = vrcp.pop %v1537
    %v1540 = vmul.f32 %v1529, %v1538
    %v1541 = vmul.f32 %v1531, %v1539
    %1542 = vrot.lane.b32.xlu0 %v1290, 16
    %v1543 = vpop.permute.xlu0 %1542
    %1544 = vrot.lane.b32.xlu0 %v1291, 16
    %v1545 = vpop.permute.xlu0 %1544
    %v1549 = vsel %vm1298, %v1540, 0
    %v1552 = vsel %vm1298, %v1541, 0
    %1554 = vmatpush.msra.mxu0 0.0
    %1555 = vmatpush.msra.mxu0 0.0
    %1556 = vmatpush.msra.mxu0 0.0
    %1557 = vmatpush.msra.mxu0 0.0
    %1558 = vmatpush.msra.mxu0 0.0
    %1559 = vmatpush.msra.mxu0 0.0
    %1560 = vmatpush.msra.mxu0 0.0
    %1561 = vmatpush.msra.mxu0 0.0
    %1562 = vmatpush.msra.mxu0 0.0
    %1563 = vmatpush.msra.mxu0 0.0
    %1564 = vmatpush.msra.mxu0 0.0
    %1565 = vmatpush.msra.mxu0 0.0
    %1566 = vmatpush.msra.mxu0 0.0
    %1567 = vmatpush.msra.mxu0 0.0
    %1568 = vmatpush.msra.mxu0 %v1545
    %1569 = vmatpush.msra.mxu0 %v1543
    %1570 = vmatmul.f32.gmra.mxu0 %v1549
    %v1571 = vpop.f32.mrf.mxu0
    %v1572 = vadd.f32 0.0, %v1571
    %1573 = vmatmul.f32.gmra.mxu0 %v1552
    %v1574 = vpop.f32.mrf.mxu0
    %v1575 = vadd.f32 0.0, %v1574
    %1576 = vdwg.mxu0
    %1577 = vrot.lane.b32.xlu0 %v1290, 80
    %v1578 = vpop.permute.xlu0 %1577
    %1579 = vrot.lane.b32.xlu0 %v1291, 80
    %v1580 = vpop.permute.xlu0 %1579
    %v1581 = vsel %vm1298, %v1578, 0
    %v1583 = vsel %vm1298, %v1580, 0
    %1585 = vmatpush.xpose.msra.mxu0 0.0
    %1586 = vmatpush.xpose.msra.mxu0 0.0
    %1587 = vmatpush.xpose.msra.mxu0 0.0
    %1588 = vmatpush.xpose.msra.mxu0 0.0
    %1589 = vmatpush.xpose.msra.mxu0 0.0
    %1590 = vmatpush.xpose.msra.mxu0 0.0
    %1591 = vmatpush.xpose.msra.mxu0 0.0
    %1592 = vmatpush.xpose.msra.mxu0 0.0
    %1593 = vmatpush.xpose.msra.mxu0 0.0
    %1594 = vmatpush.xpose.msra.mxu0 0.0
    %1595 = vmatpush.xpose.msra.mxu0 0.0
    %1596 = vmatpush.xpose.msra.mxu0 0.0
    %1597 = vmatpush.xpose.msra.mxu0 0.0
    %1598 = vmatpush.xpose.msra.mxu0 0.0
    %1599 = vmatpush.xpose.msra.mxu0 %v1491
    %1600 = vmatpush.xpose.msra.mxu0 %v1489
    %1601 = vmatmul.f32.gmra.mxu0 %v1581
    %v1602 = vpop.f32.mrf.mxu0
    %v1603 = vadd.f32 0.0, %v1602
    %1604 = vmatmul.f32.gmra.mxu0 %v1583
    %v1605 = vpop.f32.mrf.mxu0
    %v1606 = vadd.f32 0.0, %v1605
    %1607 = vdwg.mxu0
    %v1608 = vmul.f32 %v1603, 0.25
    %v1609 = vmul.f32 %v1606, 0.25
    %v1610 = vadd.f32 %v1608, %v1170
    %v1611 = vadd.f32 %v1609, %v1171
    %v1612 = vsel %vm1298, %v1610, -inf
    %1613 = vmax.xlane.f32.xlu0 %v1612
    %v1614 = vpop.xlane.xlu0 %1613
    %v1615 = vsel %vm1298, %v1611, -inf
    %1616 = vmax.xlane.f32.xlu0 %v1615
    %v1617 = vpop.xlane.xlu0 %1616
    %v1618 = vsub.f32 %v1610, %v1614
    %v1619 = vsub.f32 %v1611, %v1617
    %v1620 = vmul.f32 %v1618, 1.442695
    %v1621 = vpow.pop %v1620
    %v1622 = vmul.f32 %v1619, 1.442695
    %v1623 = vpow.pop %v1622
    %v1624 = vsel %vm1298, %v1621, 0.0
    %1625 = vadd.xlane.f32.xlu0 %v1624
    %v1626 = vpop.xlane.xlu0 %1625
    %v1627 = vsel %vm1298, %v1623, 0.0
    %1628 = vadd.xlane.f32.xlu0 %v1627
    %v1629 = vpop.xlane.xlu0 %1628
    %v1630 = vrcp.pop %v1626
    %v1631 = vrcp.pop %v1629
    %v1632 = vmul.f32 %v1621, %v1630
    %v1633 = vmul.f32 %v1623, %v1631
    %v1635 = vsel %vm1298, %v1632, 0
    %v1638 = vsel %vm1298, %v1633, 0
    %1640 = vmatpush.msra.mxu0 0.0
    %1641 = vmatpush.msra.mxu0 0.0
    %1642 = vmatpush.msra.mxu0 0.0
    %1643 = vmatpush.msra.mxu0 0.0
    %1644 = vmatpush.msra.mxu0 0.0
    %1645 = vmatpush.msra.mxu0 0.0
    %1646 = vmatpush.msra.mxu0 0.0
    %1647 = vmatpush.msra.mxu0 0.0
    %1648 = vmatpush.msra.mxu0 0.0
    %1649 = vmatpush.msra.mxu0 0.0
    %1650 = vmatpush.msra.mxu0 0.0
    %1651 = vmatpush.msra.mxu0 0.0
    %1652 = vmatpush.msra.mxu0 0.0
    %1653 = vmatpush.msra.mxu0 0.0
    %1654 = vmatpush.msra.mxu0 %v1545
    %1655 = vmatpush.msra.mxu0 %v1543
    %1656 = vmatmul.f32.gmra.mxu0 %v1635
    %v1657 = vpop.f32.mrf.mxu0
    %v1658 = vadd.f32 0.0, %v1657
    %1659 = vmatmul.f32.gmra.mxu0 %v1638
    %v1660 = vpop.f32.mrf.mxu0
    %v1661 = vadd.f32 0.0, %v1660
    %1662 = vdwg.mxu0
    %1665 = vrot.lane.b32.xlu0 %v1472, 16
    %v1666 = vpop.permute.xlu0 %1665
    %1667 = vrot.lane.b32.xlu0 %v1475, 16
    %v1668 = vpop.permute.xlu0 %1667
    %1673 = vrot.lane.b32.xlu0 %v1572, 32
    %v1674 = vpop.permute.xlu0 %1673
    %1675 = vrot.lane.b32.xlu0 %v1575, 32
    %v1676 = vpop.permute.xlu0 %1675
    %1681 = vrot.lane.b32.xlu0 %v1658, 48
    %v1682 = vpop.permute.xlu0 %1681
    %1683 = vrot.lane.b32.xlu0 %v1661, 48
    %v1684 = vpop.permute.xlu0 %1683
    %v1687 = vsel %vm1298, %v1386, %v1666
    %v1688 = vsel %vm1298, %v1389, %v1668
    %v1689 = vsel %vm467, %v1687, %v1674
    %v1690 = vsel %vm467, %v1688, %v1676
    %vm1691 = vcmask 392192
    %v1692 = vsel %vm1691, %v1689, %v1682
    %v1693 = vsel %vm1691, %v1690, %v1684
    %v1694 = vld [vmem:[%s3 + $0x290] sm:$0xff]
    %v1695 = vld [vmem:[%s3 + $0x298] sm:$0xff]
    %v1696 = vld [vmem:[%s3 + $0x2a0] sm:$0xff]
    %v1697 = vld [vmem:[%s3 + $0x2a8] sm:$0xff]
    %v1698 = vld [vmem:[%s3 + $0x2b0] sm:$0xff]
    %v1699 = vld [vmem:[%s3 + $0x2b8] sm:$0xff]
    %v1700 = vld [vmem:[%s3 + $0x2c0] sm:$0xff]
    %v1701 = vld [vmem:[%s3 + $0x2c8] sm:$0xff]
    %v1703 = vsel %vm1175, %v1692, 0
    %v1706 = vsel %vm1175, %v1693, 0
    %1708 = vmatpush.msra.mxu0 0.0
    %1709 = vmatpush.msra.mxu0 0.0
    %1710 = vmatpush.msra.mxu0 0.0
    %1711 = vmatpush.msra.mxu0 0.0
    %1712 = vmatpush.msra.mxu0 0.0
    %1713 = vmatpush.msra.mxu0 0.0
    %1714 = vmatpush.msra.mxu0 0.0
    %1715 = vmatpush.msra.mxu0 0.0
    %1716 = vmatpush.msra.mxu0 %v1701
    %1717 = vmatpush.msra.mxu0 %v1700
    %1718 = vmatpush.msra.mxu0 %v1699
    %1719 = vmatpush.msra.mxu0 %v1698
    %1720 = vmatpush.msra.mxu0 %v1697
    %1721 = vmatpush.msra.mxu0 %v1696
    %1722 = vmatpush.msra.mxu0 %v1695
    %1723 = vmatpush.msra.mxu0 %v1694
    %1724 = vmatmul.f32.gmra.mxu0 %v1703
    %v1725 = vpop.f32.mrf.mxu0
    %v1726 = vadd.f32 0.0, %v1725
    %1727 = vmatmul.f32.gmra.mxu0 %v1706
    %v1728 = vpop.f32.mrf.mxu0
    %v1729 = vadd.f32 0.0, %v1728
    %1730 = vdwg.mxu0
    %v1731 = vadd.f32 %v1164, %v1726
    %v1732 = vadd.f32 %v1165, %v1729
    %v1733 = vld [vmem:[%s3 + $0x358] sm:$0x1]
    %v1734 = vmul.f32 %v1731, %v1731
    %v1735 = vmul.f32 %v1732, %v1732
    %v1736 = vsel %vm1175, %v1734, 0.0
    %1737 = vadd.xlane.f32.xlu0 %v1736
    %v1738 = vpop.xlane.xlu0 %1737
    %v1739 = vsel %vm1175, %v1735, 0.0
    %1740 = vadd.xlane.f32.xlu0 %v1739
    %v1741 = vpop.xlane.xlu0 %1740
    %v1742 = vmul.f32 %v1738, %v1188
    %v1743 = vmul.f32 %v1741, %v1188
    %v1744 = vadd.f32 %v1742, 1e-05
    %v1745 = vadd.f32 %v1743, 1e-05
    %v1746 = vrsqrt.pop %v1744
    %v1747 = vmul.f32 %v1746, %v1744
    %v1748 = vmul.f32 %v1747, %v1746
    %v1749 = vmul.f32 0.5, %v1748
    %v1750 = vsub.f32 1.5, %v1749
    %v1751 = vmul.f32 %v1746, %v1750
    %vm1752 = vweird.f32 %v1744
    %vm1753 = vweird.f32 %v1746
    %vm1754 = vmor %vm1752, %vm1753
    %v1755 = vsel %vm1754, %v1746, %v1751
    %v1756 = vrsqrt.pop %v1745
    %v1757 = vmul.f32 %v1756, %v1745
    %v1758 = vmul.f32 %v1757, %v1756
    %v1759 = vmul.f32 0.5, %v1758
    %v1760 = vsub.f32 1.5, %v1759
    %v1761 = vmul.f32 %v1756, %v1760
    %vm1762 = vweird.f32 %v1745
    %vm1763 = vweird.f32 %v1756
    %vm1764 = vmor %vm1762, %vm1763
    %v1765 = vsel %vm1764, %v1756, %v1761
    %v1766 = vmul.f32 %v1731, %v1755
    %v1767 = vmul.f32 %v1732, %v1765
    %v1768 = vperm.slane %v1733, 0
    %v1769 = vmul.f32 %v1766, %v1768
    %v1770 = vmul.f32 %v1767, %v1768
    %v1771 = vld [vmem:[#allocation2 + $0xa0] sm:$0xff]
    %v1772 = vld [vmem:[#allocation2 + $0xa8] sm:$0xff]
    %v1773 = vld [vmem:[#allocation2 + $0xb0] sm:$0xff]
    %v1774 = vld [vmem:[#allocation2 + $0xb8] sm:$0xff]
    %v1775 = vld [vmem:[#allocation2 + $0xc0] sm:$0xff]
    %v1776 = vld [vmem:[#allocation2 + $0xc8] sm:$0xff]
    %v1777 = vld [vmem:[#allocation2 + $0xd0] sm:$0xff]
    %v1778 = vld [vmem:[#allocation2 + $0xd8] sm:$0xff]
    %v1779 = vld [vmem:[#allocation2 + $0xe0] sm:$0xff]
    %v1780 = vld [vmem:[#allocation2 + $0xe8] sm:$0xff]
    %v1781 = vld [vmem:[#allocation2 + $0xf0] sm:$0xff]
    %v1782 = vld [vmem:[#allocation2 + $0xf8] sm:$0xff]
    %v1783 = vld [vmem:[#allocation2 + $0x100] sm:$0xff]
    %v1784 = vld [vmem:[#allocation2 + $0x108] sm:$0xff]
    %v1785 = vld [vmem:[#allocation2 + $0x110] sm:$0xff]
    %v1786 = vld [vmem:[#allocation2 + $0x118] sm:$0xff]
    %v1788 = vsel %vm1175, %v1769, 0
    %v1791 = vsel %vm1175, %v1770, 0
    %1793 = vmatpush.msra.mxu0 0.0
    %1794 = vmatpush.msra.mxu0 0.0
    %1795 = vmatpush.msra.mxu0 0.0
    %1796 = vmatpush.msra.mxu0 0.0
    %1797 = vmatpush.msra.mxu0 0.0
    %1798 = vmatpush.msra.mxu0 0.0
    %1799 = vmatpush.msra.mxu0 0.0
    %1800 = vmatpush.msra.mxu0 0.0
    %1801 = vmatpush.msra.mxu0 %v1785
    %1802 = vmatpush.msra.mxu0 %v1783
    %1803 = vmatpush.msra.mxu0 %v1781
    %1804 = vmatpush.msra.mxu0 %v1779
    %1805 = vmatpush.msra.mxu0 %v1777
    %1806 = vmatpush.msra.mxu0 %v1775
    %1807 = vmatpush.msra.mxu0 %v1773
    %1808 = vmatpush.msra.mxu0 %v1771
    %1809 = vmatmul.f32.gmra.mxu0 %v1788
    %v1810 = vpop.f32.mrf.mxu0
    %v1811 = vadd.f32 0.0, %v1810
    %1812 = vmatmul.f32.gmra.mxu0 %v1791
    %v1813 = vpop.f32.mrf.mxu0
    %v1814 = vadd.f32 0.0, %v1813
    %1815 = vdwg.mxu0
    %1816 = vmatpush.msra.mxu0 0.0
    %1817 = vmatpush.msra.mxu0 0.0
    %1818 = vmatpush.msra.mxu0 0.0
    %1819 = vmatpush.msra.mxu0 0.0
    %1820 = vmatpush.msra.mxu0 0.0
    %1821 = vmatpush.msra.mxu0 0.0
    %1822 = vmatpush.msra.mxu0 0.0
    %1823 = vmatpush.msra.mxu0 0.0
    %1824 = vmatpush.msra.mxu0 %v1786
    %1825 = vmatpush.msra.mxu0 %v1784
    %1826 = vmatpush.msra.mxu0 %v1782
    %1827 = vmatpush.msra.mxu0 %v1780
    %1828 = vmatpush.msra.mxu0 %v1778
    %1829 = vmatpush.msra.mxu0 %v1776
    %1830 = vmatpush.msra.mxu0 %v1774
    %1831 = vmatpush.msra.mxu0 %v1772
    %1832 = vmatmul.f32.gmra.mxu0 %v1788
    %v1833 = vpop.f32.mrf.mxu0
    %v1834 = vadd.f32 0.0, %v1833
    %1835 = vmatmul.f32.gmra.mxu0 %v1791
    %v1836 = vpop.f32.mrf.mxu0
    %v1837 = vadd.f32 0.0, %v1836
    %1838 = vdwg.mxu0
    %v1839 = vxor.u32 %v1811, 2147483648
    %v1840 = vxor.u32 %v1814, 2147483648
    %v1841 = vmul.f32 %v1839, 1.442695
    %v1842 = vpow.pop %v1841
    %v1843 = vmul.f32 %v1840, 1.442695
    %v1844 = vpow.pop %v1843
    %v1845 = vadd.f32 %v1842, 1.0
    %v1846 = vadd.f32 %v1844, 1.0
    %v1847 = vrcp.pop %v1845
    %v1848 = vmul.f32 %v1845, %v1847
    %v1849 = vsub.f32 1.0, %v1848
    %v1850 = vmul.f32 %v1847, %v1849
    %v1851 = vadd.f32 %v1847, %v1850
    %vm1852 = vweird.f32 %v1845
    %vm1853 = vweird.f32 %v1847
    %vm1854 = vmor %vm1852, %vm1853
    %v1855 = vsel %vm1854, %v1847, %v1851
    %v1856 = vand.u32 2147483647, %v1845
    %vm1857 = vcmp.eq.f32.partialorder %v1856, 8.507059e+37
    %v1858 = vand.u32 %v1845, 2147483648
    %v1859 = vor.u32 1.1754944e-38, %v1858
    %v1860 = vsel %vm1857, %v1859, %v1855
    %v1861 = vmul.f32 1.0, %v1860
    %v1862 = vrcp.pop %v1846
    %v1863 = vmul.f32 %v1846, %v1862
    %v1864 = vsub.f32 1.0, %v1863
    %v1865 = vmul.f32 %v1862, %v1864
    %v1866 = vadd.f32 %v1862, %v1865
    %vm1867 = vweird.f32 %v1846
    %vm1868 = vweird.f32 %v1862
    %vm1869 = vmor %vm1867, %vm1868
    %v1870 = vsel %vm1869, %v1862, %v1866
    %v1871 = vand.u32 2147483647, %v1846
    %vm1872 = vcmp.eq.f32.partialorder %v1871, 8.507059e+37
    %v1873 = vand.u32 %v1846, 2147483648
    %v1874 = vor.u32 1.1754944e-38, %v1873
    %v1875 = vsel %vm1872, %v1874, %v1870
    %v1876 = vmul.f32 1.0, %v1875
    %v1877 = vmul.f32 %v1811, %v1861
    %v1878 = vmul.f32 %v1814, %v1876
    %v1879 = vmul.f32 %v1877, %v1834
    %v1880 = vmul.f32 %v1878, %v1837
    %v1881 = vld [vmem:[%s3 + $0x2d0] sm:$0xff]
    %v1882 = vld [vmem:[%s3 + $0x2d8] sm:$0xff]
    %v1883 = vld [vmem:[%s3 + $0x2e0] sm:$0xff]
    %v1884 = vld [vmem:[%s3 + $0x2e8] sm:$0xff]
    %v1885 = vld [vmem:[%s3 + $0x2f0] sm:$0xff]
    %v1886 = vld [vmem:[%s3 + $0x2f8] sm:$0xff]
    %v1887 = vld [vmem:[%s3 + $0x300] sm:$0xff]
    %v1888 = vld [vmem:[%s3 + $0x308] sm:$0xff]
    %v1889 = vld [vmem:[%s3 + $0x310] sm:$0xff]
    %v1890 = vld [vmem:[%s3 + $0x318] sm:$0xff]
    %v1891 = vld [vmem:[%s3 + $0x320] sm:$0xff]
    %v1892 = vld [vmem:[%s3 + $0x328] sm:$0xff]
    %v1893 = vld [vmem:[%s3 + $0x330] sm:$0xff]
    %v1894 = vld [vmem:[%s3 + $0x338] sm:$0xff]
    %v1895 = vld [vmem:[%s3 + $0x340] sm:$0xff]
    %v1896 = vld [vmem:[%s3 + $0x348] sm:$0xff]
    %1897 = vmatpush.msra.mxu0 %v1896
    %1898 = vmatpush.msra.mxu0 %v1895
    %1899 = vmatpush.msra.mxu0 %v1894
    %1900 = vmatpush.msra.mxu0 %v1893
    %1901 = vmatpush.msra.mxu0 %v1892
    %1902 = vmatpush.msra.mxu0 %v1891
    %1903 = vmatpush.msra.mxu0 %v1890
    %1904 = vmatpush.msra.mxu0 %v1889
    %1905 = vmatpush.msra.mxu0 %v1888
    %1906 = vmatpush.msra.mxu0 %v1887
    %1907 = vmatpush.msra.mxu0 %v1886
    %1908 = vmatpush.msra.mxu0 %v1885
    %1909 = vmatpush.msra.mxu0 %v1884
    %1910 = vmatpush.msra.mxu0 %v1883
    %1911 = vmatpush.msra.mxu0 %v1882
    %1912 = vmatpush.msra.mxu0 %v1881
    %1913 = vmatmul.f32.gmra.mxu0 %v1879
    %v1914 = vpop.f32.mrf.mxu0
    %v1915 = vadd.f32 0.0, %v1914
    %1916 = vmatmul.f32.gmra.mxu0 %v1880
    %v1917 = vpop.f32.mrf.mxu0
    %v1918 = vadd.f32 0.0, %v1917
    %1919 = vdwg.mxu0
    %v1920 = vadd.f32 %v1731, %v1915
    %v1921 = vadd.f32 %v1732, %v1918
    %v1922 = vld [vmem:[%s3 + $0x420] sm:$0x1]
    %v1923 = vmul.f32 %v1920, %v1920
    %v1924 = vmul.f32 %v1921, %v1921
    %v1925 = vsel %vm1175, %v1923, 0.0
    %1926 = vadd.xlane.f32.xlu0 %v1925
    %v1927 = vpop.xlane.xlu0 %1926
    %v1928 = vsel %vm1175, %v1924, 0.0
    %1929 = vadd.xlane.f32.xlu0 %v1928
    %v1930 = vpop.xlane.xlu0 %1929
    %v1931 = vmul.f32 %v1927, %v1188
    %v1932 = vmul.f32 %v1930, %v1188
    %v1933 = vadd.f32 %v1931, 1e-05
    %v1934 = vadd.f32 %v1932, 1e-05
    %v1935 = vrsqrt.pop %v1933
    %v1936 = vmul.f32 %v1935, %v1933
    %v1937 = vmul.f32 %v1936, %v1935
    %v1938 = vmul.f32 0.5, %v1937
    %v1939 = vsub.f32 1.5, %v1938
    %v1940 = vmul.f32 %v1935, %v1939
    %vm1941 = vweird.f32 %v1933
    %vm1942 = vweird.f32 %v1935
    %vm1943 = vmor %vm1941, %vm1942
    %v1944 = vsel %vm1943, %v1935, %v1940
    %v1945 = vrsqrt.pop %v1934
    %v1946 = vmul.f32 %v1945, %v1934
    %v1947 = vmul.f32 %v1946, %v1945
    %v1948 = vmul.f32 0.5, %v1947
    %v1949 = vsub.f32 1.5, %v1948
    %v1950 = vmul.f32 %v1945, %v1949
    %vm1951 = vweird.f32 %v1934
    %vm1952 = vweird.f32 %v1945
    %vm1953 = vmor %vm1951, %vm1952
    %v1954 = vsel %vm1953, %v1945, %v1950
    %v1955 = vmul.f32 %v1920, %v1944
    %v1956 = vmul.f32 %v1921, %v1954
    %v1957 = vperm.slane %v1922, 0
    %v1958 = vmul.f32 %v1955, %v1957
    %v1959 = vmul.f32 %v1956, %v1957
    %v1960 = vld [vmem:[#allocation2 + $0x120] sm:$0xff]
    %v1961 = vld [vmem:[#allocation2 + $0x128] sm:$0xff]
    %v1962 = vld [vmem:[#allocation2 + $0x130] sm:$0xff]
    %v1963 = vld [vmem:[#allocation2 + $0x138] sm:$0xff]
    %v1964 = vld [vmem:[#allocation2 + $0x140] sm:$0xff]
    %v1965 = vld [vmem:[#allocation2 + $0x148] sm:$0xff]
    %v1966 = vld [vmem:[#allocation2 + $0x150] sm:$0xff]
    %v1967 = vld [vmem:[#allocation2 + $0x158] sm:$0xff]
    %v1968 = vld [vmem:[#allocation2 + $0x160] sm:$0xff]
    %v1969 = vld [vmem:[#allocation2 + $0x168] sm:$0xff]
    %v1970 = vld [vmem:[#allocation2 + $0x170] sm:$0xff]
    %v1971 = vld [vmem:[#allocation2 + $0x178] sm:$0xff]
    %v1972 = vld [vmem:[#allocation2 + $0x180] sm:$0xff]
    %v1973 = vld [vmem:[#allocation2 + $0x188] sm:$0xff]
    %v1974 = vld [vmem:[#allocation2 + $0x190] sm:$0xff]
    %v1975 = vld [vmem:[#allocation2 + $0x198] sm:$0xff]
    %v1977 = vsel %vm1175, %v1958, 0
    %v1980 = vsel %vm1175, %v1959, 0
    %1982 = vmatpush.msra.mxu0 0.0
    %1983 = vmatpush.msra.mxu0 0.0
    %1984 = vmatpush.msra.mxu0 0.0
    %1985 = vmatpush.msra.mxu0 0.0
    %1986 = vmatpush.msra.mxu0 0.0
    %1987 = vmatpush.msra.mxu0 0.0
    %1988 = vmatpush.msra.mxu0 0.0
    %1989 = vmatpush.msra.mxu0 0.0
    %1990 = vmatpush.msra.mxu0 %v1974
    %1991 = vmatpush.msra.mxu0 %v1972
    %1992 = vmatpush.msra.mxu0 %v1970
    %1993 = vmatpush.msra.mxu0 %v1968
    %1994 = vmatpush.msra.mxu0 %v1966
    %1995 = vmatpush.msra.mxu0 %v1964
    %1996 = vmatpush.msra.mxu0 %v1962
    %1997 = vmatpush.msra.mxu0 %v1960
    %1998 = vmatmul.f32.gmra.mxu0 %v1977
    %v1999 = vpop.f32.mrf.mxu0
    %v2000 = vadd.f32 0.0, %v1999
    %2001 = vmatmul.f32.gmra.mxu0 %v1980
    %v2002 = vpop.f32.mrf.mxu0
    %v2003 = vadd.f32 0.0, %v2002
    %2004 = vdwg.mxu0
    %2005 = vmatpush.msra.mxu0 0.0
    %2006 = vmatpush.msra.mxu0 0.0
    %2007 = vmatpush.msra.mxu0 0.0
    %2008 = vmatpush.msra.mxu0 0.0
    %2009 = vmatpush.msra.mxu0 0.0
    %2010 = vmatpush.msra.mxu0 0.0
    %2011 = vmatpush.msra.mxu0 0.0
    %2012 = vmatpush.msra.mxu0 0.0
    %2013 = vmatpush.msra.mxu0 %v1975
    %2014 = vmatpush.msra.mxu0 %v1973
    %2015 = vmatpush.msra.mxu0 %v1971
    %2016 = vmatpush.msra.mxu0 %v1969
    %2017 = vmatpush.msra.mxu0 %v1967
    %2018 = vmatpush.msra.mxu0 %v1965
    %2019 = vmatpush.msra.mxu0 %v1963
    %2020 = vmatpush.msra.mxu0 %v1961
    %2021 = vmatmul.f32.gmra.mxu0 %v1977
    %v2022 = vpop.f32.mrf.mxu0
    %v2023 = vadd.f32 0.0, %v2022
    %2024 = vmatmul.f32.gmra.mxu0 %v1980
    %v2025 = vpop.f32.mrf.mxu0
    %v2026 = vadd.f32 0.0, %v2025
    %2027 = vdwg.mxu0
    %v2028 = vmul.f32 %v2000, %v1166
    %v2029 = vmul.f32 %v2003, %v1168
    %v2030 = vmul.f32 %v2023, %v1167
    %v2031 = vmul.f32 %v2026, %v1169
    %v2032 = vadd.f32 %v2028, %v2030
    %v2033 = vadd.f32 %v2029, %v2031
    %2036 = vrot.lane.b32.xlu0 %v2032, 64
    %v2037 = vpop.permute.xlu0 %2036
    %2038 = vrot.lane.b32.xlu0 %v2033, 64
    %v2039 = vpop.permute.xlu0 %2038
    %v2040 = vsel %vm1298, %v2032, 0
    %v2042 = vsel %vm1298, %v2033, 0
    %v2044 = vsel %vm1298, %v2037, 0
    %v2046 = vsel %vm1298, %v2039, 0
    %2048 = vmatpush.xpose.msra.mxu0 0.0
    %2049 = vmatpush.xpose.msra.mxu0 0.0
    %2050 = vmatpush.xpose.msra.mxu0 0.0
    %2051 = vmatpush.xpose.msra.mxu0 0.0
    %2052 = vmatpush.xpose.msra.mxu0 0.0
    %2053 = vmatpush.xpose.msra.mxu0 0.0
    %2054 = vmatpush.xpose.msra.mxu0 0.0
    %2055 = vmatpush.xpose.msra.mxu0 0.0
    %2056 = vmatpush.xpose.msra.mxu0 0.0
    %2057 = vmatpush.xpose.msra.mxu0 0.0
    %2058 = vmatpush.xpose.msra.mxu0 0.0
    %2059 = vmatpush.xpose.msra.mxu0 0.0
    %2060 = vmatpush.xpose.msra.mxu0 0.0
    %2061 = vmatpush.xpose.msra.mxu0 0.0
    %2062 = vmatpush.xpose.msra.mxu0 %v2046
    %2063 = vmatpush.xpose.msra.mxu0 %v2044
    %2064 = vmatmul.f32.gmra.mxu0 %v2040
    %v2065 = vpop.f32.mrf.mxu0
    %v2066 = vadd.f32 0.0, %v2065
    %2067 = vmatmul.f32.gmra.mxu0 %v2042
    %v2068 = vpop.f32.mrf.mxu0
    %v2069 = vadd.f32 0.0, %v2068
    %2070 = vdwg.mxu0
    %v2071 = vmul.f32 %v2066, 0.25
    %v2072 = vmul.f32 %v2069, 0.25
    %v2073 = vadd.f32 %v2071, %v1170
    %v2074 = vadd.f32 %v2072, %v1171
    %v2075 = vsel %vm1298, %v2073, -inf
    %2076 = vmax.xlane.f32.xlu0 %v2075
    %v2077 = vpop.xlane.xlu0 %2076
    %v2078 = vsel %vm1298, %v2074, -inf
    %2079 = vmax.xlane.f32.xlu0 %v2078
    %v2080 = vpop.xlane.xlu0 %2079
    %v2081 = vsub.f32 %v2073, %v2077
    %v2082 = vsub.f32 %v2074, %v2080
    %v2083 = vmul.f32 %v2081, 1.442695
    %v2084 = vpow.pop %v2083
    %v2085 = vmul.f32 %v2082, 1.442695
    %v2086 = vpow.pop %v2085
    %v2087 = vsel %vm1298, %v2084, 0.0
    %2088 = vadd.xlane.f32.xlu0 %v2087
    %v2089 = vpop.xlane.xlu0 %2088
    %v2090 = vsel %vm1298, %v2086, 0.0
    %2091 = vadd.xlane.f32.xlu0 %v2090
    %v2092 = vpop.xlane.xlu0 %2091
    %v2093 = vrcp.pop %v2089
    %v2094 = vrcp.pop %v2092
    %v2095 = vmul.f32 %v2084, %v2093
    %v2096 = vmul.f32 %v2086, %v2094
    %2097 = vrot.lane.b32.xlu0 %v2032, 32
    %v2098 = vpop.permute.xlu0 %2097
    %2099 = vrot.lane.b32.xlu0 %v2033, 32
    %v2100 = vpop.permute.xlu0 %2099
    %v2104 = vsel %vm1298, %v2095, 0
    %v2107 = vsel %vm1298, %v2096, 0
    %2109 = vmatpush.msra.mxu0 0.0
    %2110 = vmatpush.msra.mxu0 0.0
    %2111 = vmatpush.msra.mxu0 0.0
    %2112 = vmatpush.msra.mxu0 0.0
    %2113 = vmatpush.msra.mxu0 0.0
    %2114 = vmatpush.msra.mxu0 0.0
    %2115 = vmatpush.msra.mxu0 0.0
    %2116 = vmatpush.msra.mxu0 0.0
    %2117 = vmatpush.msra.mxu0 0.0
    %2118 = vmatpush.msra.mxu0 0.0
    %2119 = vmatpush.msra.mxu0 0.0
    %2120 = vmatpush.msra.mxu0 0.0
    %2121 = vmatpush.msra.mxu0 0.0
    %2122 = vmatpush.msra.mxu0 0.0
    %2123 = vmatpush.msra.mxu0 %v2100
    %2124 = vmatpush.msra.mxu0 %v2098
    %2125 = vmatmul.f32.gmra.mxu0 %v2104
    %v2126 = vpop.f32.mrf.mxu0
    %v2127 = vadd.f32 0.0, %v2126
    %2128 = vmatmul.f32.gmra.mxu0 %v2107
    %v2129 = vpop.f32.mrf.mxu0
    %v2130 = vadd.f32 0.0, %v2129
    %2131 = vdwg.mxu0
    %2132 = vrot.lane.b32.xlu0 %v2032, 112
    %v2133 = vpop.permute.xlu0 %2132
    %2134 = vrot.lane.b32.xlu0 %v2033, 112
    %v2135 = vpop.permute.xlu0 %2134
    %v2136 = vsel %vm1298, %v2133, 0
    %v2138 = vsel %vm1298, %v2135, 0
    %2140 = vmatpush.xpose.msra.mxu0 0.0
    %2141 = vmatpush.xpose.msra.mxu0 0.0
    %2142 = vmatpush.xpose.msra.mxu0 0.0
    %2143 = vmatpush.xpose.msra.mxu0 0.0
    %2144 = vmatpush.xpose.msra.mxu0 0.0
    %2145 = vmatpush.xpose.msra.mxu0 0.0
    %2146 = vmatpush.xpose.msra.mxu0 0.0
    %2147 = vmatpush.xpose.msra.mxu0 0.0
    %2148 = vmatpush.xpose.msra.mxu0 0.0
    %2149 = vmatpush.xpose.msra.mxu0 0.0
    %2150 = vmatpush.xpose.msra.mxu0 0.0
    %2151 = vmatpush.xpose.msra.mxu0 0.0
    %2152 = vmatpush.xpose.msra.mxu0 0.0
    %2153 = vmatpush.xpose.msra.mxu0 0.0
    %2154 = vmatpush.xpose.msra.mxu0 %v2046
    %2155 = vmatpush.xpose.msra.mxu0 %v2044
    %2156 = vmatmul.f32.gmra.mxu0 %v2136
    %v2157 = vpop.f32.mrf.mxu0
    %v2158 = vadd.f32 0.0, %v2157
    %2159 = vmatmul.f32.gmra.mxu0 %v2138
    %v2160 = vpop.f32.mrf.mxu0
    %v2161 = vadd.f32 0.0, %v2160
    %2162 = vdwg.mxu0
    %v2163 = vmul.f32 %v2158, 0.25
    %v2164 = vmul.f32 %v2161, 0.25
    %v2165 = vadd.f32 %v2163, %v1170
    %v2166 = vadd.f32 %v2164, %v1171
    %v2167 = vsel %vm1298, %v2165, -inf
    %2168 = vmax.xlane.f32.xlu0 %v2167
    %v2169 = vpop.xlane.xlu0 %2168
    %v2170 = vsel %vm1298, %v2166, -inf
    %2171 = vmax.xlane.f32.xlu0 %v2170
    %v2172 = vpop.xlane.xlu0 %2171
    %v2173 = vsub.f32 %v2165, %v2169
    %v2174 = vsub.f32 %v2166, %v2172
    %v2175 = vmul.f32 %v2173, 1.442695
    %v2176 = vpow.pop %v2175
    %v2177 = vmul.f32 %v2174, 1.442695
    %v2178 = vpow.pop %v2177
    %v2179 = vsel %vm1298, %v2176, 0.0
    %2180 = vadd.xlane.f32.xlu0 %v2179
    %v2181 = vpop.xlane.xlu0 %2180
    %v2182 = vsel %vm1298, %v2178, 0.0
    %2183 = vadd.xlane.f32.xlu0 %v2182
    %v2184 = vpop.xlane.xlu0 %2183
    %v2185 = vrcp.pop %v2181
    %v2186 = vrcp.pop %v2184
    %v2187 = vmul.f32 %v2176, %v2185
    %v2188 = vmul.f32 %v2178, %v2186
    %v2190 = vsel %vm1298, %v2187, 0
    %v2193 = vsel %vm1298, %v2188, 0
    %2195 = vmatpush.msra.mxu0 0.0
    %2196 = vmatpush.msra.mxu0 0.0
    %2197 = vmatpush.msra.mxu0 0.0
    %2198 = vmatpush.msra.mxu0 0.0
    %2199 = vmatpush.msra.mxu0 0.0
    %2200 = vmatpush.msra.mxu0 0.0
    %2201 = vmatpush.msra.mxu0 0.0
    %2202 = vmatpush.msra.mxu0 0.0
    %2203 = vmatpush.msra.mxu0 0.0
    %2204 = vmatpush.msra.mxu0 0.0
    %2205 = vmatpush.msra.mxu0 0.0
    %2206 = vmatpush.msra.mxu0 0.0
    %2207 = vmatpush.msra.mxu0 0.0
    %2208 = vmatpush.msra.mxu0 0.0
    %2209 = vmatpush.msra.mxu0 %v2100
    %2210 = vmatpush.msra.mxu0 %v2098
    %2211 = vmatmul.f32.gmra.mxu0 %v2190
    %v2212 = vpop.f32.mrf.mxu0
    %v2213 = vadd.f32 0.0, %v2212
    %2214 = vmatmul.f32.gmra.mxu0 %v2193
    %v2215 = vpop.f32.mrf.mxu0
    %v2216 = vadd.f32 0.0, %v2215
    %2217 = vdwg.mxu0
    %2218 = vrot.lane.b32.xlu0 %v2032, 96
    %v2219 = vpop.permute.xlu0 %2218
    %2220 = vrot.lane.b32.xlu0 %v2033, 96
    %v2221 = vpop.permute.xlu0 %2220
    %2222 = vrot.lane.b32.xlu0 %v2032, 48
    %v2223 = vpop.permute.xlu0 %2222
    %2224 = vrot.lane.b32.xlu0 %v2033, 48
    %v2225 = vpop.permute.xlu0 %2224
    %v2226 = vsel %vm1298, %v2219, 0
    %v2228 = vsel %vm1298, %v2221, 0
    %v2230 = vsel %vm1298, %v2223, 0
    %v2232 = vsel %vm1298, %v2225, 0
    %2234 = vmatpush.xpose.msra.mxu0 0.0
    %2235 = vmatpush.xpose.msra.mxu0 0.0
    %2236 = vmatpush.xpose.msra.mxu0 0.0
    %2237 = vmatpush.xpose.msra.mxu0 0.0
    %2238 = vmatpush.xpose.msra.mxu0 0.0
    %2239 = vmatpush.xpose.msra.mxu0 0.0
    %2240 = vmatpush.xpose.msra.mxu0 0.0
    %2241 = vmatpush.xpose.msra.mxu0 0.0
    %2242 = vmatpush.xpose.msra.mxu0 0.0
    %2243 = vmatpush.xpose.msra.mxu0 0.0
    %2244 = vmatpush.xpose.msra.mxu0 0.0
    %2245 = vmatpush.xpose.msra.mxu0 0.0
    %2246 = vmatpush.xpose.msra.mxu0 0.0
    %2247 = vmatpush.xpose.msra.mxu0 0.0
    %2248 = vmatpush.xpose.msra.mxu0 %v2232
    %2249 = vmatpush.xpose.msra.mxu0 %v2230
    %2250 = vmatmul.f32.gmra.mxu0 %v2226
    %v2251 = vpop.f32.mrf.mxu0
    %v2252 = vadd.f32 0.0, %v2251
    %2253 = vmatmul.f32.gmra.mxu0 %v2228
    %v2254 = vpop.f32.mrf.mxu0
    %v2255 = vadd.f32 0.0, %v2254
    %2256 = vdwg.mxu0
    %v2257 = vmul.f32 %v2252, 0.25
    %v2258 = vmul.f32 %v2255, 0.25
    %v2259 = vadd.f32 %v2257, %v1170
    %v2260 = vadd.f32 %v2258, %v1171
    %v2261 = vsel %vm1298, %v2259, -inf
    %2262 = vmax.xlane.f32.xlu0 %v2261
    %v2263 = vpop.xlane.xlu0 %2262
    %v2264 = vsel %vm1298, %v2260, -inf
    %2265 = vmax.xlane.f32.xlu0 %v2264
    %v2266 = vpop.xlane.xlu0 %2265
    %v2267 = vsub.f32 %v2259, %v2263
    %v2268 = vsub.f32 %v2260, %v2266
    %v2269 = vmul.f32 %v2267, 1.442695
    %v2270 = vpow.pop %v2269
    %v2271 = vmul.f32 %v2268, 1.442695
    %v2272 = vpow.pop %v2271
    %v2273 = vsel %vm1298, %v2270, 0.0
    %2274 = vadd.xlane.f32.xlu0 %v2273
    %v2275 = vpop.xlane.xlu0 %2274
    %v2276 = vsel %vm1298, %v2272, 0.0
    %2277 = vadd.xlane.f32.xlu0 %v2276
    %v2278 = vpop.xlane.xlu0 %2277
    %v2279 = vrcp.pop %v2275
    %v2280 = vrcp.pop %v2278
    %v2281 = vmul.f32 %v2270, %v2279
    %v2282 = vmul.f32 %v2272, %v2280
    %2283 = vrot.lane.b32.xlu0 %v2032, 16
    %v2284 = vpop.permute.xlu0 %2283
    %2285 = vrot.lane.b32.xlu0 %v2033, 16
    %v2286 = vpop.permute.xlu0 %2285
    %v2290 = vsel %vm1298, %v2281, 0
    %v2293 = vsel %vm1298, %v2282, 0
    %2295 = vmatpush.msra.mxu0 0.0
    %2296 = vmatpush.msra.mxu0 0.0
    %2297 = vmatpush.msra.mxu0 0.0
    %2298 = vmatpush.msra.mxu0 0.0
    %2299 = vmatpush.msra.mxu0 0.0
    %2300 = vmatpush.msra.mxu0 0.0
    %2301 = vmatpush.msra.mxu0 0.0
    %2302 = vmatpush.msra.mxu0 0.0
    %2303 = vmatpush.msra.mxu0 0.0
    %2304 = vmatpush.msra.mxu0 0.0
    %2305 = vmatpush.msra.mxu0 0.0
    %2306 = vmatpush.msra.mxu0 0.0
    %2307 = vmatpush.msra.mxu0 0.0
    %2308 = vmatpush.msra.mxu0 0.0
    %2309 = vmatpush.msra.mxu0 %v2286
    %2310 = vmatpush.msra.mxu0 %v2284
    %2311 = vmatmul.f32.gmra.mxu0 %v2290
    %v2312 = vpop.f32.mrf.mxu0
    %v2313 = vadd.f32 0.0, %v2312
    %2314 = vmatmul.f32.gmra.mxu0 %v2293
    %v2315 = vpop.f32.mrf.mxu0
    %v2316 = vadd.f32 0.0, %v2315
    %2317 = vdwg.mxu0
    %2318 = vrot.lane.b32.xlu0 %v2032, 80
    %v2319 = vpop.permute.xlu0 %2318
    %2320 = vrot.lane.b32.xlu0 %v2033, 80
    %v2321 = vpop.permute.xlu0 %2320
    %v2322 = vsel %vm1298, %v2319, 0
    %v2324 = vsel %vm1298, %v2321, 0
    %2326 = vmatpush.xpose.msra.mxu0 0.0
    %2327 = vmatpush.xpose.msra.mxu0 0.0
    %2328 = vmatpush.xpose.msra.mxu0 0.0
    %2329 = vmatpush.xpose.msra.mxu0 0.0
    %2330 = vmatpush.xpose.msra.mxu0 0.0
    %2331 = vmatpush.xpose.msra.mxu0 0.0
    %2332 = vmatpush.xpose.msra.mxu0 0.0
    %2333 = vmatpush.xpose.msra.mxu0 0.0
    %2334 = vmatpush.xpose.msra.mxu0 0.0
    %2335 = vmatpush.xpose.msra.mxu0 0.0
    %2336 = vmatpush.xpose.msra.mxu0 0.0
    %2337 = vmatpush.xpose.msra.mxu0 0.0
    %2338 = vmatpush.xpose.msra.mxu0 0.0
    %2339 = vmatpush.xpose.msra.mxu0 0.0
    %2340 = vmatpush.xpose.msra.mxu0 %v2232
    %2341 = vmatpush.xpose.msra.mxu0 %v2230
    %2342 = vmatmul.f32.gmra.mxu0 %v2322
    %v2343 = vpop.f32.mrf.mxu0
    %v2344 = vadd.f32 0.0, %v2343
    %2345 = vmatmul.f32.gmra.mxu0 %v2324
    %v2346 = vpop.f32.mrf.mxu0
    %v2347 = vadd.f32 0.0, %v2346
    %2348 = vdwg.mxu0
    %v2349 = vmul.f32 %v2344, 0.25
    %v2350 = vmul.f32 %v2347, 0.25
    %v2351 = vadd.f32 %v2349, %v1170
    %v2352 = vadd.f32 %v2350, %v1171
    %v2353 = vsel %vm1298, %v2351, -inf
    %2354 = vmax.xlane.f32.xlu0 %v2353
    %v2355 = vpop.xlane.xlu0 %2354
    %v2356 = vsel %vm1298, %v2352, -inf
    %2357 = vmax.xlane.f32.xlu0 %v2356
    %v2358 = vpop.xlane.xlu0 %2357
    %v2359 = vsub.f32 %v2351, %v2355
    %v2360 = vsub.f32 %v2352, %v2358
    %v2361 = vmul.f32 %v2359, 1.442695
    %v2362 = vpow.pop %v2361
    %v2363 = vmul.f32 %v2360, 1.442695
    %v2364 = vpow.pop %v2363
    %v2365 = vsel %vm1298, %v2362, 0.0
    %2366 = vadd.xlane.f32.xlu0 %v2365
    %v2367 = vpop.xlane.xlu0 %2366
    %v2368 = vsel %vm1298, %v2364, 0.0
    %2369 = vadd.xlane.f32.xlu0 %v2368
    %v2370 = vpop.xlane.xlu0 %2369
    %v2371 = vrcp.pop %v2367
    %v2372 = vrcp.pop %v2370
    %v2373 = vmul.f32 %v2362, %v2371
    %v2374 = vmul.f32 %v2364, %v2372
    %v2376 = vsel %vm1298, %v2373, 0
    %v2379 = vsel %vm1298, %v2374, 0
    %2381 = vmatpush.msra.mxu0 0.0
    %2382 = vmatpush.msra.mxu0 0.0
    %2383 = vmatpush.msra.mxu0 0.0
    %2384 = vmatpush.msra.mxu0 0.0
    %2385 = vmatpush.msra.mxu0 0.0
    %2386 = vmatpush.msra.mxu0 0.0
    %2387 = vmatpush.msra.mxu0 0.0
    %2388 = vmatpush.msra.mxu0 0.0
    %2389 = vmatpush.msra.mxu0 0.0
    %2390 = vmatpush.msra.mxu0 0.0
    %2391 = vmatpush.msra.mxu0 0.0
    %2392 = vmatpush.msra.mxu0 0.0
    %2393 = vmatpush.msra.mxu0 0.0
    %2394 = vmatpush.msra.mxu0 0.0
    %2395 = vmatpush.msra.mxu0 %v2286
    %2396 = vmatpush.msra.mxu0 %v2284
    %2397 = vmatmul.f32.gmra.mxu0 %v2376
    %v2398 = vpop.f32.mrf.mxu0
    %v2399 = vadd.f32 0.0, %v2398
    %2400 = vmatmul.f32.gmra.mxu0 %v2379
    %v2401 = vpop.f32.mrf.mxu0
    %v2402 = vadd.f32 0.0, %v2401
    %2403 = vdwg.mxu0
    %2406 = vrot.lane.b32.xlu0 %v2213, 16
    %v2407 = vpop.permute.xlu0 %2406
    %2408 = vrot.lane.b32.xlu0 %v2216, 16
    %v2409 = vpop.permute.xlu0 %2408
    %2414 = vrot.lane.b32.xlu0 %v2313, 32
    %v2415 = vpop.permute.xlu0 %2414
    %2416 = vrot.lane.b32.xlu0 %v2316, 32
    %v2417 = vpop.permute.xlu0 %2416
    %2422 = vrot.lane.b32.xlu0 %v2399, 48
    %v2423 = vpop.permute.xlu0 %2422
    %2424 = vrot.lane.b32.xlu0 %v2402, 48
    %v2425 = vpop.permute.xlu0 %2424
    %v2428 = vsel %vm1298, %v2127, %v2407
    %v2429 = vsel %vm1298, %v2130, %v2409
    %v2430 = vsel %vm467, %v2428, %v2415
    %v2431 = vsel %vm467, %v2429, %v2417
    %v2432 = vsel %vm1691, %v2430, %v2423
    %v2433 = vsel %vm1691, %v2431, %v2425
    %v2434 = vld [vmem:[%s3 + $0x360] sm:$0xff]
    %v2435 = vld [vmem:[%s3 + $0x368] sm:$0xff]
    %v2436 = vld [vmem:[%s3 + $0x370] sm:$0xff]
    %v2437 = vld [vmem:[%s3 + $0x378] sm:$0xff]
    %v2438 = vld [vmem:[%s3 + $0x380] sm:$0xff]
    %v2439 = vld [vmem:[%s3 + $0x388] sm:$0xff]
    %v2440 = vld [vmem:[%s3 + $0x390] sm:$0xff]
    %v2441 = vld [vmem:[%s3 + $0x398] sm:$0xff]
    %v2443 = vsel %vm1175, %v2432, 0
    %v2446 = vsel %vm1175, %v2433, 0
    %2448 = vmatpush.msra.mxu0 0.0
    %2449 = vmatpush.msra.mxu0 0.0
    %2450 = vmatpush.msra.mxu0 0.0
    %2451 = vmatpush.msra.mxu0 0.0
    %2452 = vmatpush.msra.mxu0 0.0
    %2453 = vmatpush.msra.mxu0 0.0
    %2454 = vmatpush.msra.mxu0 0.0
    %2455 = vmatpush.msra.mxu0 0.0
    %2456 = vmatpush.msra.mxu0 %v2441
    %2457 = vmatpush.msra.mxu0 %v2440
    %2458 = vmatpush.msra.mxu0 %v2439
    %2459 = vmatpush.msra.mxu0 %v2438
    %2460 = vmatpush.msra.mxu0 %v2437
    %2461 = vmatpush.msra.mxu0 %v2436
    %2462 = vmatpush.msra.mxu0 %v2435
    %2463 = vmatpush.msra.mxu0 %v2434
    %2464 = vmatmul.f32.gmra.mxu0 %v2443
    %v2465 = vpop.f32.mrf.mxu0
    %v2466 = vadd.f32 0.0, %v2465
    %2467 = vmatmul.f32.gmra.mxu0 %v2446
    %v2468 = vpop.f32.mrf.mxu0
    %v2469 = vadd.f32 0.0, %v2468
    %2470 = vdwg.mxu0
    %v2471 = vadd.f32 %v1920, %v2466
    %v2472 = vadd.f32 %v1921, %v2469
    %v2473 = vld [vmem:[%s3 + $0x428] sm:$0x1]
    %v2474 = vmul.f32 %v2471, %v2471
    %v2475 = vmul.f32 %v2472, %v2472
    %v2476 = vsel %vm1175, %v2474, 0.0
    %2477 = vadd.xlane.f32.xlu0 %v2476
    %v2478 = vpop.xlane.xlu0 %2477
    %v2479 = vsel %vm1175, %v2475, 0.0
    %2480 = vadd.xlane.f32.xlu0 %v2479
    %v2481 = vpop.xlane.xlu0 %2480
    %v2482 = vmul.f32 %v2478, %v1188
    %v2483 = vmul.f32 %v2481, %v1188
    %v2484 = vadd.f32 %v2482, 1e-05
    %v2485 = vadd.f32 %v2483, 1e-05
    %v2486 = vrsqrt.pop %v2484
    %v2487 = vmul.f32 %v2486, %v2484
    %v2488 = vmul.f32 %v2487, %v2486
    %v2489 = vmul.f32 0.5, %v2488
    %v2490 = vsub.f32 1.5, %v2489
    %v2491 = vmul.f32 %v2486, %v2490
    %vm2492 = vweird.f32 %v2484
    %vm2493 = vweird.f32 %v2486
    %vm2494 = vmor %vm2492, %vm2493
    %v2495 = vsel %vm2494, %v2486, %v2491
    %v2496 = vrsqrt.pop %v2485
    %v2497 = vmul.f32 %v2496, %v2485
    %v2498 = vmul.f32 %v2497, %v2496
    %v2499 = vmul.f32 0.5, %v2498
    %v2500 = vsub.f32 1.5, %v2499
    %v2501 = vmul.f32 %v2496, %v2500
    %vm2502 = vweird.f32 %v2485
    %vm2503 = vweird.f32 %v2496
    %vm2504 = vmor %vm2502, %vm2503
    %v2505 = vsel %vm2504, %v2496, %v2501
    %v2506 = vmul.f32 %v2471, %v2495
    %v2507 = vmul.f32 %v2472, %v2505
    %v2508 = vperm.slane %v2473, 0
    %v2509 = vmul.f32 %v2506, %v2508
    %v2510 = vmul.f32 %v2507, %v2508
    %v2511 = vld [vmem:[#allocation2 + $0x1a0] sm:$0xff]
    %v2512 = vld [vmem:[#allocation2 + $0x1a8] sm:$0xff]
    %v2513 = vld [vmem:[#allocation2 + $0x1b0] sm:$0xff]
    %v2514 = vld [vmem:[#allocation2 + $0x1b8] sm:$0xff]
    %v2515 = vld [vmem:[#allocation2 + $0x1c0] sm:$0xff]
    %v2516 = vld [vmem:[#allocation2 + $0x1c8] sm:$0xff]
    %v2517 = vld [vmem:[#allocation2 + $0x1d0] sm:$0xff]
    %v2518 = vld [vmem:[#allocation2 + $0x1d8] sm:$0xff]
    %v2519 = vld [vmem:[#allocation2 + $0x1e0] sm:$0xff]
    %v2520 = vld [vmem:[#allocation2 + $0x1e8] sm:$0xff]
    %v2521 = vld [vmem:[#allocation2 + $0x1f0] sm:$0xff]
    %v2522 = vld [vmem:[#allocation2 + $0x1f8] sm:$0xff]
    %v2523 = vld [vmem:[#allocation2 + $0x200] sm:$0xff]
    %v2524 = vld [vmem:[#allocation2 + $0x208] sm:$0xff]
    %v2525 = vld [vmem:[#allocation2 + $0x210] sm:$0xff]
    %v2526 = vld [vmem:[#allocation2 + $0x218] sm:$0xff]
    %v2528 = vsel %vm1175, %v2509, 0
    %v2531 = vsel %vm1175, %v2510, 0
    %2533 = vmatpush.msra.mxu0 0.0
    %2534 = vmatpush.msra.mxu0 0.0
    %2535 = vmatpush.msra.mxu0 0.0
    %2536 = vmatpush.msra.mxu0 0.0
    %2537 = vmatpush.msra.mxu0 0.0
    %2538 = vmatpush.msra.mxu0 0.0
    %2539 = vmatpush.msra.mxu0 0.0
    %2540 = vmatpush.msra.mxu0 0.0
    %2541 = vmatpush.msra.mxu0 %v2525
    %2542 = vmatpush.msra.mxu0 %v2523
    %2543 = vmatpush.msra.mxu0 %v2521
    %2544 = vmatpush.msra.mxu0 %v2519
    %2545 = vmatpush.msra.mxu0 %v2517
    %2546 = vmatpush.msra.mxu0 %v2515
    %2547 = vmatpush.msra.mxu0 %v2513
    %2548 = vmatpush.msra.mxu0 %v2511
    %2549 = vmatmul.f32.gmra.mxu0 %v2528
    %v2550 = vpop.f32.mrf.mxu0
    %v2551 = vadd.f32 0.0, %v2550
    %2552 = vmatmul.f32.gmra.mxu0 %v2531
    %v2553 = vpop.f32.mrf.mxu0
    %v2554 = vadd.f32 0.0, %v2553
    %2555 = vdwg.mxu0
    %2556 = vmatpush.msra.mxu0 0.0
    %2557 = vmatpush.msra.mxu0 0.0
    %2558 = vmatpush.msra.mxu0 0.0
    %2559 = vmatpush.msra.mxu0 0.0
    %2560 = vmatpush.msra.mxu0 0.0
    %2561 = vmatpush.msra.mxu0 0.0
    %2562 = vmatpush.msra.mxu0 0.0
    %2563 = vmatpush.msra.mxu0 0.0
    %2564 = vmatpush.msra.mxu0 %v2526
    %2565 = vmatpush.msra.mxu0 %v2524
    %2566 = vmatpush.msra.mxu0 %v2522
    %2567 = vmatpush.msra.mxu0 %v2520
    %2568 = vmatpush.msra.mxu0 %v2518
    %2569 = vmatpush.msra.mxu0 %v2516
    %2570 = vmatpush.msra.mxu0 %v2514
    %2571 = vmatpush.msra.mxu0 %v2512
    %2572 = vmatmul.f32.gmra.mxu0 %v2528
    %v2573 = vpop.f32.mrf.mxu0
    %v2574 = vadd.f32 0.0, %v2573
    %2575 = vmatmul.f32.gmra.mxu0 %v2531
    %v2576 = vpop.f32.mrf.mxu0
    %v2577 = vadd.f32 0.0, %v2576
    %2578 = vdwg.mxu0
    %v2579 = vxor.u32 %v2551, 2147483648
    %v2580 = vxor.u32 %v2554, 2147483648
    %v2581 = vmul.f32 %v2579, 1.442695
    %v2582 = vpow.pop %v2581
    %v2583 = vmul.f32 %v2580, 1.442695
    %v2584 = vpow.pop %v2583
    %v2585 = vadd.f32 %v2582, 1.0
    %v2586 = vadd.f32 %v2584, 1.0
    %v2587 = vrcp.pop %v2585
    %v2588 = vmul.f32 %v2585, %v2587
    %v2589 = vsub.f32 1.0, %v2588
    %v2590 = vmul.f32 %v2587, %v2589
    %v2591 = vadd.f32 %v2587, %v2590
    %vm2592 = vweird.f32 %v2585
    %vm2593 = vweird.f32 %v2587
    %vm2594 = vmor %vm2592, %vm2593
    %v2595 = vsel %vm2594, %v2587, %v2591
    %v2596 = vand.u32 2147483647, %v2585
    %vm2597 = vcmp.eq.f32.partialorder %v2596, 8.507059e+37
    %v2598 = vand.u32 %v2585, 2147483648
    %v2599 = vor.u32 1.1754944e-38, %v2598
    %v2600 = vsel %vm2597, %v2599, %v2595
    %v2601 = vmul.f32 1.0, %v2600
    %v2602 = vrcp.pop %v2586
    %v2603 = vmul.f32 %v2586, %v2602
    %v2604 = vsub.f32 1.0, %v2603
    %v2605 = vmul.f32 %v2602, %v2604
    %v2606 = vadd.f32 %v2602, %v2605
    %vm2607 = vweird.f32 %v2586
    %vm2608 = vweird.f32 %v2602
    %vm2609 = vmor %vm2607, %vm2608
    %v2610 = vsel %vm2609, %v2602, %v2606
    %v2611 = vand.u32 2147483647, %v2586
    %vm2612 = vcmp.eq.f32.partialorder %v2611, 8.507059e+37
    %v2613 = vand.u32 %v2586, 2147483648
    %v2614 = vor.u32 1.1754944e-38, %v2613
    %v2615 = vsel %vm2612, %v2614, %v2610
    %v2616 = vmul.f32 1.0, %v2615
    %v2617 = vmul.f32 %v2551, %v2601
    %v2618 = vmul.f32 %v2554, %v2616
    %v2619 = vmul.f32 %v2617, %v2574
    %v2620 = vmul.f32 %v2618, %v2577
    %v2621 = vld [vmem:[%s3 + $0x3a0] sm:$0xff]
    %v2622 = vld [vmem:[%s3 + $0x3a8] sm:$0xff]
    %v2623 = vld [vmem:[%s3 + $0x3b0] sm:$0xff]
    %v2624 = vld [vmem:[%s3 + $0x3b8] sm:$0xff]
    %v2625 = vld [vmem:[%s3 + $0x3c0] sm:$0xff]
    %v2626 = vld [vmem:[%s3 + $0x3c8] sm:$0xff]
    %v2627 = vld [vmem:[%s3 + $0x3d0] sm:$0xff]
    %v2628 = vld [vmem:[%s3 + $0x3d8] sm:$0xff]
    %v2629 = vld [vmem:[%s3 + $0x3e0] sm:$0xff]
    %v2630 = vld [vmem:[%s3 + $0x3e8] sm:$0xff]
    %v2631 = vld [vmem:[%s3 + $0x3f0] sm:$0xff]
    %v2632 = vld [vmem:[%s3 + $0x3f8] sm:$0xff]
    %v2633 = vld [vmem:[%s3 + $0x400] sm:$0xff]
    %v2634 = vld [vmem:[%s3 + $0x408] sm:$0xff]
    %v2635 = vld [vmem:[%s3 + $0x410] sm:$0xff]
    %v2636 = vld [vmem:[%s3 + $0x418] sm:$0xff]
    %2637 = vmatpush.msra.mxu0 %v2636
    %2638 = vmatpush.msra.mxu0 %v2635
    %2639 = vmatpush.msra.mxu0 %v2634
    %2640 = vmatpush.msra.mxu0 %v2633
    %2641 = vmatpush.msra.mxu0 %v2632
    %2642 = vmatpush.msra.mxu0 %v2631
    %2643 = vmatpush.msra.mxu0 %v2630
    %2644 = vmatpush.msra.mxu0 %v2629
    %2645 = vmatpush.msra.mxu0 %v2628
    %2646 = vmatpush.msra.mxu0 %v2627
    %2647 = vmatpush.msra.mxu0 %v2626
    %2648 = vmatpush.msra.mxu0 %v2625
    %2649 = vmatpush.msra.mxu0 %v2624
    %2650 = vmatpush.msra.mxu0 %v2623
    %2651 = vmatpush.msra.mxu0 %v2622
    %2652 = vmatpush.msra.mxu0 %v2621
    %2653 = vmatmul.f32.gmra.mxu0 %v2619
    %v2654 = vpop.f32.mrf.mxu0
    %v2655 = vadd.f32 0.0, %v2654
    %2656 = vmatmul.f32.gmra.mxu0 %v2620
    %v2657 = vpop.f32.mrf.mxu0
    %v2658 = vadd.f32 0.0, %v2657
    %2659 = vdwg.mxu0
    %v2660 = vadd.f32 %v2471, %v2655
    %v2661 = vadd.f32 %v2472, %v2658
    %v2662 = vld [vmem:[%s3 + $0x288] sm:$0x1]
    %v2663 = vmul.f32 %v2660, %v2660
    %v2664 = vmul.f32 %v2661, %v2661
    %v2665 = vsel %vm1175, %v2663, 0.0
    %2666 = vadd.xlane.f32.xlu0 %v2665
    %v2667 = vpop.xlane.xlu0 %2666
    %v2668 = vsel %vm1175, %v2664, 0.0
    %2669 = vadd.xlane.f32.xlu0 %v2668
    %v2670 = vpop.xlane.xlu0 %2669
    %v2671 = vmul.f32 %v2667, %v1188
    %v2672 = vmul.f32 %v2670, %v1188
    %v2673 = vadd.f32 %v2671, 1e-05
    %v2674 = vadd.f32 %v2672, 1e-05
    %v2675 = vrsqrt.pop %v2673
    %v2676 = vmul.f32 %v2675, %v2673
    %v2677 = vmul.f32 %v2676, %v2675
    %v2678 = vmul.f32 0.5, %v2677
    %v2679 = vsub.f32 1.5, %v2678
    %v2680 = vmul.f32 %v2675, %v2679
    %vm2681 = vweird.f32 %v2673
    %vm2682 = vweird.f32 %v2675
    %vm2683 = vmor %vm2681, %vm2682
    %v2684 = vsel %vm2683, %v2675, %v2680
    %v2685 = vrsqrt.pop %v2674
    %v2686 = vmul.f32 %v2685, %v2674
    %v2687 = vmul.f32 %v2686, %v2685
    %v2688 = vmul.f32 0.5, %v2687
    %v2689 = vsub.f32 1.5, %v2688
    %v2690 = vmul.f32 %v2685, %v2689
    %vm2691 = vweird.f32 %v2674
    %vm2692 = vweird.f32 %v2685
    %vm2693 = vmor %vm2691, %vm2692
    %v2694 = vsel %vm2693, %v2685, %v2690
    %v2695 = vmul.f32 %v2660, %v2684
    %v2696 = vmul.f32 %v2661, %v2694
    %v2697 = vperm.slane %v2662, 0
    %v2698 = vmul.f32 %v2695, %v2697
    %v2699 = vmul.f32 %v2696, %v2697
    %v2700 = vld [vmem:[%s5] sm:$0xff]
    %v2701 = vld [vmem:[%s5 + $0x8] sm:$0xff]
    %v2702 = vld [vmem:[%s5 + $0x10] sm:$0xff]
    %v2703 = vld [vmem:[%s5 + $0x18] sm:$0xff]
    %v2704 = vld [vmem:[%s5 + $0x20] sm:$0xff]
    %v2705 = vld [vmem:[%s5 + $0x28] sm:$0xff]
    %v2706 = vld [vmem:[%s5 + $0x30] sm:$0xff]
    %v2707 = vld [vmem:[%s5 + $0x38] sm:$0xff]
    %v2709 = vsel %vm1175, %v2698, 0
    %v2712 = vsel %vm1175, %v2699, 0
    %2714 = vmatpush.msra.mxu0 0.0
    %2715 = vmatpush.msra.mxu0 0.0
    %2716 = vmatpush.msra.mxu0 0.0
    %2717 = vmatpush.msra.mxu0 0.0
    %2718 = vmatpush.msra.mxu0 0.0
    %2719 = vmatpush.msra.mxu0 0.0
    %2720 = vmatpush.msra.mxu0 0.0
    %2721 = vmatpush.msra.mxu0 0.0
    %2722 = vmatpush.msra.mxu0 %v2707
    %2723 = vmatpush.msra.mxu0 %v2706
    %2724 = vmatpush.msra.mxu0 %v2705
    %2725 = vmatpush.msra.mxu0 %v2704
    %2726 = vmatpush.msra.mxu0 %v2703
    %2727 = vmatpush.msra.mxu0 %v2702
    %2728 = vmatpush.msra.mxu0 %v2701
    %2729 = vmatpush.msra.mxu0 %v2700
    %2730 = vmatmul.f32.gmra.mxu0 %v2709
    %v2731 = vpop.f32.mrf.mxu0
    %v2732 = vadd.f32 0.0, %v2731
    %2733 = vmatmul.f32.gmra.mxu0 %v2712
    %v2734 = vpop.f32.mrf.mxu0
    %v2735 = vadd.f32 0.0, %v2734
    %2736 = vdwg.mxu0
    %2737 = vst [vmem:[#allocation5] sm:$0xff] %v2732
    %2738 = vst [vmem:[#allocation5 + $0x8] sm:$0xff] %v2735
    // Predicated region
    $region30: #{multimodal_llama_forward_pallas.1} parent=1 // pred_check
      _
    $region31: #{multimodal_llama_forward_pallas.1} parent=1 // pred_check_branch
      %2740 = sbr.rel (0) target = $region33
    $region32: #{multimodal_llama_forward_pallas.1} parent=1 // pred_region
      %2742 = vsyncadd [#allocation4], 0
      %s2743 = sshll.u32 [#allocation5], 4
      %s2744 = int_to_ptr.vmem [resolvable:$true] %s2743
      %s2745 = sshll.u32 %s6, 4
      %s2746 = int_to_ptr.hbm [resolvable:$true] %s2745
      %2751 = dma.vmem_to_hbm [thread:$0]  %s2744, 256, %s2746, [#allocation4], 128, 128, 8
    $region33: #{multimodal_llama_forward_pallas.1} parent=1 // pred_fallthru
      _
    // Predicated region
    $region34: #{multimodal_llama_forward_pallas.1} parent=1 // pred_check
      _
    $region35: #{multimodal_llama_forward_pallas.1} parent=1 // pred_check_branch
      %2753 = sbr.rel (0) target = $region37
    $region36: #{multimodal_llama_forward_pallas.1} parent=1 // pred_region
      %2755 = dma.done [#allocation4], 256
    $region37: #{multimodal_llama_forward_pallas.1} parent=1 // pred_fallthru
      _
    %2756 = vsyncpa [#allocation3], 1
    %2757 = vsyncpa [#allocation4], 1

</llo_original>
